<compile_context>
chip_gen: v6e
topology: v6e:2x2x1
jax: 0.10.0
libtpu: 0.0.40
codegen_flags: <defaults>
</compile_context>

<pallas_src>
import functools

import jax
import jax.numpy as jnp
from jax.experimental import pallas as pl
from jax.experimental.pallas import tpu as pltpu


_TARGET_STEP_BYTES = 512 * 1024      # ~0.5 MiB of input per grid step


def _choose_nb(N, C, HW):
    """Batch elements packed per grid step (slab rows = C*NB)."""
    target_rows = max(8, _TARGET_STEP_BYTES // (HW * 4))
    nb = max(1, target_rows // C)
    if nb >= 8:
        nb = (nb // 8) * 8            # full-sublane post-1x1 intermediates & stores
    if N >= 2:
        nb = min(nb, N // 2)          # keep >=2 grid steps (v7x megacore sharding)
    nb = max(1, min(nb, N))
    while N % nb:                     # must divide the batch
        nb -= 1
    return nb


def _spatial_attention_kernel(C, NB, H, W,
                              x_ref, w0_ref, b0_ref, ws_ref, bs_ref, wsq_ref,
                              w1_ref, b1_ref, w2_ref, b2_ref,
                              bsq_ref, wf_ref, bf_ref,
                              o_ref, st_ref):
    C2 = C // 2
    HW = H * W
    R = C * NB                         # depthwise-slab rows, ordered c*NB + n
    R2 = 2 * NB                        # avg/max stacked rows

    x = x_ref[...]                     # (R, HW) f32

    # ---- lane-coordinate maps + hoisted boundary masks --------------------
    w_pow2 = (W & (W - 1)) == 0

    def coords(rows):
        lane = jax.lax.broadcasted_iota(jnp.int32, (rows, HW), 1)
        if w_pow2:
            sh = W.bit_length() - 1
            hi = lane >> sh
            wi = lane & (W - 1)
        else:
            hi = lane // W
            wi = lane - hi * W
        return hi, wi

    def make_masks(rows, dists):
        hi, wi = coords(rows)
        return ({d: hi < (H - d) for d in dists},    # valid when dh == +d
                {d: hi >= d for d in dists},         # valid when dh == -d
                {d: wi < (W - d) for d in dists},    # valid when dw == +d
                {d: wi >= d for d in dists})         # valid when dw == -d

    def tap_mask(dh, dw, masks):
        h_lt, h_ge, w_lt, w_ge = masks
        m = None

        def conj(a, b):
            return b if a is None else jnp.logical_and(a, b)

        if dh > 0:
            m = conj(m, h_lt[dh])
        elif dh < 0:
            m = conj(m, h_ge[-dh])
        if dw > 0:
            m = conj(m, w_lt[dw])
        elif dw < 0:
            m = conj(m, w_ge[-dw])
        return m

    def shift2d(a, dh, dw, masks):
        """out[r, h*W+w] = a[r, (h+dh)*W+(w+dw)] if in bounds else 0."""
        delta = dh * W + dw
        y = a if delta == 0 else pltpu.roll(a, (-delta) % HW, 1)
        m = tap_mask(dh, dw, masks)
        return y if m is None else jnp.where(m, y, 0.0)

    masks_dw = make_masks(R, (1, 2, 4))    # conv0 (+-1), conv_spatial (+-2, +-4)
    masks_sq = make_masks(R2, (1, 2, 3))   # 7x7 squeeze (+-1..3)

    # ---- conv0: depthwise 3x3, padding=1, groups=dim -----------------------
    w0t = w0_ref[...]                      # (R, 9) per-row tap table
    attn1 = None
    for kh in range(3):
        for kw in range(3):
            t = kh * 3 + kw
            tap = shift2d(x, kh - 1, kw - 1, masks_dw) * w0t[:, t:t + 1]
            attn1 = tap if attn1 is None else attn1 + tap
    attn1 = attn1 + b0_ref[...]            # (R, 1) bias column, added once

    # ---- conv_spatial: depthwise 5x5, dilation=2, padding=4 ----------------
    wst = ws_ref[...]                      # (R, 25)
    attn2 = None
    for kh in range(5):
        for kw in range(5):
            t = kh * 5 + kw
            tap = shift2d(attn1, 2 * kh - 4, 2 * kw - 4, masks_dw) * wst[:, t:t + 1]
            attn2 = tap if attn2 is None else attn2 + tap
    attn2 = attn2 + bs_ref[...]

    # ---- 1x1 channel-mixing convs (scalar FMAs, weights from SMEM) ---------
    def conv1x1(a, w_s, b_s):
        out = []
        for j in range(C2):
            acc = a[0:NB, :] * w_s[j]                          # first channel
            for c in range(1, C):
                acc = acc + a[c * NB:(c + 1) * NB, :] * w_s[c * C2 + j]
            out.append(acc + b_s[j])                           # bias once at end
        return out

    a1 = conv1x1(attn1, w1_ref, b1_ref)    # list of C2 (NB, HW) blocks
    a2 = conv1x1(attn2, w2_ref, b2_ref)

    # ---- channel mean / max over cat([a1, a2]) ------------------------------
    blocks = a1 + a2
    s = blocks[0]
    mx = blocks[0]
    for blk in blocks[1:]:
        s = s + blk
        mx = jnp.maximum(mx, blk)
    avg = s * (1.0 / float(2 * C2))        # 2*C2 channels in the concatenation

    # ---- conv_squeeze: 2->2, 7x7, pad 3, then sigmoid -----------------------
    # Stack avg/max into one (2*NB, HW) slab via a tiny VMEM scratch so each of
    # the 49 taps needs only ONE roll + ONE mask; per-row weight columns pick
    # the avg-weight for the first NB rows and the max-weight for the last NB.
    st_ref[0:NB, :] = avg
    st_ref[NB:R2, :] = mx
    st = st_ref[...]                        # (2*NB, HW)
    wsqt = wsq_ref[...]                     # (2*NB, 98), column = tap*2 + out_ch
    acc0 = None
    acc1 = None
    for kh in range(7):
        for kw in range(7):
            t = kh * 7 + kw
            stt = shift2d(st, kh - 3, kw - 3, masks_sq)
            c0 = stt * wsqt[:, 2 * t:2 * t + 1]
            c1 = stt * wsqt[:, 2 * t + 1:2 * t + 2]
            acc0 = c0 if acc0 is None else acc0 + c0
            acc1 = c1 if acc1 is None else acc1 + c1
    sq0 = acc0[0:NB, :] + acc0[NB:R2, :] + bsq_ref[0]
    sq1 = acc1[0:NB, :] + acc1[NB:R2, :] + bsq_ref[1]
    sig0 = jax.nn.sigmoid(sq0)
    sig1 = jax.nn.sigmoid(sq1)

    # ---- gated mix + final 1x1 conv + residual gate -------------------------
    mixed = [a1[j] * sig0 + a2[j] * sig1 for j in range(C2)]

    # Per-channel strips are full, unmasked sublane tiles whenever NB % 8 == 0
    # (which the NB derivation targets for realistic batches).
    for c in range(C):
        acc = mixed[0] * wf_ref[c]                              # wf index j*C + c
        for j in range(1, C2):
            acc = acc + mixed[j] * wf_ref[j * C + c]
        acc = acc + bf_ref[c]
        o_ref[c * NB:(c + 1) * NB, :] = acc * x[c * NB:(c + 1) * NB, :]


@jax.jit
def spatial_attention_nchw(x_nchw, params):
    """PyTorch-compatible NCHW interface; relayouts to the lane-dense slab."""
    N, C, H, W = x_nchw.shape
    C2 = C // 2
    HW = H * W

    NB = _choose_nb(N, C, HW)
    GB = N // NB
    R = C * NB

    # (N,C,H,W) -> (GB, C*NB, H*W) with rows ordered c*NB + n (channel-major).
    # TODO(synk): if this relayout shows up in profiles, keep activations in the
    # slab layout across layers instead of round-tripping through NCHW.
    xs = (x_nchw.astype(jnp.float32)
          .reshape(GB, NB, C, HW)
          .transpose(0, 2, 1, 3)
          .reshape(GB, R, HW))

    def dw_tapcols(w, k):                       # (k,k,C) -> (R, k*k), row = c*NB+n
        return jnp.repeat(w.reshape(k * k, C).T, NB, axis=0)

    def bias_col(b):                            # (1,C)/(C,) -> (R, 1)
        return jnp.repeat(b.reshape(C, 1), NB, axis=0)

    w0c = dw_tapcols(params['w0'], 3)           # (R, 9)
    wsc = dw_tapcols(params['ws'], 5)           # (R, 25)
    b0c = bias_col(params['b0'])                # (R, 1)
    bsc = bias_col(params['bs'])                # (R, 1)

    # conv_squeeze per-row tap table: rows = [in_ch 0 (avg)]*NB + [in_ch 1 (max)]*NB,
    # column index = tap*2 + out_channel.
    wsqc = jnp.repeat(
        params['wsq'].reshape(49, 2, 2).transpose(1, 0, 2).reshape(2, 98),
        NB, axis=0)                             # (2*NB, 98)

    # Scalar tables for SMEM (flattened 1-D to avoid SMEM tile padding).
    w1f = params['w1'].reshape(-1)              # index c*C2 + j
    b1f = params['b1'].reshape(-1)              # (C2,)
    w2f = params['w2'].reshape(-1)
    b2f = params['b2'].reshape(-1)
    bsqf = params['bsq'].reshape(-1)            # (2,)
    wff = params['wf'].reshape(-1)              # index j*C + c
    bff = params['bf'].reshape(-1)              # (C,)

    smem = pltpu.MemorySpace.SMEM
    kernel = functools.partial(_spatial_attention_kernel, C, NB, H, W)
    y = pl.pallas_call(
        kernel,
        out_shape=jax.ShapeDtypeStruct((GB, R, HW), jnp.float32),
        grid=(GB,),
        in_specs=[
            pl.BlockSpec((None, R, HW), lambda b: (b, 0, 0)),   # x slab
            pl.BlockSpec((R, 9), lambda b: (0, 0)),             # conv0 tap table
            pl.BlockSpec((R, 1), lambda b: (0, 0)),             # conv0 bias column
            pl.BlockSpec((R, 25), lambda b: (0, 0)),            # conv_spatial taps
            pl.BlockSpec((R, 1), lambda b: (0, 0)),             # conv_spatial bias
            pl.BlockSpec((2 * NB, 98), lambda b: (0, 0)),       # conv_squeeze taps
            pl.BlockSpec(memory_space=smem),                    # w1 (scalars)
            pl.BlockSpec(memory_space=smem),                    # b1
            pl.BlockSpec(memory_space=smem),                    # w2
            pl.BlockSpec(memory_space=smem),                    # b2
            pl.BlockSpec(memory_space=smem),                    # bsq
            pl.BlockSpec(memory_space=smem),                    # wf
            pl.BlockSpec(memory_space=smem),                    # bf
        ],
        out_specs=pl.BlockSpec((None, R, HW), lambda b: (b, 0, 0)),
        scratch_shapes=[pltpu.VMEM((2 * NB, HW), jnp.float32)], # avg/max stack
        compiler_params=pltpu.CompilerParams(
            dimension_semantics=("parallel",)),
    )(xs, w0c, b0c, wsc, bsc, wsqc, w1f, b1f, w2f, b2f, bsqf, wff, bff)

    out = (y.reshape(GB, C, NB, HW)
            .transpose(0, 2, 1, 3)
            .reshape(N, C, H, W))
    return out.astype(x_nchw.dtype)


def init_params(key, dim):
    c2 = dim // 2
    ks = jax.random.split(key, 12)

    def w(k, shape, fan_in):
        return jax.random.normal(k, shape, jnp.float32) / jnp.sqrt(fan_in)

    return {
        'w0':  w(ks[0],  (3, 3, dim), 9.0),
        'b0':  w(ks[1],  (1, dim), 3.0),
        'ws':  w(ks[2],  (5, 5, dim), 25.0),
        'bs':  w(ks[3],  (1, dim), 5.0),
        'w1':  w(ks[4],  (dim, c2), float(dim)),
        'b1':  w(ks[5],  (1, c2), float(dim)),
        'w2':  w(ks[6],  (dim, c2), float(dim)),
        'b2':  w(ks[7],  (1, c2), float(dim)),
        'wsq': w(ks[8],  (7, 7, 2, 2), 98.0),
        'bsq': w(ks[9],  (1, 2), 10.0),
        'wf':  w(ks[10], (c2, dim), float(c2)),
        'bf':  w(ks[11], (1, dim), float(c2)),
    }


def ref_forward_nhwc(x, p):
    """Pure-JAX reference (lax convs), NHWC, for correctness checking."""
    dn = ('NHWC', 'HWIO', 'NHWC')
    hi = jax.lax.Precision.HIGHEST

    def dw(a, w, b, pad, dil):
        c = a.shape[-1]
        wt = w.reshape(w.shape[0], w.shape[1], 1, c)
        y = jax.lax.conv_general_dilated(
            a, wt, (1, 1), ((pad, pad), (pad, pad)), rhs_dilation=(dil, dil),
            dimension_numbers=dn, feature_group_count=c, precision=hi)
        return y + b.reshape(1, 1, 1, -1)

    def c1x1(a, w, b):
        wt = w.reshape(1, 1, *w.shape)
        y = jax.lax.conv_general_dilated(
            a, wt, (1, 1), ((0, 0), (0, 0)), dimension_numbers=dn, precision=hi)
        return y + b.reshape(1, 1, 1, -1)

    attn1 = dw(x, p['w0'], p['b0'], 1, 1)
    attn2 = dw(attn1, p['ws'], p['bs'], 4, 2)
    a1 = c1x1(attn1, p['w1'], p['b1'])
    a2 = c1x1(attn2, p['w2'], p['b2'])
    attn = jnp.concatenate([a1, a2], axis=-1)
    avg = jnp.mean(attn, axis=-1, keepdims=True)
    mx = jnp.max(attn, axis=-1, keepdims=True)
    agg = jnp.concatenate([avg, mx], axis=-1)
    sq = jax.lax.conv_general_dilated(
        agg, p['wsq'], (1, 1), ((3, 3), (3, 3)), dimension_numbers=dn,
        precision=hi) + p['bsq'].reshape(1, 1, 1, -1)
    sig = jax.nn.sigmoid(sq)
    attn = a1 * sig[..., 0:1] + a2 * sig[..., 1:2]
    attn = c1x1(attn, p['wf'], p['bf'])
    return x * attn


if __name__ == "__main__":
    key = jax.random.PRNGKey(0)
    kx, kp = jax.random.split(key)

    N, dim, H, W = 2, 4, 16, 16                 # matches PyTorch NCHW (2,4,16,16)
    x_nchw = jax.random.normal(kx, (N, dim, H, W), jnp.float32)
    params = init_params(kp, dim)

    out_nchw = jax.block_until_ready(spatial_attention_nchw(x_nchw, params))

    ref_nhwc = ref_forward_nhwc(jnp.transpose(x_nchw, (0, 2, 3, 1)), params)
    ref_nchw = jnp.transpose(ref_nhwc, (0, 3, 1, 2))

    assert out_nchw.shape == (N, dim, H, W)
    max_err = float(jnp.max(jnp.abs(out_nchw - ref_nchw)))
    assert max_err < 1e-4, f"mismatch vs reference, max_err={max_err}"
    print("KERNEL_OK")
</pallas_src>

<mosaic_0001>
module attributes {stable_mosaic.version = 11 : i64} {
  func.func @_spatial_attention_kernel(%arg0: i32, %arg1: memref<1x4x256xf32, #tpu.memory_space<vmem>>, %arg2: memref<4x9xf32, #tpu.memory_space<vmem>>, %arg3: memref<4x1xf32, #tpu.memory_space<vmem>>, %arg4: memref<4x25xf32, #tpu.memory_space<vmem>>, %arg5: memref<4x1xf32, #tpu.memory_space<vmem>>, %arg6: memref<2x98xf32, #tpu.memory_space<vmem>>, %arg7: memref<8xf32, #tpu.memory_space<smem>>, %arg8: memref<2xf32, #tpu.memory_space<smem>>, %arg9: memref<8xf32, #tpu.memory_space<smem>>, %arg10: memref<2xf32, #tpu.memory_space<smem>>, %arg11: memref<2xf32, #tpu.memory_space<smem>>, %arg12: memref<8xf32, #tpu.memory_space<smem>>, %arg13: memref<4xf32, #tpu.memory_space<smem>>, %arg14: memref<1x4x256xf32, #tpu.memory_space<vmem>>, %arg15: memref<2x256xf32, #tpu.memory_space<vmem>>) attributes {dimension_semantics = [#tpu.dimension_semantics<parallel>], iteration_bounds = array<i64: 2>, scalar_prefetch = 0 : i64, scratch_operands = 1 : i64, tpu.core_type = #tpu.core_type<tc>, window_params = [{transform_indices = @transform_0, window_bounds = array<i64: 1, 4, 256>}, {pipeline_mode = #tpu.pipeline_mode<synchronous>, transform_indices = @transform_1, window_bounds = array<i64: 4, 9>}, {pipeline_mode = #tpu.pipeline_mode<synchronous>, transform_indices = @transform_2, window_bounds = array<i64: 4, 1>}, {pipeline_mode = #tpu.pipeline_mode<synchronous>, transform_indices = @transform_3, window_bounds = array<i64: 4, 25>}, {pipeline_mode = #tpu.pipeline_mode<synchronous>, transform_indices = @transform_4, window_bounds = array<i64: 4, 1>}, {pipeline_mode = #tpu.pipeline_mode<synchronous>, transform_indices = @transform_5, window_bounds = array<i64: 2, 98>}, {transform_indices = @transform_6, window_bounds = array<i64: 8>}, {transform_indices = @transform_7, window_bounds = array<i64: 2>}, {transform_indices = @transform_8, window_bounds = array<i64: 8>}, {transform_indices = @transform_9, window_bounds = array<i64: 2>}, {transform_indices = @transform_10, window_bounds = array<i64: 2>}, {transform_indices = @transform_11, window_bounds = array<i64: 8>}, {transform_indices = @transform_12, window_bounds = array<i64: 4>}, {transform_indices = @transform_13, window_bounds = array<i64: 1, 4, 256>}]} {
    %c0 = arith.constant 0 : index
    %c0_0 = arith.constant 0 : index
    %c0_1 = arith.constant 0 : index
    %0 = vector.load %arg1[%c0, %c0_0, %c0_1] : memref<1x4x256xf32, #tpu.memory_space<vmem>>, vector<1x4x256xf32>
    %1 = vector.shape_cast %0 : vector<1x4x256xf32> to vector<4x256xf32>
    %2 = tpu.iota {dimensions = array<i32: 1>} : vector<4x256xi32>
    %c4_i32 = arith.constant 4 : i32
    %3 = vector.broadcast %c4_i32 : i32 to vector<4x256xi32>
    %4 = arith.shrsi %2, %3 : vector<4x256xi32>
    %c15_i32 = arith.constant 15 : i32
    %5 = vector.broadcast %c15_i32 : i32 to vector<4x256xi32>
    %6 = arith.andi %2, %5 : vector<4x256xi32>
    %c15_i32_2 = arith.constant 15 : i32
    %7 = vector.broadcast %c15_i32_2 : i32 to vector<4x256xi32>
    %8 = arith.cmpi slt, %4, %7 : vector<4x256xi32>
    %c14_i32 = arith.constant 14 : i32
    %9 = vector.broadcast %c14_i32 : i32 to vector<4x256xi32>
    %10 = arith.cmpi slt, %4, %9 : vector<4x256xi32>
    %c12_i32 = arith.constant 12 : i32
    %11 = vector.broadcast %c12_i32 : i32 to vector<4x256xi32>
    %12 = arith.cmpi slt, %4, %11 : vector<4x256xi32>
    %c1_i32 = arith.constant 1 : i32
    %13 = vector.broadcast %c1_i32 : i32 to vector<4x256xi32>
    %14 = arith.cmpi sge, %4, %13 : vector<4x256xi32>
    %c2_i32 = arith.constant 2 : i32
    %15 = vector.broadcast %c2_i32 : i32 to vector<4x256xi32>
    %16 = arith.cmpi sge, %4, %15 : vector<4x256xi32>
    %c4_i32_3 = arith.constant 4 : i32
    %17 = vector.broadcast %c4_i32_3 : i32 to vector<4x256xi32>
    %18 = arith.cmpi sge, %4, %17 : vector<4x256xi32>
    %c15_i32_4 = arith.constant 15 : i32
    %19 = vector.broadcast %c15_i32_4 : i32 to vector<4x256xi32>
    %20 = arith.cmpi slt, %6, %19 : vector<4x256xi32>
    %c14_i32_5 = arith.constant 14 : i32
    %21 = vector.broadcast %c14_i32_5 : i32 to vector<4x256xi32>
    %22 = arith.cmpi slt, %6, %21 : vector<4x256xi32>
    %c12_i32_6 = arith.constant 12 : i32
    %23 = vector.broadcast %c12_i32_6 : i32 to vector<4x256xi32>
    %24 = arith.cmpi slt, %6, %23 : vector<4x256xi32>
    %c1_i32_7 = arith.constant 1 : i32
    %25 = vector.broadcast %c1_i32_7 : i32 to vector<4x256xi32>
    %26 = arith.cmpi sge, %6, %25 : vector<4x256xi32>
    %c2_i32_8 = arith.constant 2 : i32
    %27 = vector.broadcast %c2_i32_8 : i32 to vector<4x256xi32>
    %28 = arith.cmpi sge, %6, %27 : vector<4x256xi32>
    %c4_i32_9 = arith.constant 4 : i32
    %29 = vector.broadcast %c4_i32_9 : i32 to vector<4x256xi32>
    %30 = arith.cmpi sge, %6, %29 : vector<4x256xi32>
    %31 = tpu.iota {dimensions = array<i32: 1>} : vector<2x256xi32>
    %c4_i32_10 = arith.constant 4 : i32
    %32 = vector.broadcast %c4_i32_10 : i32 to vector<2x256xi32>
    %33 = arith.shrsi %31, %32 : vector<2x256xi32>
    %c15_i32_11 = arith.constant 15 : i32
    %34 = vector.broadcast %c15_i32_11 : i32 to vector<2x256xi32>
    %35 = arith.andi %31, %34 : vector<2x256xi32>
    %c15_i32_12 = arith.constant 15 : i32
    %36 = vector.broadcast %c15_i32_12 : i32 to vector<2x256xi32>
    %37 = arith.cmpi slt, %33, %36 : vector<2x256xi32>
    %c14_i32_13 = arith.constant 14 : i32
    %38 = vector.broadcast %c14_i32_13 : i32 to vector<2x256xi32>
    %39 = arith.cmpi slt, %33, %38 : vector<2x256xi32>
    %c13_i32 = arith.constant 13 : i32
    %40 = vector.broadcast %c13_i32 : i32 to vector<2x256xi32>
    %41 = arith.cmpi slt, %33, %40 : vector<2x256xi32>
    %c1_i32_14 = arith.constant 1 : i32
    %42 = vector.broadcast %c1_i32_14 : i32 to vector<2x256xi32>
    %43 = arith.cmpi sge, %33, %42 : vector<2x256xi32>
    %c2_i32_15 = arith.constant 2 : i32
    %44 = vector.broadcast %c2_i32_15 : i32 to vector<2x256xi32>
    %45 = arith.cmpi sge, %33, %44 : vector<2x256xi32>
    %c3_i32 = arith.constant 3 : i32
    %46 = vector.broadcast %c3_i32 : i32 to vector<2x256xi32>
    %47 = arith.cmpi sge, %33, %46 : vector<2x256xi32>
    %c15_i32_16 = arith.constant 15 : i32
    %48 = vector.broadcast %c15_i32_16 : i32 to vector<2x256xi32>
    %49 = arith.cmpi slt, %35, %48 : vector<2x256xi32>
    %c14_i32_17 = arith.constant 14 : i32
    %50 = vector.broadcast %c14_i32_17 : i32 to vector<2x256xi32>
    %51 = arith.cmpi slt, %35, %50 : vector<2x256xi32>
    %c13_i32_18 = arith.constant 13 : i32
    %52 = vector.broadcast %c13_i32_18 : i32 to vector<2x256xi32>
    %53 = arith.cmpi slt, %35, %52 : vector<2x256xi32>
    %c1_i32_19 = arith.constant 1 : i32
    %54 = vector.broadcast %c1_i32_19 : i32 to vector<2x256xi32>
    %55 = arith.cmpi sge, %35, %54 : vector<2x256xi32>
    %c2_i32_20 = arith.constant 2 : i32
    %56 = vector.broadcast %c2_i32_20 : i32 to vector<2x256xi32>
    %57 = arith.cmpi sge, %35, %56 : vector<2x256xi32>
    %c3_i32_21 = arith.constant 3 : i32
    %58 = vector.broadcast %c3_i32_21 : i32 to vector<2x256xi32>
    %59 = arith.cmpi sge, %35, %58 : vector<2x256xi32>
    %c0_22 = arith.constant 0 : index
    %c0_23 = arith.constant 0 : index
    %60 = vector.load %arg2[%c0_22, %c0_23] : memref<4x9xf32, #tpu.memory_space<vmem>>, vector<4x9xf32>
    %c17_i32 = arith.constant 17 : i32
    %61 = tpu.dynamic_rotate %1 by %c17_i32 dim 1 : vector<4x256xf32>, i32 -> vector<4x256xf32>
    %62 = arith.andi %14, %26 : vector<4x256xi1>
    %cst = arith.constant 0.000000e+00 : f32
    %63 = vector.broadcast %cst : f32 to vector<4x256xf32>
    %64 = arith.select %62, %61, %63 : vector<4x256xi1>, vector<4x256xf32>
    %65 = vector.extract_strided_slice %60 {offsets = [0, 0], sizes = [4, 1], strides = [1, 1]} : vector<4x9xf32> to vector<4x1xf32>
    %66 = vector.broadcast %65 : vector<4x1xf32> to vector<4x256xf32>
    %67 = arith.mulf %64, %66 : vector<4x256xf32>
    %c16_i32 = arith.constant 16 : i32
    %68 = tpu.dynamic_rotate %1 by %c16_i32 dim 1 : vector<4x256xf32>, i32 -> vector<4x256xf32>
    %cst_24 = arith.constant 0.000000e+00 : f32
    %69 = vector.broadcast %cst_24 : f32 to vector<4x256xf32>
    %70 = arith.select %14, %68, %69 : vector<4x256xi1>, vector<4x256xf32>
    %71 = vector.extract_strided_slice %60 {offsets = [0, 1], sizes = [4, 1], strides = [1, 1]} : vector<4x9xf32> to vector<4x1xf32>
    %72 = vector.broadcast %71 : vector<4x1xf32> to vector<4x256xf32>
    %73 = arith.mulf %70, %72 : vector<4x256xf32>
    %74 = arith.addf %67, %73 : vector<4x256xf32>
    %c15_i32_25 = arith.constant 15 : i32
    %75 = tpu.dynamic_rotate %1 by %c15_i32_25 dim 1 : vector<4x256xf32>, i32 -> vector<4x256xf32>
    %76 = arith.andi %14, %20 : vector<4x256xi1>
    %cst_26 = arith.constant 0.000000e+00 : f32
    %77 = vector.broadcast %cst_26 : f32 to vector<4x256xf32>
    %78 = arith.select %76, %75, %77 : vector<4x256xi1>, vector<4x256xf32>
    %79 = vector.extract_strided_slice %60 {offsets = [0, 2], sizes = [4, 1], strides = [1, 1]} : vector<4x9xf32> to vector<4x1xf32>
    %80 = vector.broadcast %79 : vector<4x1xf32> to vector<4x256xf32>
    %81 = arith.mulf %78, %80 : vector<4x256xf32>
    %82 = arith.addf %74, %81 : vector<4x256xf32>
    %c1_i32_27 = arith.constant 1 : i32
    %83 = tpu.dynamic_rotate %1 by %c1_i32_27 dim 1 : vector<4x256xf32>, i32 -> vector<4x256xf32>
    %cst_28 = arith.constant 0.000000e+00 : f32
    %84 = vector.broadcast %cst_28 : f32 to vector<4x256xf32>
    %85 = arith.select %26, %83, %84 : vector<4x256xi1>, vector<4x256xf32>
    %86 = vector.extract_strided_slice %60 {offsets = [0, 3], sizes = [4, 1], strides = [1, 1]} : vector<4x9xf32> to vector<4x1xf32>
    %87 = vector.broadcast %86 : vector<4x1xf32> to vector<4x256xf32>
    %88 = arith.mulf %85, %87 : vector<4x256xf32>
    %89 = arith.addf %82, %88 : vector<4x256xf32>
    %90 = vector.extract_strided_slice %60 {offsets = [0, 4], sizes = [4, 1], strides = [1, 1]} : vector<4x9xf32> to vector<4x1xf32>
    %91 = vector.broadcast %90 : vector<4x1xf32> to vector<4x256xf32>
    %92 = arith.mulf %1, %91 : vector<4x256xf32>
    %93 = arith.addf %89, %92 : vector<4x256xf32>
    %c255_i32 = arith.constant 255 : i32
    %94 = tpu.dynamic_rotate %1 by %c255_i32 dim 1 : vector<4x256xf32>, i32 -> vector<4x256xf32>
    %cst_29 = arith.constant 0.000000e+00 : f32
    %95 = vector.broadcast %cst_29 : f32 to vector<4x256xf32>
    %96 = arith.select %20, %94, %95 : vector<4x256xi1>, vector<4x256xf32>
    %97 = vector.extract_strided_slice %60 {offsets = [0, 5], sizes = [4, 1], strides = [1, 1]} : vector<4x9xf32> to vector<4x1xf32>
    %98 = vector.broadcast %97 : vector<4x1xf32> to vector<4x256xf32>
    %99 = arith.mulf %96, %98 : vector<4x256xf32>
    %100 = arith.addf %93, %99 : vector<4x256xf32>
    %c241_i32 = arith.constant 241 : i32
    %101 = tpu.dynamic_rotate %1 by %c241_i32 dim 1 : vector<4x256xf32>, i32 -> vector<4x256xf32>
    %102 = arith.andi %8, %26 : vector<4x256xi1>
    %cst_30 = arith.constant 0.000000e+00 : f32
    %103 = vector.broadcast %cst_30 : f32 to vector<4x256xf32>
    %104 = arith.select %102, %101, %103 : vector<4x256xi1>, vector<4x256xf32>
    %105 = vector.extract_strided_slice %60 {offsets = [0, 6], sizes = [4, 1], strides = [1, 1]} : vector<4x9xf32> to vector<4x1xf32>
    %106 = vector.broadcast %105 : vector<4x1xf32> to vector<4x256xf32>
    %107 = arith.mulf %104, %106 : vector<4x256xf32>
    %108 = arith.addf %100, %107 : vector<4x256xf32>
    %c240_i32 = arith.constant 240 : i32
    %109 = tpu.dynamic_rotate %1 by %c240_i32 dim 1 : vector<4x256xf32>, i32 -> vector<4x256xf32>
    %cst_31 = arith.constant 0.000000e+00 : f32
    %110 = vector.broadcast %cst_31 : f32 to vector<4x256xf32>
    %111 = arith.select %8, %109, %110 : vector<4x256xi1>, vector<4x256xf32>
    %112 = vector.extract_strided_slice %60 {offsets = [0, 7], sizes = [4, 1], strides = [1, 1]} : vector<4x9xf32> to vector<4x1xf32>
    %113 = vector.broadcast %112 : vector<4x1xf32> to vector<4x256xf32>
    %114 = arith.mulf %111, %113 : vector<4x256xf32>
    %115 = arith.addf %108, %114 : vector<4x256xf32>
    %c239_i32 = arith.constant 239 : i32
    %116 = tpu.dynamic_rotate %1 by %c239_i32 dim 1 : vector<4x256xf32>, i32 -> vector<4x256xf32>
    %117 = arith.andi %8, %20 : vector<4x256xi1>
    %cst_32 = arith.constant 0.000000e+00 : f32
    %118 = vector.broadcast %cst_32 : f32 to vector<4x256xf32>
    %119 = arith.select %117, %116, %118 : vector<4x256xi1>, vector<4x256xf32>
    %120 = vector.extract_strided_slice %60 {offsets = [0, 8], sizes = [4, 1], strides = [1, 1]} : vector<4x9xf32> to vector<4x1xf32>
    %121 = vector.broadcast %120 : vector<4x1xf32> to vector<4x256xf32>
    %122 = arith.mulf %119, %121 : vector<4x256xf32>
    %123 = arith.addf %115, %122 : vector<4x256xf32>
    %c0_33 = arith.constant 0 : index
    %c0_34 = arith.constant 0 : index
    %124 = vector.load %arg3[%c0_33, %c0_34] : memref<4x1xf32, #tpu.memory_space<vmem>>, vector<4x1xf32>
    %125 = vector.broadcast %124 : vector<4x1xf32> to vector<4x256xf32>
    %126 = arith.addf %123, %125 : vector<4x256xf32>
    %c0_35 = arith.constant 0 : index
    %c0_36 = arith.constant 0 : index
    %127 = vector.load %arg4[%c0_35, %c0_36] : memref<4x25xf32, #tpu.memory_space<vmem>>, vector<4x25xf32>
    %c68_i32 = arith.constant 68 : i32
    %128 = tpu.dynamic_rotate %126 by %c68_i32 dim 1 : vector<4x256xf32>, i32 -> vector<4x256xf32>
    %129 = arith.andi %18, %30 : vector<4x256xi1>
    %cst_37 = arith.constant 0.000000e+00 : f32
    %130 = vector.broadcast %cst_37 : f32 to vector<4x256xf32>
    %131 = arith.select %129, %128, %130 : vector<4x256xi1>, vector<4x256xf32>
    %132 = vector.extract_strided_slice %127 {offsets = [0, 0], sizes = [4, 1], strides = [1, 1]} : vector<4x25xf32> to vector<4x1xf32>
    %133 = vector.broadcast %132 : vector<4x1xf32> to vector<4x256xf32>
    %134 = arith.mulf %131, %133 : vector<4x256xf32>
    %c66_i32 = arith.constant 66 : i32
    %135 = tpu.dynamic_rotate %126 by %c66_i32 dim 1 : vector<4x256xf32>, i32 -> vector<4x256xf32>
    %136 = arith.andi %18, %28 : vector<4x256xi1>
    %cst_38 = arith.constant 0.000000e+00 : f32
    %137 = vector.broadcast %cst_38 : f32 to vector<4x256xf32>
    %138 = arith.select %136, %135, %137 : vector<4x256xi1>, vector<4x256xf32>
    %139 = vector.extract_strided_slice %127 {offsets = [0, 1], sizes = [4, 1], strides = [1, 1]} : vector<4x25xf32> to vector<4x1xf32>
    %140 = vector.broadcast %139 : vector<4x1xf32> to vector<4x256xf32>
    %141 = arith.mulf %138, %140 : vector<4x256xf32>
    %142 = arith.addf %134, %141 : vector<4x256xf32>
    %c64_i32 = arith.constant 64 : i32
    %143 = tpu.dynamic_rotate %126 by %c64_i32 dim 1 : vector<4x256xf32>, i32 -> vector<4x256xf32>
    %cst_39 = arith.constant 0.000000e+00 : f32
    %144 = vector.broadcast %cst_39 : f32 to vector<4x256xf32>
    %145 = arith.select %18, %143, %144 : vector<4x256xi1>, vector<4x256xf32>
    %146 = vector.extract_strided_slice %127 {offsets = [0, 2], sizes = [4, 1], strides = [1, 1]} : vector<4x25xf32> to vector<4x1xf32>
    %147 = vector.broadcast %146 : vector<4x1xf32> to vector<4x256xf32>
    %148 = arith.mulf %145, %147 : vector<4x256xf32>
    %149 = arith.addf %142, %148 : vector<4x256xf32>
    %c62_i32 = arith.constant 62 : i32
    %150 = tpu.dynamic_rotate %126 by %c62_i32 dim 1 : vector<4x256xf32>, i32 -> vector<4x256xf32>
    %151 = arith.andi %18, %22 : vector<4x256xi1>
    %cst_40 = arith.constant 0.000000e+00 : f32
    %152 = vector.broadcast %cst_40 : f32 to vector<4x256xf32>
    %153 = arith.select %151, %150, %152 : vector<4x256xi1>, vector<4x256xf32>
    %154 = vector.extract_strided_slice %127 {offsets = [0, 3], sizes = [4, 1], strides = [1, 1]} : vector<4x25xf32> to vector<4x1xf32>
    %155 = vector.broadcast %154 : vector<4x1xf32> to vector<4x256xf32>
    %156 = arith.mulf %153, %155 : vector<4x256xf32>
    %157 = arith.addf %149, %156 : vector<4x256xf32>
    %c60_i32 = arith.constant 60 : i32
    %158 = tpu.dynamic_rotate %126 by %c60_i32 dim 1 : vector<4x256xf32>, i32 -> vector<4x256xf32>
    %159 = arith.andi %18, %24 : vector<4x256xi1>
    %cst_41 = arith.constant 0.000000e+00 : f32
    %160 = vector.broadcast %cst_41 : f32 to vector<4x256xf32>
    %161 = arith.select %159, %158, %160 : vector<4x256xi1>, vector<4x256xf32>
    %162 = vector.extract_strided_slice %127 {offsets = [0, 4], sizes = [4, 1], strides = [1, 1]} : vector<4x25xf32> to vector<4x1xf32>
    %163 = vector.broadcast %162 : vector<4x1xf32> to vector<4x256xf32>
    %164 = arith.mulf %161, %163 : vector<4x256xf32>
    %165 = arith.addf %157, %164 : vector<4x256xf32>
    %c36_i32 = arith.constant 36 : i32
    %166 = tpu.dynamic_rotate %126 by %c36_i32 dim 1 : vector<4x256xf32>, i32 -> vector<4x256xf32>
    %167 = arith.andi %16, %30 : vector<4x256xi1>
    %cst_42 = arith.constant 0.000000e+00 : f32
    %168 = vector.broadcast %cst_42 : f32 to vector<4x256xf32>
    %169 = arith.select %167, %166, %168 : vector<4x256xi1>, vector<4x256xf32>
    %170 = vector.extract_strided_slice %127 {offsets = [0, 5], sizes = [4, 1], strides = [1, 1]} : vector<4x25xf32> to vector<4x1xf32>
    %171 = vector.broadcast %170 : vector<4x1xf32> to vector<4x256xf32>
    %172 = arith.mulf %169, %171 : vector<4x256xf32>
    %173 = arith.addf %165, %172 : vector<4x256xf32>
    %c34_i32 = arith.constant 34 : i32
    %174 = tpu.dynamic_rotate %126 by %c34_i32 dim 1 : vector<4x256xf32>, i32 -> vector<4x256xf32>
    %175 = arith.andi %16, %28 : vector<4x256xi1>
    %cst_43 = arith.constant 0.000000e+00 : f32
    %176 = vector.broadcast %cst_43 : f32 to vector<4x256xf32>
    %177 = arith.select %175, %174, %176 : vector<4x256xi1>, vector<4x256xf32>
    %178 = vector.extract_strided_slice %127 {offsets = [0, 6], sizes = [4, 1], strides = [1, 1]} : vector<4x25xf32> to vector<4x1xf32>
    %179 = vector.broadcast %178 : vector<4x1xf32> to vector<4x256xf32>
    %180 = arith.mulf %177, %179 : vector<4x256xf32>
    %181 = arith.addf %173, %180 : vector<4x256xf32>
    %c32_i32 = arith.constant 32 : i32
    %182 = tpu.dynamic_rotate %126 by %c32_i32 dim 1 : vector<4x256xf32>, i32 -> vector<4x256xf32>
    %cst_44 = arith.constant 0.000000e+00 : f32
    %183 = vector.broadcast %cst_44 : f32 to vector<4x256xf32>
    %184 = arith.select %16, %182, %183 : vector<4x256xi1>, vector<4x256xf32>
    %185 = vector.extract_strided_slice %127 {offsets = [0, 7], sizes = [4, 1], strides = [1, 1]} : vector<4x25xf32> to vector<4x1xf32>
    %186 = vector.broadcast %185 : vector<4x1xf32> to vector<4x256xf32>
    %187 = arith.mulf %184, %186 : vector<4x256xf32>
    %188 = arith.addf %181, %187 : vector<4x256xf32>
    %c30_i32 = arith.constant 30 : i32
    %189 = tpu.dynamic_rotate %126 by %c30_i32 dim 1 : vector<4x256xf32>, i32 -> vector<4x256xf32>
    %190 = arith.andi %16, %22 : vector<4x256xi1>
    %cst_45 = arith.constant 0.000000e+00 : f32
    %191 = vector.broadcast %cst_45 : f32 to vector<4x256xf32>
    %192 = arith.select %190, %189, %191 : vector<4x256xi1>, vector<4x256xf32>
    %193 = vector.extract_strided_slice %127 {offsets = [0, 8], sizes = [4, 1], strides = [1, 1]} : vector<4x25xf32> to vector<4x1xf32>
    %194 = vector.broadcast %193 : vector<4x1xf32> to vector<4x256xf32>
    %195 = arith.mulf %192, %194 : vector<4x256xf32>
    %196 = arith.addf %188, %195 : vector<4x256xf32>
    %c28_i32 = arith.constant 28 : i32
    %197 = tpu.dynamic_rotate %126 by %c28_i32 dim 1 : vector<4x256xf32>, i32 -> vector<4x256xf32>
    %198 = arith.andi %16, %24 : vector<4x256xi1>
    %cst_46 = arith.constant 0.000000e+00 : f32
    %199 = vector.broadcast %cst_46 : f32 to vector<4x256xf32>
    %200 = arith.select %198, %197, %199 : vector<4x256xi1>, vector<4x256xf32>
    %201 = vector.extract_strided_slice %127 {offsets = [0, 9], sizes = [4, 1], strides = [1, 1]} : vector<4x25xf32> to vector<4x1xf32>
    %202 = vector.broadcast %201 : vector<4x1xf32> to vector<4x256xf32>
    %203 = arith.mulf %200, %202 : vector<4x256xf32>
    %204 = arith.addf %196, %203 : vector<4x256xf32>
    %c4_i32_47 = arith.constant 4 : i32
    %205 = tpu.dynamic_rotate %126 by %c4_i32_47 dim 1 : vector<4x256xf32>, i32 -> vector<4x256xf32>
    %cst_48 = arith.constant 0.000000e+00 : f32
    %206 = vector.broadcast %cst_48 : f32 to vector<4x256xf32>
    %207 = arith.select %30, %205, %206 : vector<4x256xi1>, vector<4x256xf32>
    %208 = vector.extract_strided_slice %127 {offsets = [0, 10], sizes = [4, 1], strides = [1, 1]} : vector<4x25xf32> to vector<4x1xf32>
    %209 = vector.broadcast %208 : vector<4x1xf32> to vector<4x256xf32>
    %210 = arith.mulf %207, %209 : vector<4x256xf32>
    %211 = arith.addf %204, %210 : vector<4x256xf32>
    %c2_i32_49 = arith.constant 2 : i32
    %212 = tpu.dynamic_rotate %126 by %c2_i32_49 dim 1 : vector<4x256xf32>, i32 -> vector<4x256xf32>
    %cst_50 = arith.constant 0.000000e+00 : f32
    %213 = vector.broadcast %cst_50 : f32 to vector<4x256xf32>
    %214 = arith.select %28, %212, %213 : vector<4x256xi1>, vector<4x256xf32>
    %215 = vector.extract_strided_slice %127 {offsets = [0, 11], sizes = [4, 1], strides = [1, 1]} : vector<4x25xf32> to vector<4x1xf32>
    %216 = vector.broadcast %215 : vector<4x1xf32> to vector<4x256xf32>
    %217 = arith.mulf %214, %216 : vector<4x256xf32>
    %218 = arith.addf %211, %217 : vector<4x256xf32>
    %219 = vector.extract_strided_slice %127 {offsets = [0, 12], sizes = [4, 1], strides = [1, 1]} : vector<4x25xf32> to vector<4x1xf32>
    %220 = vector.broadcast %219 : vector<4x1xf32> to vector<4x256xf32>
    %221 = arith.mulf %126, %220 : vector<4x256xf32>
    %222 = arith.addf %218, %221 : vector<4x256xf32>
    %c254_i32 = arith.constant 254 : i32
    %223 = tpu.dynamic_rotate %126 by %c254_i32 dim 1 : vector<4x256xf32>, i32 -> vector<4x256xf32>
    %cst_51 = arith.constant 0.000000e+00 : f32
    %224 = vector.broadcast %cst_51 : f32 to vector<4x256xf32>
    %225 = arith.select %22, %223, %224 : vector<4x256xi1>, vector<4x256xf32>
    %226 = vector.extract_strided_slice %127 {offsets = [0, 13], sizes = [4, 1], strides = [1, 1]} : vector<4x25xf32> to vector<4x1xf32>
    %227 = vector.broadcast %226 : vector<4x1xf32> to vector<4x256xf32>
    %228 = arith.mulf %225, %227 : vector<4x256xf32>
    %229 = arith.addf %222, %228 : vector<4x256xf32>
    %c252_i32 = arith.constant 252 : i32
    %230 = tpu.dynamic_rotate %126 by %c252_i32 dim 1 : vector<4x256xf32>, i32 -> vector<4x256xf32>
    %cst_52 = arith.constant 0.000000e+00 : f32
    %231 = vector.broadcast %cst_52 : f32 to vector<4x256xf32>
    %232 = arith.select %24, %230, %231 : vector<4x256xi1>, vector<4x256xf32>
    %233 = vector.extract_strided_slice %127 {offsets = [0, 14], sizes = [4, 1], strides = [1, 1]} : vector<4x25xf32> to vector<4x1xf32>
    %234 = vector.broadcast %233 : vector<4x1xf32> to vector<4x256xf32>
    %235 = arith.mulf %232, %234 : vector<4x256xf32>
    %236 = arith.addf %229, %235 : vector<4x256xf32>
    %c228_i32 = arith.constant 228 : i32
    %237 = tpu.dynamic_rotate %126 by %c228_i32 dim 1 : vector<4x256xf32>, i32 -> vector<4x256xf32>
    %238 = arith.andi %10, %30 : vector<4x256xi1>
    %cst_53 = arith.constant 0.000000e+00 : f32
    %239 = vector.broadcast %cst_53 : f32 to vector<4x256xf32>
    %240 = arith.select %238, %237, %239 : vector<4x256xi1>, vector<4x256xf32>
    %241 = vector.extract_strided_slice %127 {offsets = [0, 15], sizes = [4, 1], strides = [1, 1]} : vector<4x25xf32> to vector<4x1xf32>
    %242 = vector.broadcast %241 : vector<4x1xf32> to vector<4x256xf32>
    %243 = arith.mulf %240, %242 : vector<4x256xf32>
    %244 = arith.addf %236, %243 : vector<4x256xf32>
    %c226_i32 = arith.constant 226 : i32
    %245 = tpu.dynamic_rotate %126 by %c226_i32 dim 1 : vector<4x256xf32>, i32 -> vector<4x256xf32>
    %246 = arith.andi %10, %28 : vector<4x256xi1>
    %cst_54 = arith.constant 0.000000e+00 : f32
    %247 = vector.broadcast %cst_54 : f32 to vector<4x256xf32>
    %248 = arith.select %246, %245, %247 : vector<4x256xi1>, vector<4x256xf32>
    %249 = vector.extract_strided_slice %127 {offsets = [0, 16], sizes = [4, 1], strides = [1, 1]} : vector<4x25xf32> to vector<4x1xf32>
    %250 = vector.broadcast %249 : vector<4x1xf32> to vector<4x256xf32>
    %251 = arith.mulf %248, %250 : vector<4x256xf32>
    %252 = arith.addf %244, %251 : vector<4x256xf32>
    %c224_i32 = arith.constant 224 : i32
    %253 = tpu.dynamic_rotate %126 by %c224_i32 dim 1 : vector<4x256xf32>, i32 -> vector<4x256xf32>
    %cst_55 = arith.constant 0.000000e+00 : f32
    %254 = vector.broadcast %cst_55 : f32 to vector<4x256xf32>
    %255 = arith.select %10, %253, %254 : vector<4x256xi1>, vector<4x256xf32>
    %256 = vector.extract_strided_slice %127 {offsets = [0, 17], sizes = [4, 1], strides = [1, 1]} : vector<4x25xf32> to vector<4x1xf32>
    %257 = vector.broadcast %256 : vector<4x1xf32> to vector<4x256xf32>
    %258 = arith.mulf %255, %257 : vector<4x256xf32>
    %259 = arith.addf %252, %258 : vector<4x256xf32>
    %c222_i32 = arith.constant 222 : i32
    %260 = tpu.dynamic_rotate %126 by %c222_i32 dim 1 : vector<4x256xf32>, i32 -> vector<4x256xf32>
    %261 = arith.andi %10, %22 : vector<4x256xi1>
    %cst_56 = arith.constant 0.000000e+00 : f32
    %262 = vector.broadcast %cst_56 : f32 to vector<4x256xf32>
    %263 = arith.select %261, %260, %262 : vector<4x256xi1>, vector<4x256xf32>
    %264 = vector.extract_strided_slice %127 {offsets = [0, 18], sizes = [4, 1], strides = [1, 1]} : vector<4x25xf32> to vector<4x1xf32>
    %265 = vector.broadcast %264 : vector<4x1xf32> to vector<4x256xf32>
    %266 = arith.mulf %263, %265 : vector<4x256xf32>
    %267 = arith.addf %259, %266 : vector<4x256xf32>
    %c220_i32 = arith.constant 220 : i32
    %268 = tpu.dynamic_rotate %126 by %c220_i32 dim 1 : vector<4x256xf32>, i32 -> vector<4x256xf32>
    %269 = arith.andi %10, %24 : vector<4x256xi1>
    %cst_57 = arith.constant 0.000000e+00 : f32
    %270 = vector.broadcast %cst_57 : f32 to vector<4x256xf32>
    %271 = arith.select %269, %268, %270 : vector<4x256xi1>, vector<4x256xf32>
    %272 = vector.extract_strided_slice %127 {offsets = [0, 19], sizes = [4, 1], strides = [1, 1]} : vector<4x25xf32> to vector<4x1xf32>
    %273 = vector.broadcast %272 : vector<4x1xf32> to vector<4x256xf32>
    %274 = arith.mulf %271, %273 : vector<4x256xf32>
    %275 = arith.addf %267, %274 : vector<4x256xf32>
    %c196_i32 = arith.constant 196 : i32
    %276 = tpu.dynamic_rotate %126 by %c196_i32 dim 1 : vector<4x256xf32>, i32 -> vector<4x256xf32>
    %277 = arith.andi %12, %30 : vector<4x256xi1>
    %cst_58 = arith.constant 0.000000e+00 : f32
    %278 = vector.broadcast %cst_58 : f32 to vector<4x256xf32>
    %279 = arith.select %277, %276, %278 : vector<4x256xi1>, vector<4x256xf32>
    %280 = vector.extract_strided_slice %127 {offsets = [0, 20], sizes = [4, 1], strides = [1, 1]} : vector<4x25xf32> to vector<4x1xf32>
    %281 = vector.broadcast %280 : vector<4x1xf32> to vector<4x256xf32>
    %282 = arith.mulf %279, %281 : vector<4x256xf32>
    %283 = arith.addf %275, %282 : vector<4x256xf32>
    %c194_i32 = arith.constant 194 : i32
    %284 = tpu.dynamic_rotate %126 by %c194_i32 dim 1 : vector<4x256xf32>, i32 -> vector<4x256xf32>
    %285 = arith.andi %12, %28 : vector<4x256xi1>
    %cst_59 = arith.constant 0.000000e+00 : f32
    %286 = vector.broadcast %cst_59 : f32 to vector<4x256xf32>
    %287 = arith.select %285, %284, %286 : vector<4x256xi1>, vector<4x256xf32>
    %288 = vector.extract_strided_slice %127 {offsets = [0, 21], sizes = [4, 1], strides = [1, 1]} : vector<4x25xf32> to vector<4x1xf32>
    %289 = vector.broadcast %288 : vector<4x1xf32> to vector<4x256xf32>
    %290 = arith.mulf %287, %289 : vector<4x256xf32>
    %291 = arith.addf %283, %290 : vector<4x256xf32>
    %c192_i32 = arith.constant 192 : i32
    %292 = tpu.dynamic_rotate %126 by %c192_i32 dim 1 : vector<4x256xf32>, i32 -> vector<4x256xf32>
    %cst_60 = arith.constant 0.000000e+00 : f32
    %293 = vector.broadcast %cst_60 : f32 to vector<4x256xf32>
    %294 = arith.select %12, %292, %293 : vector<4x256xi1>, vector<4x256xf32>
    %295 = vector.extract_strided_slice %127 {offsets = [0, 22], sizes = [4, 1], strides = [1, 1]} : vector<4x25xf32> to vector<4x1xf32>
    %296 = vector.broadcast %295 : vector<4x1xf32> to vector<4x256xf32>
    %297 = arith.mulf %294, %296 : vector<4x256xf32>
    %298 = arith.addf %291, %297 : vector<4x256xf32>
    %c190_i32 = arith.constant 190 : i32
    %299 = tpu.dynamic_rotate %126 by %c190_i32 dim 1 : vector<4x256xf32>, i32 -> vector<4x256xf32>
    %300 = arith.andi %12, %22 : vector<4x256xi1>
    %cst_61 = arith.constant 0.000000e+00 : f32
    %301 = vector.broadcast %cst_61 : f32 to vector<4x256xf32>
    %302 = arith.select %300, %299, %301 : vector<4x256xi1>, vector<4x256xf32>
    %303 = vector.extract_strided_slice %127 {offsets = [0, 23], sizes = [4, 1], strides = [1, 1]} : vector<4x25xf32> to vector<4x1xf32>
    %304 = vector.broadcast %303 : vector<4x1xf32> to vector<4x256xf32>
    %305 = arith.mulf %302, %304 : vector<4x256xf32>
    %306 = arith.addf %298, %305 : vector<4x256xf32>
    %c188_i32 = arith.constant 188 : i32
    %307 = tpu.dynamic_rotate %126 by %c188_i32 dim 1 : vector<4x256xf32>, i32 -> vector<4x256xf32>
    %308 = arith.andi %12, %24 : vector<4x256xi1>
    %cst_62 = arith.constant 0.000000e+00 : f32
    %309 = vector.broadcast %cst_62 : f32 to vector<4x256xf32>
    %310 = arith.select %308, %307, %309 : vector<4x256xi1>, vector<4x256xf32>
    %311 = vector.extract_strided_slice %127 {offsets = [0, 24], sizes = [4, 1], strides = [1, 1]} : vector<4x25xf32> to vector<4x1xf32>
    %312 = vector.broadcast %311 : vector<4x1xf32> to vector<4x256xf32>
    %313 = arith.mulf %310, %312 : vector<4x256xf32>
    %314 = arith.addf %306, %313 : vector<4x256xf32>
    %c0_63 = arith.constant 0 : index
    %c0_64 = arith.constant 0 : index
    %315 = vector.load %arg5[%c0_63, %c0_64] : memref<4x1xf32, #tpu.memory_space<vmem>>, vector<4x1xf32>
    %316 = vector.broadcast %315 : vector<4x1xf32> to vector<4x256xf32>
    %317 = arith.addf %314, %316 : vector<4x256xf32>
    %318 = vector.extract_strided_slice %126 {offsets = [0, 0], sizes = [1, 256], strides = [1, 1]} : vector<4x256xf32> to vector<1x256xf32>
    %c0_65 = arith.constant 0 : index
    %319 = memref.load %arg7[%c0_65] : memref<8xf32, #tpu.memory_space<smem>>
    %320 = vector.broadcast %319 : f32 to vector<1x256xf32>
    %321 = arith.mulf %318, %320 : vector<1x256xf32>
    %322 = vector.extract_strided_slice %126 {offsets = [1, 0], sizes = [1, 256], strides = [1, 1]} : vector<4x256xf32> to vector<1x256xf32>
    %c2 = arith.constant 2 : index
    %323 = memref.load %arg7[%c2] : memref<8xf32, #tpu.memory_space<smem>>
    %324 = vector.broadcast %323 : f32 to vector<1x256xf32>
    %325 = arith.mulf %322, %324 : vector<1x256xf32>
    %326 = arith.addf %321, %325 : vector<1x256xf32>
    %327 = vector.extract_strided_slice %126 {offsets = [2, 0], sizes = [1, 256], strides = [1, 1]} : vector<4x256xf32> to vector<1x256xf32>
    %c4 = arith.constant 4 : index
    %328 = memref.load %arg7[%c4] : memref<8xf32, #tpu.memory_space<smem>>
    %329 = vector.broadcast %328 : f32 to vector<1x256xf32>
    %330 = arith.mulf %327, %329 : vector<1x256xf32>
    %331 = arith.addf %326, %330 : vector<1x256xf32>
    %332 = vector.extract_strided_slice %126 {offsets = [3, 0], sizes = [1, 256], strides = [1, 1]} : vector<4x256xf32> to vector<1x256xf32>
    %c6 = arith.constant 6 : index
    %333 = memref.load %arg7[%c6] : memref<8xf32, #tpu.memory_space<smem>>
    %334 = vector.broadcast %333 : f32 to vector<1x256xf32>
    %335 = arith.mulf %332, %334 : vector<1x256xf32>
    %336 = arith.addf %331, %335 : vector<1x256xf32>
    %c0_66 = arith.constant 0 : index
    %337 = memref.load %arg8[%c0_66] : memref<2xf32, #tpu.memory_space<smem>>
    %338 = vector.broadcast %337 : f32 to vector<1x256xf32>
    %339 = arith.addf %336, %338 : vector<1x256xf32>
    %340 = vector.extract_strided_slice %126 {offsets = [0, 0], sizes = [1, 256], strides = [1, 1]} : vector<4x256xf32> to vector<1x256xf32>
    %c1 = arith.constant 1 : index
    %341 = memref.load %arg7[%c1] : memref<8xf32, #tpu.memory_space<smem>>
    %342 = vector.broadcast %341 : f32 to vector<1x256xf32>
    %343 = arith.mulf %340, %342 : vector<1x256xf32>
    %344 = vector.extract_strided_slice %126 {offsets = [1, 0], sizes = [1, 256], strides = [1, 1]} : vector<4x256xf32> to vector<1x256xf32>
    %c3 = arith.constant 3 : index
    %345 = memref.load %arg7[%c3] : memref<8xf32, #tpu.memory_space<smem>>
    %346 = vector.broadcast %345 : f32 to vector<1x256xf32>
    %347 = arith.mulf %344, %346 : vector<1x256xf32>
    %348 = arith.addf %343, %347 : vector<1x256xf32>
    %349 = vector.extract_strided_slice %126 {offsets = [2, 0], sizes = [1, 256], strides = [1, 1]} : vector<4x256xf32> to vector<1x256xf32>
    %c5 = arith.constant 5 : index
    %350 = memref.load %arg7[%c5] : memref<8xf32, #tpu.memory_space<smem>>
    %351 = vector.broadcast %350 : f32 to vector<1x256xf32>
    %352 = arith.mulf %349, %351 : vector<1x256xf32>
    %353 = arith.addf %348, %352 : vector<1x256xf32>
    %354 = vector.extract_strided_slice %126 {offsets = [3, 0], sizes = [1, 256], strides = [1, 1]} : vector<4x256xf32> to vector<1x256xf32>
    %c7 = arith.constant 7 : index
    %355 = memref.load %arg7[%c7] : memref<8xf32, #tpu.memory_space<smem>>
    %356 = vector.broadcast %355 : f32 to vector<1x256xf32>
    %357 = arith.mulf %354, %356 : vector<1x256xf32>
    %358 = arith.addf %353, %357 : vector<1x256xf32>
    %c1_67 = arith.constant 1 : index
    %359 = memref.load %arg8[%c1_67] : memref<2xf32, #tpu.memory_space<smem>>
    %360 = vector.broadcast %359 : f32 to vector<1x256xf32>
    %361 = arith.addf %358, %360 : vector<1x256xf32>
    %362 = vector.extract_strided_slice %317 {offsets = [0, 0], sizes = [1, 256], strides = [1, 1]} : vector<4x256xf32> to vector<1x256xf32>
    %c0_68 = arith.constant 0 : index
    %363 = memref.load %arg9[%c0_68] : memref<8xf32, #tpu.memory_space<smem>>
    %364 = vector.broadcast %363 : f32 to vector<1x256xf32>
    %365 = arith.mulf %362, %364 : vector<1x256xf32>
    %366 = vector.extract_strided_slice %317 {offsets = [1, 0], sizes = [1, 256], strides = [1, 1]} : vector<4x256xf32> to vector<1x256xf32>
    %c2_69 = arith.constant 2 : index
    %367 = memref.load %arg9[%c2_69] : memref<8xf32, #tpu.memory_space<smem>>
    %368 = vector.broadcast %367 : f32 to vector<1x256xf32>
    %369 = arith.mulf %366, %368 : vector<1x256xf32>
    %370 = arith.addf %365, %369 : vector<1x256xf32>
    %371 = vector.extract_strided_slice %317 {offsets = [2, 0], sizes = [1, 256], strides = [1, 1]} : vector<4x256xf32> to vector<1x256xf32>
    %c4_70 = arith.constant 4 : index
    %372 = memref.load %arg9[%c4_70] : memref<8xf32, #tpu.memory_space<smem>>
    %373 = vector.broadcast %372 : f32 to vector<1x256xf32>
    %374 = arith.mulf %371, %373 : vector<1x256xf32>
    %375 = arith.addf %370, %374 : vector<1x256xf32>
    %376 = vector.extract_strided_slice %317 {offsets = [3, 0], sizes = [1, 256], strides = [1, 1]} : vector<4x256xf32> to vector<1x256xf32>
    %c6_71 = arith.constant 6 : index
    %377 = memref.load %arg9[%c6_71] : memref<8xf32, #tpu.memory_space<smem>>
    %378 = vector.broadcast %377 : f32 to vector<1x256xf32>
    %379 = arith.mulf %376, %378 : vector<1x256xf32>
    %380 = arith.addf %375, %379 : vector<1x256xf32>
    %c0_72 = arith.constant 0 : index
    %381 = memref.load %arg10[%c0_72] : memref<2xf32, #tpu.memory_space<smem>>
    %382 = vector.broadcast %381 : f32 to vector<1x256xf32>
    %383 = arith.addf %380, %382 : vector<1x256xf32>
    %384 = vector.extract_strided_slice %317 {offsets = [0, 0], sizes = [1, 256], strides = [1, 1]} : vector<4x256xf32> to vector<1x256xf32>
    %c1_73 = arith.constant 1 : index
    %385 = memref.load %arg9[%c1_73] : memref<8xf32, #tpu.memory_space<smem>>
    %386 = vector.broadcast %385 : f32 to vector<1x256xf32>
    %387 = arith.mulf %384, %386 : vector<1x256xf32>
    %388 = vector.extract_strided_slice %317 {offsets = [1, 0], sizes = [1, 256], strides = [1, 1]} : vector<4x256xf32> to vector<1x256xf32>
    %c3_74 = arith.constant 3 : index
    %389 = memref.load %arg9[%c3_74] : memref<8xf32, #tpu.memory_space<smem>>
    %390 = vector.broadcast %389 : f32 to vector<1x256xf32>
    %391 = arith.mulf %388, %390 : vector<1x256xf32>
    %392 = arith.addf %387, %391 : vector<1x256xf32>
    %393 = vector.extract_strided_slice %317 {offsets = [2, 0], sizes = [1, 256], strides = [1, 1]} : vector<4x256xf32> to vector<1x256xf32>
    %c5_75 = arith.constant 5 : index
    %394 = memref.load %arg9[%c5_75] : memref<8xf32, #tpu.memory_space<smem>>
    %395 = vector.broadcast %394 : f32 to vector<1x256xf32>
    %396 = arith.mulf %393, %395 : vector<1x256xf32>
    %397 = arith.addf %392, %396 : vector<1x256xf32>
    %398 = vector.extract_strided_slice %317 {offsets = [3, 0], sizes = [1, 256], strides = [1, 1]} : vector<4x256xf32> to vector<1x256xf32>
    %c7_76 = arith.constant 7 : index
    %399 = memref.load %arg9[%c7_76] : memref<8xf32, #tpu.memory_space<smem>>
    %400 = vector.broadcast %399 : f32 to vector<1x256xf32>
    %401 = arith.mulf %398, %400 : vector<1x256xf32>
    %402 = arith.addf %397, %401 : vector<1x256xf32>
    %c1_77 = arith.constant 1 : index
    %403 = memref.load %arg10[%c1_77] : memref<2xf32, #tpu.memory_space<smem>>
    %404 = vector.broadcast %403 : f32 to vector<1x256xf32>
    %405 = arith.addf %402, %404 : vector<1x256xf32>
    %406 = arith.addf %339, %361 : vector<1x256xf32>
    %407 = arith.maximumf %339, %361 : vector<1x256xf32>
    %408 = arith.addf %406, %383 : vector<1x256xf32>
    %409 = arith.maximumf %407, %383 : vector<1x256xf32>
    %410 = arith.addf %408, %405 : vector<1x256xf32>
    %411 = arith.maximumf %409, %405 : vector<1x256xf32>
    %cst_78 = arith.constant 2.500000e-01 : f32
    %412 = vector.broadcast %cst_78 : f32 to vector<1x256xf32>
    %413 = arith.mulf %410, %412 : vector<1x256xf32>
    %c0_79 = arith.constant 0 : index
    %c0_80 = arith.constant 0 : index
    %414 = vector.load %arg15[%c0_79, %c0_80] : memref<2x256xf32, #tpu.memory_space<vmem>>, vector<1x256xf32>
    tpu.vector_store %arg15[%c0_79, %c0_80], %413 {strides = array<i32>} : memref<2x256xf32, #tpu.memory_space<vmem>>, vector<1x256xf32>,
    %c1_81 = arith.constant 1 : index
    %c0_82 = arith.constant 0 : index
    %415 = vector.load %arg15[%c1_81, %c0_82] : memref<2x256xf32, #tpu.memory_space<vmem>>, vector<1x256xf32>
    tpu.vector_store %arg15[%c1_81, %c0_82], %411 {strides = array<i32>} : memref<2x256xf32, #tpu.memory_space<vmem>>, vector<1x256xf32>,
    %c0_83 = arith.constant 0 : index
    %c0_84 = arith.constant 0 : index
    %416 = vector.load %arg15[%c0_83, %c0_84] : memref<2x256xf32, #tpu.memory_space<vmem>>, vector<2x256xf32>
    %c0_85 = arith.constant 0 : index
    %c0_86 = arith.constant 0 : index
    %417 = vector.load %arg6[%c0_85, %c0_86] : memref<2x98xf32, #tpu.memory_space<vmem>>, vector<2x98xf32>
    %c51_i32 = arith.constant 51 : i32
    %418 = tpu.dynamic_rotate %416 by %c51_i32 dim 1 : vector<2x256xf32>, i32 -> vector<2x256xf32>
    %419 = arith.andi %47, %59 : vector<2x256xi1>
    %cst_87 = arith.constant 0.000000e+00 : f32
    %420 = vector.broadcast %cst_87 : f32 to vector<2x256xf32>
    %421 = arith.select %419, %418, %420 : vector<2x256xi1>, vector<2x256xf32>
    %422 = vector.extract_strided_slice %417 {offsets = [0, 0], sizes = [2, 1], strides = [1, 1]} : vector<2x98xf32> to vector<2x1xf32>
    %423 = vector.broadcast %422 : vector<2x1xf32> to vector<2x256xf32>
    %424 = arith.mulf %421, %423 : vector<2x256xf32>
    %425 = vector.extract_strided_slice %417 {offsets = [0, 1], sizes = [2, 1], strides = [1, 1]} : vector<2x98xf32> to vector<2x1xf32>
    %426 = vector.broadcast %425 : vector<2x1xf32> to vector<2x256xf32>
    %427 = arith.mulf %421, %426 : vector<2x256xf32>
    %c50_i32 = arith.constant 50 : i32
    %428 = tpu.dynamic_rotate %416 by %c50_i32 dim 1 : vector<2x256xf32>, i32 -> vector<2x256xf32>
    %429 = arith.andi %47, %57 : vector<2x256xi1>
    %cst_88 = arith.constant 0.000000e+00 : f32
    %430 = vector.broadcast %cst_88 : f32 to vector<2x256xf32>
    %431 = arith.select %429, %428, %430 : vector<2x256xi1>, vector<2x256xf32>
    %432 = vector.extract_strided_slice %417 {offsets = [0, 2], sizes = [2, 1], strides = [1, 1]} : vector<2x98xf32> to vector<2x1xf32>
    %433 = vector.broadcast %432 : vector<2x1xf32> to vector<2x256xf32>
    %434 = arith.mulf %431, %433 : vector<2x256xf32>
    %435 = vector.extract_strided_slice %417 {offsets = [0, 3], sizes = [2, 1], strides = [1, 1]} : vector<2x98xf32> to vector<2x1xf32>
    %436 = vector.broadcast %435 : vector<2x1xf32> to vector<2x256xf32>
    %437 = arith.mulf %431, %436 : vector<2x256xf32>
    %438 = arith.addf %424, %434 : vector<2x256xf32>
    %439 = arith.addf %427, %437 : vector<2x256xf32>
    %c49_i32 = arith.constant 49 : i32
    %440 = tpu.dynamic_rotate %416 by %c49_i32 dim 1 : vector<2x256xf32>, i32 -> vector<2x256xf32>
    %441 = arith.andi %47, %55 : vector<2x256xi1>
    %cst_89 = arith.constant 0.000000e+00 : f32
    %442 = vector.broadcast %cst_89 : f32 to vector<2x256xf32>
    %443 = arith.select %441, %440, %442 : vector<2x256xi1>, vector<2x256xf32>
    %444 = vector.extract_strided_slice %417 {offsets = [0, 4], sizes = [2, 1], strides = [1, 1]} : vector<2x98xf32> to vector<2x1xf32>
    %445 = vector.broadcast %444 : vector<2x1xf32> to vector<2x256xf32>
    %446 = arith.mulf %443, %445 : vector<2x256xf32>
    %447 = vector.extract_strided_slice %417 {offsets = [0, 5], sizes = [2, 1], strides = [1, 1]} : vector<2x98xf32> to vector<2x1xf32>
    %448 = vector.broadcast %447 : vector<2x1xf32> to vector<2x256xf32>
    %449 = arith.mulf %443, %448 : vector<2x256xf32>
    %450 = arith.addf %438, %446 : vector<2x256xf32>
    %451 = arith.addf %439, %449 : vector<2x256xf32>
    %c48_i32 = arith.constant 48 : i32
    %452 = tpu.dynamic_rotate %416 by %c48_i32 dim 1 : vector<2x256xf32>, i32 -> vector<2x256xf32>
    %cst_90 = arith.constant 0.000000e+00 : f32
    %453 = vector.broadcast %cst_90 : f32 to vector<2x256xf32>
    %454 = arith.select %47, %452, %453 : vector<2x256xi1>, vector<2x256xf32>
    %455 = vector.extract_strided_slice %417 {offsets = [0, 6], sizes = [2, 1], strides = [1, 1]} : vector<2x98xf32> to vector<2x1xf32>
    %456 = vector.broadcast %455 : vector<2x1xf32> to vector<2x256xf32>
    %457 = arith.mulf %454, %456 : vector<2x256xf32>
    %458 = vector.extract_strided_slice %417 {offsets = [0, 7], sizes = [2, 1], strides = [1, 1]} : vector<2x98xf32> to vector<2x1xf32>
    %459 = vector.broadcast %458 : vector<2x1xf32> to vector<2x256xf32>
    %460 = arith.mulf %454, %459 : vector<2x256xf32>
    %461 = arith.addf %450, %457 : vector<2x256xf32>
    %462 = arith.addf %451, %460 : vector<2x256xf32>
    %c47_i32 = arith.constant 47 : i32
    %463 = tpu.dynamic_rotate %416 by %c47_i32 dim 1 : vector<2x256xf32>, i32 -> vector<2x256xf32>
    %464 = arith.andi %47, %49 : vector<2x256xi1>
    %cst_91 = arith.constant 0.000000e+00 : f32
    %465 = vector.broadcast %cst_91 : f32 to vector<2x256xf32>
    %466 = arith.select %464, %463, %465 : vector<2x256xi1>, vector<2x256xf32>
    %467 = vector.extract_strided_slice %417 {offsets = [0, 8], sizes = [2, 1], strides = [1, 1]} : vector<2x98xf32> to vector<2x1xf32>
    %468 = vector.broadcast %467 : vector<2x1xf32> to vector<2x256xf32>
    %469 = arith.mulf %466, %468 : vector<2x256xf32>
    %470 = vector.extract_strided_slice %417 {offsets = [0, 9], sizes = [2, 1], strides = [1, 1]} : vector<2x98xf32> to vector<2x1xf32>
    %471 = vector.broadcast %470 : vector<2x1xf32> to vector<2x256xf32>
    %472 = arith.mulf %466, %471 : vector<2x256xf32>
    %473 = arith.addf %461, %469 : vector<2x256xf32>
    %474 = arith.addf %462, %472 : vector<2x256xf32>
    %c46_i32 = arith.constant 46 : i32
    %475 = tpu.dynamic_rotate %416 by %c46_i32 dim 1 : vector<2x256xf32>, i32 -> vector<2x256xf32>
    %476 = arith.andi %47, %51 : vector<2x256xi1>
    %cst_92 = arith.constant 0.000000e+00 : f32
    %477 = vector.broadcast %cst_92 : f32 to vector<2x256xf32>
    %478 = arith.select %476, %475, %477 : vector<2x256xi1>, vector<2x256xf32>
    %479 = vector.extract_strided_slice %417 {offsets = [0, 10], sizes = [2, 1], strides = [1, 1]} : vector<2x98xf32> to vector<2x1xf32>
    %480 = vector.broadcast %479 : vector<2x1xf32> to vector<2x256xf32>
    %481 = arith.mulf %478, %480 : vector<2x256xf32>
    %482 = vector.extract_strided_slice %417 {offsets = [0, 11], sizes = [2, 1], strides = [1, 1]} : vector<2x98xf32> to vector<2x1xf32>
    %483 = vector.broadcast %482 : vector<2x1xf32> to vector<2x256xf32>
    %484 = arith.mulf %478, %483 : vector<2x256xf32>
    %485 = arith.addf %473, %481 : vector<2x256xf32>
    %486 = arith.addf %474, %484 : vector<2x256xf32>
    %c45_i32 = arith.constant 45 : i32
    %487 = tpu.dynamic_rotate %416 by %c45_i32 dim 1 : vector<2x256xf32>, i32 -> vector<2x256xf32>
    %488 = arith.andi %47, %53 : vector<2x256xi1>
    %cst_93 = arith.constant 0.000000e+00 : f32
    %489 = vector.broadcast %cst_93 : f32 to vector<2x256xf32>
    %490 = arith.select %488, %487, %489 : vector<2x256xi1>, vector<2x256xf32>
    %491 = vector.extract_strided_slice %417 {offsets = [0, 12], sizes = [2, 1], strides = [1, 1]} : vector<2x98xf32> to vector<2x1xf32>
    %492 = vector.broadcast %491 : vector<2x1xf32> to vector<2x256xf32>
    %493 = arith.mulf %490, %492 : vector<2x256xf32>
    %494 = vector.extract_strided_slice %417 {offsets = [0, 13], sizes = [2, 1], strides = [1, 1]} : vector<2x98xf32> to vector<2x1xf32>
    %495 = vector.broadcast %494 : vector<2x1xf32> to vector<2x256xf32>
    %496 = arith.mulf %490, %495 : vector<2x256xf32>
    %497 = arith.addf %485, %493 : vector<2x256xf32>
    %498 = arith.addf %486, %496 : vector<2x256xf32>
    %c35_i32 = arith.constant 35 : i32
    %499 = tpu.dynamic_rotate %416 by %c35_i32 dim 1 : vector<2x256xf32>, i32 -> vector<2x256xf32>
    %500 = arith.andi %45, %59 : vector<2x256xi1>
    %cst_94 = arith.constant 0.000000e+00 : f32
    %501 = vector.broadcast %cst_94 : f32 to vector<2x256xf32>
    %502 = arith.select %500, %499, %501 : vector<2x256xi1>, vector<2x256xf32>
    %503 = vector.extract_strided_slice %417 {offsets = [0, 14], sizes = [2, 1], strides = [1, 1]} : vector<2x98xf32> to vector<2x1xf32>
    %504 = vector.broadcast %503 : vector<2x1xf32> to vector<2x256xf32>
    %505 = arith.mulf %502, %504 : vector<2x256xf32>
    %506 = vector.extract_strided_slice %417 {offsets = [0, 15], sizes = [2, 1], strides = [1, 1]} : vector<2x98xf32> to vector<2x1xf32>
    %507 = vector.broadcast %506 : vector<2x1xf32> to vector<2x256xf32>
    %508 = arith.mulf %502, %507 : vector<2x256xf32>
    %509 = arith.addf %497, %505 : vector<2x256xf32>
    %510 = arith.addf %498, %508 : vector<2x256xf32>
    %c34_i32_95 = arith.constant 34 : i32
    %511 = tpu.dynamic_rotate %416 by %c34_i32_95 dim 1 : vector<2x256xf32>, i32 -> vector<2x256xf32>
    %512 = arith.andi %45, %57 : vector<2x256xi1>
    %cst_96 = arith.constant 0.000000e+00 : f32
    %513 = vector.broadcast %cst_96 : f32 to vector<2x256xf32>
    %514 = arith.select %512, %511, %513 : vector<2x256xi1>, vector<2x256xf32>
    %515 = vector.extract_strided_slice %417 {offsets = [0, 16], sizes = [2, 1], strides = [1, 1]} : vector<2x98xf32> to vector<2x1xf32>
    %516 = vector.broadcast %515 : vector<2x1xf32> to vector<2x256xf32>
    %517 = arith.mulf %514, %516 : vector<2x256xf32>
    %518 = vector.extract_strided_slice %417 {offsets = [0, 17], sizes = [2, 1], strides = [1, 1]} : vector<2x98xf32> to vector<2x1xf32>
    %519 = vector.broadcast %518 : vector<2x1xf32> to vector<2x256xf32>
    %520 = arith.mulf %514, %519 : vector<2x256xf32>
    %521 = arith.addf %509, %517 : vector<2x256xf32>
    %522 = arith.addf %510, %520 : vector<2x256xf32>
    %c33_i32 = arith.constant 33 : i32
    %523 = tpu.dynamic_rotate %416 by %c33_i32 dim 1 : vector<2x256xf32>, i32 -> vector<2x256xf32>
    %524 = arith.andi %45, %55 : vector<2x256xi1>
    %cst_97 = arith.constant 0.000000e+00 : f32
    %525 = vector.broadcast %cst_97 : f32 to vector<2x256xf32>
    %526 = arith.select %524, %523, %525 : vector<2x256xi1>, vector<2x256xf32>
    %527 = vector.extract_strided_slice %417 {offsets = [0, 18], sizes = [2, 1], strides = [1, 1]} : vector<2x98xf32> to vector<2x1xf32>
    %528 = vector.broadcast %527 : vector<2x1xf32> to vector<2x256xf32>
    %529 = arith.mulf %526, %528 : vector<2x256xf32>
    %530 = vector.extract_strided_slice %417 {offsets = [0, 19], sizes = [2, 1], strides = [1, 1]} : vector<2x98xf32> to vector<2x1xf32>
    %531 = vector.broadcast %530 : vector<2x1xf32> to vector<2x256xf32>
    %532 = arith.mulf %526, %531 : vector<2x256xf32>
    %533 = arith.addf %521, %529 : vector<2x256xf32>
    %534 = arith.addf %522, %532 : vector<2x256xf32>
    %c32_i32_98 = arith.constant 32 : i32
    %535 = tpu.dynamic_rotate %416 by %c32_i32_98 dim 1 : vector<2x256xf32>, i32 -> vector<2x256xf32>
    %cst_99 = arith.constant 0.000000e+00 : f32
    %536 = vector.broadcast %cst_99 : f32 to vector<2x256xf32>
    %537 = arith.select %45, %535, %536 : vector<2x256xi1>, vector<2x256xf32>
    %538 = vector.extract_strided_slice %417 {offsets = [0, 20], sizes = [2, 1], strides = [1, 1]} : vector<2x98xf32> to vector<2x1xf32>
    %539 = vector.broadcast %538 : vector<2x1xf32> to vector<2x256xf32>
    %540 = arith.mulf %537, %539 : vector<2x256xf32>
    %541 = vector.extract_strided_slice %417 {offsets = [0, 21], sizes = [2, 1], strides = [1, 1]} : vector<2x98xf32> to vector<2x1xf32>
    %542 = vector.broadcast %541 : vector<2x1xf32> to vector<2x256xf32>
    %543 = arith.mulf %537, %542 : vector<2x256xf32>
    %544 = arith.addf %533, %540 : vector<2x256xf32>
    %545 = arith.addf %534, %543 : vector<2x256xf32>
    %c31_i32 = arith.constant 31 : i32
    %546 = tpu.dynamic_rotate %416 by %c31_i32 dim 1 : vector<2x256xf32>, i32 -> vector<2x256xf32>
    %547 = arith.andi %45, %49 : vector<2x256xi1>
    %cst_100 = arith.constant 0.000000e+00 : f32
    %548 = vector.broadcast %cst_100 : f32 to vector<2x256xf32>
    %549 = arith.select %547, %546, %548 : vector<2x256xi1>, vector<2x256xf32>
    %550 = vector.extract_strided_slice %417 {offsets = [0, 22], sizes = [2, 1], strides = [1, 1]} : vector<2x98xf32> to vector<2x1xf32>
    %551 = vector.broadcast %550 : vector<2x1xf32> to vector<2x256xf32>
    %552 = arith.mulf %549, %551 : vector<2x256xf32>
    %553 = vector.extract_strided_slice %417 {offsets = [0, 23], sizes = [2, 1], strides = [1, 1]} : vector<2x98xf32> to vector<2x1xf32>
    %554 = vector.broadcast %553 : vector<2x1xf32> to vector<2x256xf32>
    %555 = arith.mulf %549, %554 : vector<2x256xf32>
    %556 = arith.addf %544, %552 : vector<2x256xf32>
    %557 = arith.addf %545, %555 : vector<2x256xf32>
    %c30_i32_101 = arith.constant 30 : i32
    %558 = tpu.dynamic_rotate %416 by %c30_i32_101 dim 1 : vector<2x256xf32>, i32 -> vector<2x256xf32>
    %559 = arith.andi %45, %51 : vector<2x256xi1>
    %cst_102 = arith.constant 0.000000e+00 : f32
    %560 = vector.broadcast %cst_102 : f32 to vector<2x256xf32>
    %561 = arith.select %559, %558, %560 : vector<2x256xi1>, vector<2x256xf32>
    %562 = vector.extract_strided_slice %417 {offsets = [0, 24], sizes = [2, 1], strides = [1, 1]} : vector<2x98xf32> to vector<2x1xf32>
    %563 = vector.broadcast %562 : vector<2x1xf32> to vector<2x256xf32>
    %564 = arith.mulf %561, %563 : vector<2x256xf32>
    %565 = vector.extract_strided_slice %417 {offsets = [0, 25], sizes = [2, 1], strides = [1, 1]} : vector<2x98xf32> to vector<2x1xf32>
    %566 = vector.broadcast %565 : vector<2x1xf32> to vector<2x256xf32>
    %567 = arith.mulf %561, %566 : vector<2x256xf32>
    %568 = arith.addf %556, %564 : vector<2x256xf32>
    %569 = arith.addf %557, %567 : vector<2x256xf32>
    %c29_i32 = arith.constant 29 : i32
    %570 = tpu.dynamic_rotate %416 by %c29_i32 dim 1 : vector<2x256xf32>, i32 -> vector<2x256xf32>
    %571 = arith.andi %45, %53 : vector<2x256xi1>
    %cst_103 = arith.constant 0.000000e+00 : f32
    %572 = vector.broadcast %cst_103 : f32 to vector<2x256xf32>
    %573 = arith.select %571, %570, %572 : vector<2x256xi1>, vector<2x256xf32>
    %574 = vector.extract_strided_slice %417 {offsets = [0, 26], sizes = [2, 1], strides = [1, 1]} : vector<2x98xf32> to vector<2x1xf32>
    %575 = vector.broadcast %574 : vector<2x1xf32> to vector<2x256xf32>
    %576 = arith.mulf %573, %575 : vector<2x256xf32>
    %577 = vector.extract_strided_slice %417 {offsets = [0, 27], sizes = [2, 1], strides = [1, 1]} : vector<2x98xf32> to vector<2x1xf32>
    %578 = vector.broadcast %577 : vector<2x1xf32> to vector<2x256xf32>
    %579 = arith.mulf %573, %578 : vector<2x256xf32>
    %580 = arith.addf %568, %576 : vector<2x256xf32>
    %581 = arith.addf %569, %579 : vector<2x256xf32>
    %c19_i32 = arith.constant 19 : i32
    %582 = tpu.dynamic_rotate %416 by %c19_i32 dim 1 : vector<2x256xf32>, i32 -> vector<2x256xf32>
    %583 = arith.andi %43, %59 : vector<2x256xi1>
    %cst_104 = arith.constant 0.000000e+00 : f32
    %584 = vector.broadcast %cst_104 : f32 to vector<2x256xf32>
    %585 = arith.select %583, %582, %584 : vector<2x256xi1>, vector<2x256xf32>
    %586 = vector.extract_strided_slice %417 {offsets = [0, 28], sizes = [2, 1], strides = [1, 1]} : vector<2x98xf32> to vector<2x1xf32>
    %587 = vector.broadcast %586 : vector<2x1xf32> to vector<2x256xf32>
    %588 = arith.mulf %585, %587 : vector<2x256xf32>
    %589 = vector.extract_strided_slice %417 {offsets = [0, 29], sizes = [2, 1], strides = [1, 1]} : vector<2x98xf32> to vector<2x1xf32>
    %590 = vector.broadcast %589 : vector<2x1xf32> to vector<2x256xf32>
    %591 = arith.mulf %585, %590 : vector<2x256xf32>
    %592 = arith.addf %580, %588 : vector<2x256xf32>
    %593 = arith.addf %581, %591 : vector<2x256xf32>
    %c18_i32 = arith.constant 18 : i32
    %594 = tpu.dynamic_rotate %416 by %c18_i32 dim 1 : vector<2x256xf32>, i32 -> vector<2x256xf32>
    %595 = arith.andi %43, %57 : vector<2x256xi1>
    %cst_105 = arith.constant 0.000000e+00 : f32
    %596 = vector.broadcast %cst_105 : f32 to vector<2x256xf32>
    %597 = arith.select %595, %594, %596 : vector<2x256xi1>, vector<2x256xf32>
    %598 = vector.extract_strided_slice %417 {offsets = [0, 30], sizes = [2, 1], strides = [1, 1]} : vector<2x98xf32> to vector<2x1xf32>
    %599 = vector.broadcast %598 : vector<2x1xf32> to vector<2x256xf32>
    %600 = arith.mulf %597, %599 : vector<2x256xf32>
    %601 = vector.extract_strided_slice %417 {offsets = [0, 31], sizes = [2, 1], strides = [1, 1]} : vector<2x98xf32> to vector<2x1xf32>
    %602 = vector.broadcast %601 : vector<2x1xf32> to vector<2x256xf32>
    %603 = arith.mulf %597, %602 : vector<2x256xf32>
    %604 = arith.addf %592, %600 : vector<2x256xf32>
    %605 = arith.addf %593, %603 : vector<2x256xf32>
    %c17_i32_106 = arith.constant 17 : i32
    %606 = tpu.dynamic_rotate %416 by %c17_i32_106 dim 1 : vector<2x256xf32>, i32 -> vector<2x256xf32>
    %607 = arith.andi %43, %55 : vector<2x256xi1>
    %cst_107 = arith.constant 0.000000e+00 : f32
    %608 = vector.broadcast %cst_107 : f32 to vector<2x256xf32>
    %609 = arith.select %607, %606, %608 : vector<2x256xi1>, vector<2x256xf32>
    %610 = vector.extract_strided_slice %417 {offsets = [0, 32], sizes = [2, 1], strides = [1, 1]} : vector<2x98xf32> to vector<2x1xf32>
    %611 = vector.broadcast %610 : vector<2x1xf32> to vector<2x256xf32>
    %612 = arith.mulf %609, %611 : vector<2x256xf32>
    %613 = vector.extract_strided_slice %417 {offsets = [0, 33], sizes = [2, 1], strides = [1, 1]} : vector<2x98xf32> to vector<2x1xf32>
    %614 = vector.broadcast %613 : vector<2x1xf32> to vector<2x256xf32>
    %615 = arith.mulf %609, %614 : vector<2x256xf32>
    %616 = arith.addf %604, %612 : vector<2x256xf32>
    %617 = arith.addf %605, %615 : vector<2x256xf32>
    %c16_i32_108 = arith.constant 16 : i32
    %618 = tpu.dynamic_rotate %416 by %c16_i32_108 dim 1 : vector<2x256xf32>, i32 -> vector<2x256xf32>
    %cst_109 = arith.constant 0.000000e+00 : f32
    %619 = vector.broadcast %cst_109 : f32 to vector<2x256xf32>
    %620 = arith.select %43, %618, %619 : vector<2x256xi1>, vector<2x256xf32>
    %621 = vector.extract_strided_slice %417 {offsets = [0, 34], sizes = [2, 1], strides = [1, 1]} : vector<2x98xf32> to vector<2x1xf32>
    %622 = vector.broadcast %621 : vector<2x1xf32> to vector<2x256xf32>
    %623 = arith.mulf %620, %622 : vector<2x256xf32>
    %624 = vector.extract_strided_slice %417 {offsets = [0, 35], sizes = [2, 1], strides = [1, 1]} : vector<2x98xf32> to vector<2x1xf32>
    %625 = vector.broadcast %624 : vector<2x1xf32> to vector<2x256xf32>
    %626 = arith.mulf %620, %625 : vector<2x256xf32>
    %627 = arith.addf %616, %623 : vector<2x256xf32>
    %628 = arith.addf %617, %626 : vector<2x256xf32>
    %c15_i32_110 = arith.constant 15 : i32
    %629 = tpu.dynamic_rotate %416 by %c15_i32_110 dim 1 : vector<2x256xf32>, i32 -> vector<2x256xf32>
    %630 = arith.andi %43, %49 : vector<2x256xi1>
    %cst_111 = arith.constant 0.000000e+00 : f32
    %631 = vector.broadcast %cst_111 : f32 to vector<2x256xf32>
    %632 = arith.select %630, %629, %631 : vector<2x256xi1>, vector<2x256xf32>
    %633 = vector.extract_strided_slice %417 {offsets = [0, 36], sizes = [2, 1], strides = [1, 1]} : vector<2x98xf32> to vector<2x1xf32>
    %634 = vector.broadcast %633 : vector<2x1xf32> to vector<2x256xf32>
    %635 = arith.mulf %632, %634 : vector<2x256xf32>
    %636 = vector.extract_strided_slice %417 {offsets = [0, 37], sizes = [2, 1], strides = [1, 1]} : vector<2x98xf32> to vector<2x1xf32>
    %637 = vector.broadcast %636 : vector<2x1xf32> to vector<2x256xf32>
    %638 = arith.mulf %632, %637 : vector<2x256xf32>
    %639 = arith.addf %627, %635 : vector<2x256xf32>
    %640 = arith.addf %628, %638 : vector<2x256xf32>
    %c14_i32_112 = arith.constant 14 : i32
    %641 = tpu.dynamic_rotate %416 by %c14_i32_112 dim 1 : vector<2x256xf32>, i32 -> vector<2x256xf32>
    %642 = arith.andi %43, %51 : vector<2x256xi1>
    %cst_113 = arith.constant 0.000000e+00 : f32
    %643 = vector.broadcast %cst_113 : f32 to vector<2x256xf32>
    %644 = arith.select %642, %641, %643 : vector<2x256xi1>, vector<2x256xf32>
    %645 = vector.extract_strided_slice %417 {offsets = [0, 38], sizes = [2, 1], strides = [1, 1]} : vector<2x98xf32> to vector<2x1xf32>
    %646 = vector.broadcast %645 : vector<2x1xf32> to vector<2x256xf32>
    %647 = arith.mulf %644, %646 : vector<2x256xf32>
    %648 = vector.extract_strided_slice %417 {offsets = [0, 39], sizes = [2, 1], strides = [1, 1]} : vector<2x98xf32> to vector<2x1xf32>
    %649 = vector.broadcast %648 : vector<2x1xf32> to vector<2x256xf32>
    %650 = arith.mulf %644, %649 : vector<2x256xf32>
    %651 = arith.addf %639, %647 : vector<2x256xf32>
    %652 = arith.addf %640, %650 : vector<2x256xf32>
    %c13_i32_114 = arith.constant 13 : i32
    %653 = tpu.dynamic_rotate %416 by %c13_i32_114 dim 1 : vector<2x256xf32>, i32 -> vector<2x256xf32>
    %654 = arith.andi %43, %53 : vector<2x256xi1>
    %cst_115 = arith.constant 0.000000e+00 : f32
    %655 = vector.broadcast %cst_115 : f32 to vector<2x256xf32>
    %656 = arith.select %654, %653, %655 : vector<2x256xi1>, vector<2x256xf32>
    %657 = vector.extract_strided_slice %417 {offsets = [0, 40], sizes = [2, 1], strides = [1, 1]} : vector<2x98xf32> to vector<2x1xf32>
    %658 = vector.broadcast %657 : vector<2x1xf32> to vector<2x256xf32>
    %659 = arith.mulf %656, %658 : vector<2x256xf32>
    %660 = vector.extract_strided_slice %417 {offsets = [0, 41], sizes = [2, 1], strides = [1, 1]} : vector<2x98xf32> to vector<2x1xf32>
    %661 = vector.broadcast %660 : vector<2x1xf32> to vector<2x256xf32>
    %662 = arith.mulf %656, %661 : vector<2x256xf32>
    %663 = arith.addf %651, %659 : vector<2x256xf32>
    %664 = arith.addf %652, %662 : vector<2x256xf32>
    %c3_i32_116 = arith.constant 3 : i32
    %665 = tpu.dynamic_rotate %416 by %c3_i32_116 dim 1 : vector<2x256xf32>, i32 -> vector<2x256xf32>
    %cst_117 = arith.constant 0.000000e+00 : f32
    %666 = vector.broadcast %cst_117 : f32 to vector<2x256xf32>
    %667 = arith.select %59, %665, %666 : vector<2x256xi1>, vector<2x256xf32>
    %668 = vector.extract_strided_slice %417 {offsets = [0, 42], sizes = [2, 1], strides = [1, 1]} : vector<2x98xf32> to vector<2x1xf32>
    %669 = vector.broadcast %668 : vector<2x1xf32> to vector<2x256xf32>
    %670 = arith.mulf %667, %669 : vector<2x256xf32>
    %671 = vector.extract_strided_slice %417 {offsets = [0, 43], sizes = [2, 1], strides = [1, 1]} : vector<2x98xf32> to vector<2x1xf32>
    %672 = vector.broadcast %671 : vector<2x1xf32> to vector<2x256xf32>
    %673 = arith.mulf %667, %672 : vector<2x256xf32>
    %674 = arith.addf %663, %670 : vector<2x256xf32>
    %675 = arith.addf %664, %673 : vector<2x256xf32>
    %c2_i32_118 = arith.constant 2 : i32
    %676 = tpu.dynamic_rotate %416 by %c2_i32_118 dim 1 : vector<2x256xf32>, i32 -> vector<2x256xf32>
    %cst_119 = arith.constant 0.000000e+00 : f32
    %677 = vector.broadcast %cst_119 : f32 to vector<2x256xf32>
    %678 = arith.select %57, %676, %677 : vector<2x256xi1>, vector<2x256xf32>
    %679 = vector.extract_strided_slice %417 {offsets = [0, 44], sizes = [2, 1], strides = [1, 1]} : vector<2x98xf32> to vector<2x1xf32>
    %680 = vector.broadcast %679 : vector<2x1xf32> to vector<2x256xf32>
    %681 = arith.mulf %678, %680 : vector<2x256xf32>
    %682 = vector.extract_strided_slice %417 {offsets = [0, 45], sizes = [2, 1], strides = [1, 1]} : vector<2x98xf32> to vector<2x1xf32>
    %683 = vector.broadcast %682 : vector<2x1xf32> to vector<2x256xf32>
    %684 = arith.mulf %678, %683 : vector<2x256xf32>
    %685 = arith.addf %674, %681 : vector<2x256xf32>
    %686 = arith.addf %675, %684 : vector<2x256xf32>
    %c1_i32_120 = arith.constant 1 : i32
    %687 = tpu.dynamic_rotate %416 by %c1_i32_120 dim 1 : vector<2x256xf32>, i32 -> vector<2x256xf32>
    %cst_121 = arith.constant 0.000000e+00 : f32
    %688 = vector.broadcast %cst_121 : f32 to vector<2x256xf32>
    %689 = arith.select %55, %687, %688 : vector<2x256xi1>, vector<2x256xf32>
    %690 = vector.extract_strided_slice %417 {offsets = [0, 46], sizes = [2, 1], strides = [1, 1]} : vector<2x98xf32> to vector<2x1xf32>
    %691 = vector.broadcast %690 : vector<2x1xf32> to vector<2x256xf32>
    %692 = arith.mulf %689, %691 : vector<2x256xf32>
    %693 = vector.extract_strided_slice %417 {offsets = [0, 47], sizes = [2, 1], strides = [1, 1]} : vector<2x98xf32> to vector<2x1xf32>
    %694 = vector.broadcast %693 : vector<2x1xf32> to vector<2x256xf32>
    %695 = arith.mulf %689, %694 : vector<2x256xf32>
    %696 = arith.addf %685, %692 : vector<2x256xf32>
    %697 = arith.addf %686, %695 : vector<2x256xf32>
    %698 = vector.extract_strided_slice %417 {offsets = [0, 48], sizes = [2, 1], strides = [1, 1]} : vector<2x98xf32> to vector<2x1xf32>
    %699 = vector.broadcast %698 : vector<2x1xf32> to vector<2x256xf32>
    %700 = arith.mulf %416, %699 : vector<2x256xf32>
    %701 = vector.extract_strided_slice %417 {offsets = [0, 49], sizes = [2, 1], strides = [1, 1]} : vector<2x98xf32> to vector<2x1xf32>
    %702 = vector.broadcast %701 : vector<2x1xf32> to vector<2x256xf32>
    %703 = arith.mulf %416, %702 : vector<2x256xf32>
    %704 = arith.addf %696, %700 : vector<2x256xf32>
    %705 = arith.addf %697, %703 : vector<2x256xf32>
    %c255_i32_122 = arith.constant 255 : i32
    %706 = tpu.dynamic_rotate %416 by %c255_i32_122 dim 1 : vector<2x256xf32>, i32 -> vector<2x256xf32>
    %cst_123 = arith.constant 0.000000e+00 : f32
    %707 = vector.broadcast %cst_123 : f32 to vector<2x256xf32>
    %708 = arith.select %49, %706, %707 : vector<2x256xi1>, vector<2x256xf32>
    %709 = vector.extract_strided_slice %417 {offsets = [0, 50], sizes = [2, 1], strides = [1, 1]} : vector<2x98xf32> to vector<2x1xf32>
    %710 = vector.broadcast %709 : vector<2x1xf32> to vector<2x256xf32>
    %711 = arith.mulf %708, %710 : vector<2x256xf32>
    %712 = vector.extract_strided_slice %417 {offsets = [0, 51], sizes = [2, 1], strides = [1, 1]} : vector<2x98xf32> to vector<2x1xf32>
    %713 = vector.broadcast %712 : vector<2x1xf32> to vector<2x256xf32>
    %714 = arith.mulf %708, %713 : vector<2x256xf32>
    %715 = arith.addf %704, %711 : vector<2x256xf32>
    %716 = arith.addf %705, %714 : vector<2x256xf32>
    %c254_i32_124 = arith.constant 254 : i32
    %717 = tpu.dynamic_rotate %416 by %c254_i32_124 dim 1 : vector<2x256xf32>, i32 -> vector<2x256xf32>
    %cst_125 = arith.constant 0.000000e+00 : f32
    %718 = vector.broadcast %cst_125 : f32 to vector<2x256xf32>
    %719 = arith.select %51, %717, %718 : vector<2x256xi1>, vector<2x256xf32>
    %720 = vector.extract_strided_slice %417 {offsets = [0, 52], sizes = [2, 1], strides = [1, 1]} : vector<2x98xf32> to vector<2x1xf32>
    %721 = vector.broadcast %720 : vector<2x1xf32> to vector<2x256xf32>
    %722 = arith.mulf %719, %721 : vector<2x256xf32>
    %723 = vector.extract_strided_slice %417 {offsets = [0, 53], sizes = [2, 1], strides = [1, 1]} : vector<2x98xf32> to vector<2x1xf32>
    %724 = vector.broadcast %723 : vector<2x1xf32> to vector<2x256xf32>
    %725 = arith.mulf %719, %724 : vector<2x256xf32>
    %726 = arith.addf %715, %722 : vector<2x256xf32>
    %727 = arith.addf %716, %725 : vector<2x256xf32>
    %c253_i32 = arith.constant 253 : i32
    %728 = tpu.dynamic_rotate %416 by %c253_i32 dim 1 : vector<2x256xf32>, i32 -> vector<2x256xf32>
    %cst_126 = arith.constant 0.000000e+00 : f32
    %729 = vector.broadcast %cst_126 : f32 to vector<2x256xf32>
    %730 = arith.select %53, %728, %729 : vector<2x256xi1>, vector<2x256xf32>
    %731 = vector.extract_strided_slice %417 {offsets = [0, 54], sizes = [2, 1], strides = [1, 1]} : vector<2x98xf32> to vector<2x1xf32>
    %732 = vector.broadcast %731 : vector<2x1xf32> to vector<2x256xf32>
    %733 = arith.mulf %730, %732 : vector<2x256xf32>
    %734 = vector.extract_strided_slice %417 {offsets = [0, 55], sizes = [2, 1], strides = [1, 1]} : vector<2x98xf32> to vector<2x1xf32>
    %735 = vector.broadcast %734 : vector<2x1xf32> to vector<2x256xf32>
    %736 = arith.mulf %730, %735 : vector<2x256xf32>
    %737 = arith.addf %726, %733 : vector<2x256xf32>
    %738 = arith.addf %727, %736 : vector<2x256xf32>
    %c243_i32 = arith.constant 243 : i32
    %739 = tpu.dynamic_rotate %416 by %c243_i32 dim 1 : vector<2x256xf32>, i32 -> vector<2x256xf32>
    %740 = arith.andi %37, %59 : vector<2x256xi1>
    %cst_127 = arith.constant 0.000000e+00 : f32
    %741 = vector.broadcast %cst_127 : f32 to vector<2x256xf32>
    %742 = arith.select %740, %739, %741 : vector<2x256xi1>, vector<2x256xf32>
    %743 = vector.extract_strided_slice %417 {offsets = [0, 56], sizes = [2, 1], strides = [1, 1]} : vector<2x98xf32> to vector<2x1xf32>
    %744 = vector.broadcast %743 : vector<2x1xf32> to vector<2x256xf32>
    %745 = arith.mulf %742, %744 : vector<2x256xf32>
    %746 = vector.extract_strided_slice %417 {offsets = [0, 57], sizes = [2, 1], strides = [1, 1]} : vector<2x98xf32> to vector<2x1xf32>
    %747 = vector.broadcast %746 : vector<2x1xf32> to vector<2x256xf32>
    %748 = arith.mulf %742, %747 : vector<2x256xf32>
    %749 = arith.addf %737, %745 : vector<2x256xf32>
    %750 = arith.addf %738, %748 : vector<2x256xf32>
    %c242_i32 = arith.constant 242 : i32
    %751 = tpu.dynamic_rotate %416 by %c242_i32 dim 1 : vector<2x256xf32>, i32 -> vector<2x256xf32>
    %752 = arith.andi %37, %57 : vector<2x256xi1>
    %cst_128 = arith.constant 0.000000e+00 : f32
    %753 = vector.broadcast %cst_128 : f32 to vector<2x256xf32>
    %754 = arith.select %752, %751, %753 : vector<2x256xi1>, vector<2x256xf32>
    %755 = vector.extract_strided_slice %417 {offsets = [0, 58], sizes = [2, 1], strides = [1, 1]} : vector<2x98xf32> to vector<2x1xf32>
    %756 = vector.broadcast %755 : vector<2x1xf32> to vector<2x256xf32>
    %757 = arith.mulf %754, %756 : vector<2x256xf32>
    %758 = vector.extract_strided_slice %417 {offsets = [0, 59], sizes = [2, 1], strides = [1, 1]} : vector<2x98xf32> to vector<2x1xf32>
    %759 = vector.broadcast %758 : vector<2x1xf32> to vector<2x256xf32>
    %760 = arith.mulf %754, %759 : vector<2x256xf32>
    %761 = arith.addf %749, %757 : vector<2x256xf32>
    %762 = arith.addf %750, %760 : vector<2x256xf32>
    %c241_i32_129 = arith.constant 241 : i32
    %763 = tpu.dynamic_rotate %416 by %c241_i32_129 dim 1 : vector<2x256xf32>, i32 -> vector<2x256xf32>
    %764 = arith.andi %37, %55 : vector<2x256xi1>
    %cst_130 = arith.constant 0.000000e+00 : f32
    %765 = vector.broadcast %cst_130 : f32 to vector<2x256xf32>
    %766 = arith.select %764, %763, %765 : vector<2x256xi1>, vector<2x256xf32>
    %767 = vector.extract_strided_slice %417 {offsets = [0, 60], sizes = [2, 1], strides = [1, 1]} : vector<2x98xf32> to vector<2x1xf32>
    %768 = vector.broadcast %767 : vector<2x1xf32> to vector<2x256xf32>
    %769 = arith.mulf %766, %768 : vector<2x256xf32>
    %770 = vector.extract_strided_slice %417 {offsets = [0, 61], sizes = [2, 1], strides = [1, 1]} : vector<2x98xf32> to vector<2x1xf32>
    %771 = vector.broadcast %770 : vector<2x1xf32> to vector<2x256xf32>
    %772 = arith.mulf %766, %771 : vector<2x256xf32>
    %773 = arith.addf %761, %769 : vector<2x256xf32>
    %774 = arith.addf %762, %772 : vector<2x256xf32>
    %c240_i32_131 = arith.constant 240 : i32
    %775 = tpu.dynamic_rotate %416 by %c240_i32_131 dim 1 : vector<2x256xf32>, i32 -> vector<2x256xf32>
    %cst_132 = arith.constant 0.000000e+00 : f32
    %776 = vector.broadcast %cst_132 : f32 to vector<2x256xf32>
    %777 = arith.select %37, %775, %776 : vector<2x256xi1>, vector<2x256xf32>
    %778 = vector.extract_strided_slice %417 {offsets = [0, 62], sizes = [2, 1], strides = [1, 1]} : vector<2x98xf32> to vector<2x1xf32>
    %779 = vector.broadcast %778 : vector<2x1xf32> to vector<2x256xf32>
    %780 = arith.mulf %777, %779 : vector<2x256xf32>
    %781 = vector.extract_strided_slice %417 {offsets = [0, 63], sizes = [2, 1], strides = [1, 1]} : vector<2x98xf32> to vector<2x1xf32>
    %782 = vector.broadcast %781 : vector<2x1xf32> to vector<2x256xf32>
    %783 = arith.mulf %777, %782 : vector<2x256xf32>
    %784 = arith.addf %773, %780 : vector<2x256xf32>
    %785 = arith.addf %774, %783 : vector<2x256xf32>
    %c239_i32_133 = arith.constant 239 : i32
    %786 = tpu.dynamic_rotate %416 by %c239_i32_133 dim 1 : vector<2x256xf32>, i32 -> vector<2x256xf32>
    %787 = arith.andi %37, %49 : vector<2x256xi1>
    %cst_134 = arith.constant 0.000000e+00 : f32
    %788 = vector.broadcast %cst_134 : f32 to vector<2x256xf32>
    %789 = arith.select %787, %786, %788 : vector<2x256xi1>, vector<2x256xf32>
    %790 = vector.extract_strided_slice %417 {offsets = [0, 64], sizes = [2, 1], strides = [1, 1]} : vector<2x98xf32> to vector<2x1xf32>
    %791 = vector.broadcast %790 : vector<2x1xf32> to vector<2x256xf32>
    %792 = arith.mulf %789, %791 : vector<2x256xf32>
    %793 = vector.extract_strided_slice %417 {offsets = [0, 65], sizes = [2, 1], strides = [1, 1]} : vector<2x98xf32> to vector<2x1xf32>
    %794 = vector.broadcast %793 : vector<2x1xf32> to vector<2x256xf32>
    %795 = arith.mulf %789, %794 : vector<2x256xf32>
    %796 = arith.addf %784, %792 : vector<2x256xf32>
    %797 = arith.addf %785, %795 : vector<2x256xf32>
    %c238_i32 = arith.constant 238 : i32
    %798 = tpu.dynamic_rotate %416 by %c238_i32 dim 1 : vector<2x256xf32>, i32 -> vector<2x256xf32>
    %799 = arith.andi %37, %51 : vector<2x256xi1>
    %cst_135 = arith.constant 0.000000e+00 : f32
    %800 = vector.broadcast %cst_135 : f32 to vector<2x256xf32>
    %801 = arith.select %799, %798, %800 : vector<2x256xi1>, vector<2x256xf32>
    %802 = vector.extract_strided_slice %417 {offsets = [0, 66], sizes = [2, 1], strides = [1, 1]} : vector<2x98xf32> to vector<2x1xf32>
    %803 = vector.broadcast %802 : vector<2x1xf32> to vector<2x256xf32>
    %804 = arith.mulf %801, %803 : vector<2x256xf32>
    %805 = vector.extract_strided_slice %417 {offsets = [0, 67], sizes = [2, 1], strides = [1, 1]} : vector<2x98xf32> to vector<2x1xf32>
    %806 = vector.broadcast %805 : vector<2x1xf32> to vector<2x256xf32>
    %807 = arith.mulf %801, %806 : vector<2x256xf32>
    %808 = arith.addf %796, %804 : vector<2x256xf32>
    %809 = arith.addf %797, %807 : vector<2x256xf32>
    %c237_i32 = arith.constant 237 : i32
    %810 = tpu.dynamic_rotate %416 by %c237_i32 dim 1 : vector<2x256xf32>, i32 -> vector<2x256xf32>
    %811 = arith.andi %37, %53 : vector<2x256xi1>
    %cst_136 = arith.constant 0.000000e+00 : f32
    %812 = vector.broadcast %cst_136 : f32 to vector<2x256xf32>
    %813 = arith.select %811, %810, %812 : vector<2x256xi1>, vector<2x256xf32>
    %814 = vector.extract_strided_slice %417 {offsets = [0, 68], sizes = [2, 1], strides = [1, 1]} : vector<2x98xf32> to vector<2x1xf32>
    %815 = vector.broadcast %814 : vector<2x1xf32> to vector<2x256xf32>
    %816 = arith.mulf %813, %815 : vector<2x256xf32>
    %817 = vector.extract_strided_slice %417 {offsets = [0, 69], sizes = [2, 1], strides = [1, 1]} : vector<2x98xf32> to vector<2x1xf32>
    %818 = vector.broadcast %817 : vector<2x1xf32> to vector<2x256xf32>
    %819 = arith.mulf %813, %818 : vector<2x256xf32>
    %820 = arith.addf %808, %816 : vector<2x256xf32>
    %821 = arith.addf %809, %819 : vector<2x256xf32>
    %c227_i32 = arith.constant 227 : i32
    %822 = tpu.dynamic_rotate %416 by %c227_i32 dim 1 : vector<2x256xf32>, i32 -> vector<2x256xf32>
    %823 = arith.andi %39, %59 : vector<2x256xi1>
    %cst_137 = arith.constant 0.000000e+00 : f32
    %824 = vector.broadcast %cst_137 : f32 to vector<2x256xf32>
    %825 = arith.select %823, %822, %824 : vector<2x256xi1>, vector<2x256xf32>
    %826 = vector.extract_strided_slice %417 {offsets = [0, 70], sizes = [2, 1], strides = [1, 1]} : vector<2x98xf32> to vector<2x1xf32>
    %827 = vector.broadcast %826 : vector<2x1xf32> to vector<2x256xf32>
    %828 = arith.mulf %825, %827 : vector<2x256xf32>
    %829 = vector.extract_strided_slice %417 {offsets = [0, 71], sizes = [2, 1], strides = [1, 1]} : vector<2x98xf32> to vector<2x1xf32>
    %830 = vector.broadcast %829 : vector<2x1xf32> to vector<2x256xf32>
    %831 = arith.mulf %825, %830 : vector<2x256xf32>
    %832 = arith.addf %820, %828 : vector<2x256xf32>
    %833 = arith.addf %821, %831 : vector<2x256xf32>
    %c226_i32_138 = arith.constant 226 : i32
    %834 = tpu.dynamic_rotate %416 by %c226_i32_138 dim 1 : vector<2x256xf32>, i32 -> vector<2x256xf32>
    %835 = arith.andi %39, %57 : vector<2x256xi1>
    %cst_139 = arith.constant 0.000000e+00 : f32
    %836 = vector.broadcast %cst_139 : f32 to vector<2x256xf32>
    %837 = arith.select %835, %834, %836 : vector<2x256xi1>, vector<2x256xf32>
    %838 = vector.extract_strided_slice %417 {offsets = [0, 72], sizes = [2, 1], strides = [1, 1]} : vector<2x98xf32> to vector<2x1xf32>
    %839 = vector.broadcast %838 : vector<2x1xf32> to vector<2x256xf32>
    %840 = arith.mulf %837, %839 : vector<2x256xf32>
    %841 = vector.extract_strided_slice %417 {offsets = [0, 73], sizes = [2, 1], strides = [1, 1]} : vector<2x98xf32> to vector<2x1xf32>
    %842 = vector.broadcast %841 : vector<2x1xf32> to vector<2x256xf32>
    %843 = arith.mulf %837, %842 : vector<2x256xf32>
    %844 = arith.addf %832, %840 : vector<2x256xf32>
    %845 = arith.addf %833, %843 : vector<2x256xf32>
    %c225_i32 = arith.constant 225 : i32
    %846 = tpu.dynamic_rotate %416 by %c225_i32 dim 1 : vector<2x256xf32>, i32 -> vector<2x256xf32>
    %847 = arith.andi %39, %55 : vector<2x256xi1>
    %cst_140 = arith.constant 0.000000e+00 : f32
    %848 = vector.broadcast %cst_140 : f32 to vector<2x256xf32>
    %849 = arith.select %847, %846, %848 : vector<2x256xi1>, vector<2x256xf32>
    %850 = vector.extract_strided_slice %417 {offsets = [0, 74], sizes = [2, 1], strides = [1, 1]} : vector<2x98xf32> to vector<2x1xf32>
    %851 = vector.broadcast %850 : vector<2x1xf32> to vector<2x256xf32>
    %852 = arith.mulf %849, %851 : vector<2x256xf32>
    %853 = vector.extract_strided_slice %417 {offsets = [0, 75], sizes = [2, 1], strides = [1, 1]} : vector<2x98xf32> to vector<2x1xf32>
    %854 = vector.broadcast %853 : vector<2x1xf32> to vector<2x256xf32>
    %855 = arith.mulf %849, %854 : vector<2x256xf32>
    %856 = arith.addf %844, %852 : vector<2x256xf32>
    %857 = arith.addf %845, %855 : vector<2x256xf32>
    %c224_i32_141 = arith.constant 224 : i32
    %858 = tpu.dynamic_rotate %416 by %c224_i32_141 dim 1 : vector<2x256xf32>, i32 -> vector<2x256xf32>
    %cst_142 = arith.constant 0.000000e+00 : f32
    %859 = vector.broadcast %cst_142 : f32 to vector<2x256xf32>
    %860 = arith.select %39, %858, %859 : vector<2x256xi1>, vector<2x256xf32>
    %861 = vector.extract_strided_slice %417 {offsets = [0, 76], sizes = [2, 1], strides = [1, 1]} : vector<2x98xf32> to vector<2x1xf32>
    %862 = vector.broadcast %861 : vector<2x1xf32> to vector<2x256xf32>
    %863 = arith.mulf %860, %862 : vector<2x256xf32>
    %864 = vector.extract_strided_slice %417 {offsets = [0, 77], sizes = [2, 1], strides = [1, 1]} : vector<2x98xf32> to vector<2x1xf32>
    %865 = vector.broadcast %864 : vector<2x1xf32> to vector<2x256xf32>
    %866 = arith.mulf %860, %865 : vector<2x256xf32>
    %867 = arith.addf %856, %863 : vector<2x256xf32>
    %868 = arith.addf %857, %866 : vector<2x256xf32>
    %c223_i32 = arith.constant 223 : i32
    %869 = tpu.dynamic_rotate %416 by %c223_i32 dim 1 : vector<2x256xf32>, i32 -> vector<2x256xf32>
    %870 = arith.andi %39, %49 : vector<2x256xi1>
    %cst_143 = arith.constant 0.000000e+00 : f32
    %871 = vector.broadcast %cst_143 : f32 to vector<2x256xf32>
    %872 = arith.select %870, %869, %871 : vector<2x256xi1>, vector<2x256xf32>
    %873 = vector.extract_strided_slice %417 {offsets = [0, 78], sizes = [2, 1], strides = [1, 1]} : vector<2x98xf32> to vector<2x1xf32>
    %874 = vector.broadcast %873 : vector<2x1xf32> to vector<2x256xf32>
    %875 = arith.mulf %872, %874 : vector<2x256xf32>
    %876 = vector.extract_strided_slice %417 {offsets = [0, 79], sizes = [2, 1], strides = [1, 1]} : vector<2x98xf32> to vector<2x1xf32>
    %877 = vector.broadcast %876 : vector<2x1xf32> to vector<2x256xf32>
    %878 = arith.mulf %872, %877 : vector<2x256xf32>
    %879 = arith.addf %867, %875 : vector<2x256xf32>
    %880 = arith.addf %868, %878 : vector<2x256xf32>
    %c222_i32_144 = arith.constant 222 : i32
    %881 = tpu.dynamic_rotate %416 by %c222_i32_144 dim 1 : vector<2x256xf32>, i32 -> vector<2x256xf32>
    %882 = arith.andi %39, %51 : vector<2x256xi1>
    %cst_145 = arith.constant 0.000000e+00 : f32
    %883 = vector.broadcast %cst_145 : f32 to vector<2x256xf32>
    %884 = arith.select %882, %881, %883 : vector<2x256xi1>, vector<2x256xf32>
    %885 = vector.extract_strided_slice %417 {offsets = [0, 80], sizes = [2, 1], strides = [1, 1]} : vector<2x98xf32> to vector<2x1xf32>
    %886 = vector.broadcast %885 : vector<2x1xf32> to vector<2x256xf32>
    %887 = arith.mulf %884, %886 : vector<2x256xf32>
    %888 = vector.extract_strided_slice %417 {offsets = [0, 81], sizes = [2, 1], strides = [1, 1]} : vector<2x98xf32> to vector<2x1xf32>
    %889 = vector.broadcast %888 : vector<2x1xf32> to vector<2x256xf32>
    %890 = arith.mulf %884, %889 : vector<2x256xf32>
    %891 = arith.addf %879, %887 : vector<2x256xf32>
    %892 = arith.addf %880, %890 : vector<2x256xf32>
    %c221_i32 = arith.constant 221 : i32
    %893 = tpu.dynamic_rotate %416 by %c221_i32 dim 1 : vector<2x256xf32>, i32 -> vector<2x256xf32>
    %894 = arith.andi %39, %53 : vector<2x256xi1>
    %cst_146 = arith.constant 0.000000e+00 : f32
    %895 = vector.broadcast %cst_146 : f32 to vector<2x256xf32>
    %896 = arith.select %894, %893, %895 : vector<2x256xi1>, vector<2x256xf32>
    %897 = vector.extract_strided_slice %417 {offsets = [0, 82], sizes = [2, 1], strides = [1, 1]} : vector<2x98xf32> to vector<2x1xf32>
    %898 = vector.broadcast %897 : vector<2x1xf32> to vector<2x256xf32>
    %899 = arith.mulf %896, %898 : vector<2x256xf32>
    %900 = vector.extract_strided_slice %417 {offsets = [0, 83], sizes = [2, 1], strides = [1, 1]} : vector<2x98xf32> to vector<2x1xf32>
    %901 = vector.broadcast %900 : vector<2x1xf32> to vector<2x256xf32>
    %902 = arith.mulf %896, %901 : vector<2x256xf32>
    %903 = arith.addf %891, %899 : vector<2x256xf32>
    %904 = arith.addf %892, %902 : vector<2x256xf32>
    %c211_i32 = arith.constant 211 : i32
    %905 = tpu.dynamic_rotate %416 by %c211_i32 dim 1 : vector<2x256xf32>, i32 -> vector<2x256xf32>
    %906 = arith.andi %41, %59 : vector<2x256xi1>
    %cst_147 = arith.constant 0.000000e+00 : f32
    %907 = vector.broadcast %cst_147 : f32 to vector<2x256xf32>
    %908 = arith.select %906, %905, %907 : vector<2x256xi1>, vector<2x256xf32>
    %909 = vector.extract_strided_slice %417 {offsets = [0, 84], sizes = [2, 1], strides = [1, 1]} : vector<2x98xf32> to vector<2x1xf32>
    %910 = vector.broadcast %909 : vector<2x1xf32> to vector<2x256xf32>
    %911 = arith.mulf %908, %910 : vector<2x256xf32>
    %912 = vector.extract_strided_slice %417 {offsets = [0, 85], sizes = [2, 1], strides = [1, 1]} : vector<2x98xf32> to vector<2x1xf32>
    %913 = vector.broadcast %912 : vector<2x1xf32> to vector<2x256xf32>
    %914 = arith.mulf %908, %913 : vector<2x256xf32>
    %915 = arith.addf %903, %911 : vector<2x256xf32>
    %916 = arith.addf %904, %914 : vector<2x256xf32>
    %c210_i32 = arith.constant 210 : i32
    %917 = tpu.dynamic_rotate %416 by %c210_i32 dim 1 : vector<2x256xf32>, i32 -> vector<2x256xf32>
    %918 = arith.andi %41, %57 : vector<2x256xi1>
    %cst_148 = arith.constant 0.000000e+00 : f32
    %919 = vector.broadcast %cst_148 : f32 to vector<2x256xf32>
    %920 = arith.select %918, %917, %919 : vector<2x256xi1>, vector<2x256xf32>
    %921 = vector.extract_strided_slice %417 {offsets = [0, 86], sizes = [2, 1], strides = [1, 1]} : vector<2x98xf32> to vector<2x1xf32>
    %922 = vector.broadcast %921 : vector<2x1xf32> to vector<2x256xf32>
    %923 = arith.mulf %920, %922 : vector<2x256xf32>
    %924 = vector.extract_strided_slice %417 {offsets = [0, 87], sizes = [2, 1], strides = [1, 1]} : vector<2x98xf32> to vector<2x1xf32>
    %925 = vector.broadcast %924 : vector<2x1xf32> to vector<2x256xf32>
    %926 = arith.mulf %920, %925 : vector<2x256xf32>
    %927 = arith.addf %915, %923 : vector<2x256xf32>
    %928 = arith.addf %916, %926 : vector<2x256xf32>
    %c209_i32 = arith.constant 209 : i32
    %929 = tpu.dynamic_rotate %416 by %c209_i32 dim 1 : vector<2x256xf32>, i32 -> vector<2x256xf32>
    %930 = arith.andi %41, %55 : vector<2x256xi1>
    %cst_149 = arith.constant 0.000000e+00 : f32
    %931 = vector.broadcast %cst_149 : f32 to vector<2x256xf32>
    %932 = arith.select %930, %929, %931 : vector<2x256xi1>, vector<2x256xf32>
    %933 = vector.extract_strided_slice %417 {offsets = [0, 88], sizes = [2, 1], strides = [1, 1]} : vector<2x98xf32> to vector<2x1xf32>
    %934 = vector.broadcast %933 : vector<2x1xf32> to vector<2x256xf32>
    %935 = arith.mulf %932, %934 : vector<2x256xf32>
    %936 = vector.extract_strided_slice %417 {offsets = [0, 89], sizes = [2, 1], strides = [1, 1]} : vector<2x98xf32> to vector<2x1xf32>
    %937 = vector.broadcast %936 : vector<2x1xf32> to vector<2x256xf32>
    %938 = arith.mulf %932, %937 : vector<2x256xf32>
    %939 = arith.addf %927, %935 : vector<2x256xf32>
    %940 = arith.addf %928, %938 : vector<2x256xf32>
    %c208_i32 = arith.constant 208 : i32
    %941 = tpu.dynamic_rotate %416 by %c208_i32 dim 1 : vector<2x256xf32>, i32 -> vector<2x256xf32>
    %cst_150 = arith.constant 0.000000e+00 : f32
    %942 = vector.broadcast %cst_150 : f32 to vector<2x256xf32>
    %943 = arith.select %41, %941, %942 : vector<2x256xi1>, vector<2x256xf32>
    %944 = vector.extract_strided_slice %417 {offsets = [0, 90], sizes = [2, 1], strides = [1, 1]} : vector<2x98xf32> to vector<2x1xf32>
    %945 = vector.broadcast %944 : vector<2x1xf32> to vector<2x256xf32>
    %946 = arith.mulf %943, %945 : vector<2x256xf32>
    %947 = vector.extract_strided_slice %417 {offsets = [0, 91], sizes = [2, 1], strides = [1, 1]} : vector<2x98xf32> to vector<2x1xf32>
    %948 = vector.broadcast %947 : vector<2x1xf32> to vector<2x256xf32>
    %949 = arith.mulf %943, %948 : vector<2x256xf32>
    %950 = arith.addf %939, %946 : vector<2x256xf32>
    %951 = arith.addf %940, %949 : vector<2x256xf32>
    %c207_i32 = arith.constant 207 : i32
    %952 = tpu.dynamic_rotate %416 by %c207_i32 dim 1 : vector<2x256xf32>, i32 -> vector<2x256xf32>
    %953 = arith.andi %41, %49 : vector<2x256xi1>
    %cst_151 = arith.constant 0.000000e+00 : f32
    %954 = vector.broadcast %cst_151 : f32 to vector<2x256xf32>
    %955 = arith.select %953, %952, %954 : vector<2x256xi1>, vector<2x256xf32>
    %956 = vector.extract_strided_slice %417 {offsets = [0, 92], sizes = [2, 1], strides = [1, 1]} : vector<2x98xf32> to vector<2x1xf32>
    %957 = vector.broadcast %956 : vector<2x1xf32> to vector<2x256xf32>
    %958 = arith.mulf %955, %957 : vector<2x256xf32>
    %959 = vector.extract_strided_slice %417 {offsets = [0, 93], sizes = [2, 1], strides = [1, 1]} : vector<2x98xf32> to vector<2x1xf32>
    %960 = vector.broadcast %959 : vector<2x1xf32> to vector<2x256xf32>
    %961 = arith.mulf %955, %960 : vector<2x256xf32>
    %962 = arith.addf %950, %958 : vector<2x256xf32>
    %963 = arith.addf %951, %961 : vector<2x256xf32>
    %c206_i32 = arith.constant 206 : i32
    %964 = tpu.dynamic_rotate %416 by %c206_i32 dim 1 : vector<2x256xf32>, i32 -> vector<2x256xf32>
    %965 = arith.andi %41, %51 : vector<2x256xi1>
    %cst_152 = arith.constant 0.000000e+00 : f32
    %966 = vector.broadcast %cst_152 : f32 to vector<2x256xf32>
    %967 = arith.select %965, %964, %966 : vector<2x256xi1>, vector<2x256xf32>
    %968 = vector.extract_strided_slice %417 {offsets = [0, 94], sizes = [2, 1], strides = [1, 1]} : vector<2x98xf32> to vector<2x1xf32>
    %969 = vector.broadcast %968 : vector<2x1xf32> to vector<2x256xf32>
    %970 = arith.mulf %967, %969 : vector<2x256xf32>
    %971 = vector.extract_strided_slice %417 {offsets = [0, 95], sizes = [2, 1], strides = [1, 1]} : vector<2x98xf32> to vector<2x1xf32>
    %972 = vector.broadcast %971 : vector<2x1xf32> to vector<2x256xf32>
    %973 = arith.mulf %967, %972 : vector<2x256xf32>
    %974 = arith.addf %962, %970 : vector<2x256xf32>
    %975 = arith.addf %963, %973 : vector<2x256xf32>
    %c205_i32 = arith.constant 205 : i32
    %976 = tpu.dynamic_rotate %416 by %c205_i32 dim 1 : vector<2x256xf32>, i32 -> vector<2x256xf32>
    %977 = arith.andi %41, %53 : vector<2x256xi1>
    %cst_153 = arith.constant 0.000000e+00 : f32
    %978 = vector.broadcast %cst_153 : f32 to vector<2x256xf32>
    %979 = arith.select %977, %976, %978 : vector<2x256xi1>, vector<2x256xf32>
    %980 = vector.extract_strided_slice %417 {offsets = [0, 96], sizes = [2, 1], strides = [1, 1]} : vector<2x98xf32> to vector<2x1xf32>
    %981 = vector.broadcast %980 : vector<2x1xf32> to vector<2x256xf32>
    %982 = arith.mulf %979, %981 : vector<2x256xf32>
    %983 = vector.extract_strided_slice %417 {offsets = [0, 97], sizes = [2, 1], strides = [1, 1]} : vector<2x98xf32> to vector<2x1xf32>
    %984 = vector.broadcast %983 : vector<2x1xf32> to vector<2x256xf32>
    %985 = arith.mulf %979, %984 : vector<2x256xf32>
    %986 = arith.addf %974, %982 : vector<2x256xf32>
    %987 = arith.addf %975, %985 : vector<2x256xf32>
    %988 = vector.extract_strided_slice %986 {offsets = [0, 0], sizes = [1, 256], strides = [1, 1]} : vector<2x256xf32> to vector<1x256xf32>
    %989 = vector.extract_strided_slice %986 {offsets = [1, 0], sizes = [1, 256], strides = [1, 1]} : vector<2x256xf32> to vector<1x256xf32>
    %990 = arith.addf %988, %989 : vector<1x256xf32>
    %c0_154 = arith.constant 0 : index
    %991 = memref.load %arg11[%c0_154] : memref<2xf32, #tpu.memory_space<smem>>
    %992 = vector.broadcast %991 : f32 to vector<1x256xf32>
    %993 = arith.addf %990, %992 : vector<1x256xf32>
    %994 = vector.extract_strided_slice %987 {offsets = [0, 0], sizes = [1, 256], strides = [1, 1]} : vector<2x256xf32> to vector<1x256xf32>
    %995 = vector.extract_strided_slice %987 {offsets = [1, 0], sizes = [1, 256], strides = [1, 1]} : vector<2x256xf32> to vector<1x256xf32>
    %996 = arith.addf %994, %995 : vector<1x256xf32>
    %c1_155 = arith.constant 1 : index
    %997 = memref.load %arg11[%c1_155] : memref<2xf32, #tpu.memory_space<smem>>
    %998 = vector.broadcast %997 : f32 to vector<1x256xf32>
    %999 = arith.addf %996, %998 : vector<1x256xf32>
    %1000 = arith.negf %993 : vector<1x256xf32>
    %1001 = math.exp %1000 : vector<1x256xf32>
    %cst_156 = arith.constant 1.000000e+00 : f32
    %1002 = vector.broadcast %cst_156 : f32 to vector<1x256xf32>
    %1003 = arith.addf %1002, %1001 : vector<1x256xf32>
    %1004 = arith.divf %1002, %1003 : vector<1x256xf32>
    %1005 = arith.negf %999 : vector<1x256xf32>
    %1006 = math.exp %1005 : vector<1x256xf32>
    %cst_157 = arith.constant 1.000000e+00 : f32
    %1007 = vector.broadcast %cst_157 : f32 to vector<1x256xf32>
    %1008 = arith.addf %1007, %1006 : vector<1x256xf32>
    %1009 = arith.divf %1007, %1008 : vector<1x256xf32>
    %1010 = arith.mulf %339, %1004 : vector<1x256xf32>
    %1011 = arith.mulf %383, %1009 : vector<1x256xf32>
    %1012 = arith.addf %1010, %1011 : vector<1x256xf32>
    %1013 = arith.mulf %361, %1004 : vector<1x256xf32>
    %1014 = arith.mulf %405, %1009 : vector<1x256xf32>
    %1015 = arith.addf %1013, %1014 : vector<1x256xf32>
    %c0_158 = arith.constant 0 : index
    %1016 = memref.load %arg12[%c0_158] : memref<8xf32, #tpu.memory_space<smem>>
    %1017 = vector.broadcast %1016 : f32 to vector<1x256xf32>
    %1018 = arith.mulf %1012, %1017 : vector<1x256xf32>
    %c4_159 = arith.constant 4 : index
    %1019 = memref.load %arg12[%c4_159] : memref<8xf32, #tpu.memory_space<smem>>
    %1020 = vector.broadcast %1019 : f32 to vector<1x256xf32>
    %1021 = arith.mulf %1015, %1020 : vector<1x256xf32>
    %1022 = arith.addf %1018, %1021 : vector<1x256xf32>
    %c0_160 = arith.constant 0 : index
    %1023 = memref.load %arg13[%c0_160] : memref<4xf32, #tpu.memory_space<smem>>
    %1024 = vector.broadcast %1023 : f32 to vector<1x256xf32>
    %1025 = arith.addf %1022, %1024 : vector<1x256xf32>
    %1026 = vector.extract_strided_slice %1 {offsets = [0, 0], sizes = [1, 256], strides = [1, 1]} : vector<4x256xf32> to vector<1x256xf32>
    %1027 = arith.mulf %1025, %1026 : vector<1x256xf32>
    %c0_161 = arith.constant 0 : index
    %c0_162 = arith.constant 0 : index
    %c0_163 = arith.constant 0 : index
    %1028 = vector.load %arg14[%c0_161, %c0_162, %c0_163] : memref<1x4x256xf32, #tpu.memory_space<vmem>>, vector<1x1x256xf32>
    %1029 = vector.shape_cast %1028 : vector<1x1x256xf32> to vector<1x256xf32>
    %1030 = vector.shape_cast %1027 : vector<1x256xf32> to vector<1x1x256xf32>
    tpu.vector_store %arg14[%c0_161, %c0_162, %c0_163], %1030 {strides = array<i32>} : memref<1x4x256xf32, #tpu.memory_space<vmem>>, vector<1x1x256xf32>,
    %c1_164 = arith.constant 1 : index
    %1031 = memref.load %arg12[%c1_164] : memref<8xf32, #tpu.memory_space<smem>>
    %1032 = vector.broadcast %1031 : f32 to vector<1x256xf32>
    %1033 = arith.mulf %1012, %1032 : vector<1x256xf32>
    %c5_165 = arith.constant 5 : index
    %1034 = memref.load %arg12[%c5_165] : memref<8xf32, #tpu.memory_space<smem>>
    %1035 = vector.broadcast %1034 : f32 to vector<1x256xf32>
    %1036 = arith.mulf %1015, %1035 : vector<1x256xf32>
    %1037 = arith.addf %1033, %1036 : vector<1x256xf32>
    %c1_166 = arith.constant 1 : index
    %1038 = memref.load %arg13[%c1_166] : memref<4xf32, #tpu.memory_space<smem>>
    %1039 = vector.broadcast %1038 : f32 to vector<1x256xf32>
    %1040 = arith.addf %1037, %1039 : vector<1x256xf32>
    %1041 = vector.extract_strided_slice %1 {offsets = [1, 0], sizes = [1, 256], strides = [1, 1]} : vector<4x256xf32> to vector<1x256xf32>
    %1042 = arith.mulf %1040, %1041 : vector<1x256xf32>
    %c0_167 = arith.constant 0 : index
    %c1_168 = arith.constant 1 : index
    %c0_169 = arith.constant 0 : index
    %1043 = vector.load %arg14[%c0_167, %c1_168, %c0_169] : memref<1x4x256xf32, #tpu.memory_space<vmem>>, vector<1x1x256xf32>
    %1044 = vector.shape_cast %1043 : vector<1x1x256xf32> to vector<1x256xf32>
    %1045 = vector.shape_cast %1042 : vector<1x256xf32> to vector<1x1x256xf32>
    tpu.vector_store %arg14[%c0_167, %c1_168, %c0_169], %1045 {strides = array<i32>} : memref<1x4x256xf32, #tpu.memory_space<vmem>>, vector<1x1x256xf32>,
    %c2_170 = arith.constant 2 : index
    %1046 = memref.load %arg12[%c2_170] : memref<8xf32, #tpu.memory_space<smem>>
    %1047 = vector.broadcast %1046 : f32 to vector<1x256xf32>
    %1048 = arith.mulf %1012, %1047 : vector<1x256xf32>
    %c6_171 = arith.constant 6 : index
    %1049 = memref.load %arg12[%c6_171] : memref<8xf32, #tpu.memory_space<smem>>
    %1050 = vector.broadcast %1049 : f32 to vector<1x256xf32>
    %1051 = arith.mulf %1015, %1050 : vector<1x256xf32>
    %1052 = arith.addf %1048, %1051 : vector<1x256xf32>
    %c2_172 = arith.constant 2 : index
    %1053 = memref.load %arg13[%c2_172] : memref<4xf32, #tpu.memory_space<smem>>
    %1054 = vector.broadcast %1053 : f32 to vector<1x256xf32>
    %1055 = arith.addf %1052, %1054 : vector<1x256xf32>
    %1056 = vector.extract_strided_slice %1 {offsets = [2, 0], sizes = [1, 256], strides = [1, 1]} : vector<4x256xf32> to vector<1x256xf32>
    %1057 = arith.mulf %1055, %1056 : vector<1x256xf32>
    %c0_173 = arith.constant 0 : index
    %c2_174 = arith.constant 2 : index
    %c0_175 = arith.constant 0 : index
    %1058 = vector.load %arg14[%c0_173, %c2_174, %c0_175] : memref<1x4x256xf32, #tpu.memory_space<vmem>>, vector<1x1x256xf32>
    %1059 = vector.shape_cast %1058 : vector<1x1x256xf32> to vector<1x256xf32>
    %1060 = vector.shape_cast %1057 : vector<1x256xf32> to vector<1x1x256xf32>
    tpu.vector_store %arg14[%c0_173, %c2_174, %c0_175], %1060 {strides = array<i32>} : memref<1x4x256xf32, #tpu.memory_space<vmem>>, vector<1x1x256xf32>,
    %c3_176 = arith.constant 3 : index
    %1061 = memref.load %arg12[%c3_176] : memref<8xf32, #tpu.memory_space<smem>>
    %1062 = vector.broadcast %1061 : f32 to vector<1x256xf32>
    %1063 = arith.mulf %1012, %1062 : vector<1x256xf32>
    %c7_177 = arith.constant 7 : index
    %1064 = memref.load %arg12[%c7_177] : memref<8xf32, #tpu.memory_space<smem>>
    %1065 = vector.broadcast %1064 : f32 to vector<1x256xf32>
    %1066 = arith.mulf %1015, %1065 : vector<1x256xf32>
    %1067 = arith.addf %1063, %1066 : vector<1x256xf32>
    %c3_178 = arith.constant 3 : index
    %1068 = memref.load %arg13[%c3_178] : memref<4xf32, #tpu.memory_space<smem>>
    %1069 = vector.broadcast %1068 : f32 to vector<1x256xf32>
    %1070 = arith.addf %1067, %1069 : vector<1x256xf32>
    %1071 = vector.extract_strided_slice %1 {offsets = [3, 0], sizes = [1, 256], strides = [1, 1]} : vector<4x256xf32> to vector<1x256xf32>
    %1072 = arith.mulf %1070, %1071 : vector<1x256xf32>
    %c0_179 = arith.constant 0 : index
    %c3_180 = arith.constant 3 : index
    %c0_181 = arith.constant 0 : index
    %1073 = vector.load %arg14[%c0_179, %c3_180, %c0_181] : memref<1x4x256xf32, #tpu.memory_space<vmem>>, vector<1x1x256xf32>
    %1074 = vector.shape_cast %1073 : vector<1x1x256xf32> to vector<1x256xf32>
    %1075 = vector.shape_cast %1072 : vector<1x256xf32> to vector<1x1x256xf32>
    tpu.vector_store %arg14[%c0_179, %c3_180, %c0_181], %1075 {strides = array<i32>} : memref<1x4x256xf32, #tpu.memory_space<vmem>>, vector<1x1x256xf32>,
    return
  }
  func.func @transform_0(%arg0: i32) -> (i32, i32, i32) {
    %c0_i32 = arith.constant 0 : i32
    %c0_i32_0 = arith.constant 0 : i32
    %c0_i32_1 = arith.constant 0 : i32
    return %arg0, %c0_i32, %c0_i32_0 : i32, i32, i32
  }
  func.func @transform_1(%arg0: i32) -> (i32, i32) {
    %c0_i32 = arith.constant 0 : i32
    %c0_i32_0 = arith.constant 0 : i32
    %c0_i32_1 = arith.constant 0 : i32
    return %c0_i32, %c0_i32_0 : i32, i32
  }
  func.func @transform_2(%arg0: i32) -> (i32, i32) {
    %c0_i32 = arith.constant 0 : i32
    %c0_i32_0 = arith.constant 0 : i32
    %c0_i32_1 = arith.constant 0 : i32
    return %c0_i32, %c0_i32_0 : i32, i32
  }
  func.func @transform_3(%arg0: i32) -> (i32, i32) {
    %c0_i32 = arith.constant 0 : i32
    %c0_i32_0 = arith.constant 0 : i32
    %c0_i32_1 = arith.constant 0 : i32
    return %c0_i32, %c0_i32_0 : i32, i32
  }
  func.func @transform_4(%arg0: i32) -> (i32, i32) {
    %c0_i32 = arith.constant 0 : i32
    %c0_i32_0 = arith.constant 0 : i32
    %c0_i32_1 = arith.constant 0 : i32
    return %c0_i32, %c0_i32_0 : i32, i32
  }
  func.func @transform_5(%arg0: i32) -> (i32, i32) {
    %c0_i32 = arith.constant 0 : i32
    %c0_i32_0 = arith.constant 0 : i32
    %c0_i32_1 = arith.constant 0 : i32
    return %c0_i32, %c0_i32_0 : i32, i32
  }
  func.func @transform_6(%arg0: i32) -> i32 {
    %c0_i32 = arith.constant 0 : i32
    %c0_i32_0 = arith.constant 0 : i32
    return %c0_i32 : i32
  }
  func.func @transform_7(%arg0: i32) -> i32 {
    %c0_i32 = arith.constant 0 : i32
    %c0_i32_0 = arith.constant 0 : i32
    return %c0_i32 : i32
  }
  func.func @transform_8(%arg0: i32) -> i32 {
    %c0_i32 = arith.constant 0 : i32
    %c0_i32_0 = arith.constant 0 : i32
    return %c0_i32 : i32
  }
  func.func @transform_9(%arg0: i32) -> i32 {
    %c0_i32 = arith.constant 0 : i32
    %c0_i32_0 = arith.constant 0 : i32
    return %c0_i32 : i32
  }
  func.func @transform_10(%arg0: i32) -> i32 {
    %c0_i32 = arith.constant 0 : i32
    %c0_i32_0 = arith.constant 0 : i32
    return %c0_i32 : i32
  }
  func.func @transform_11(%arg0: i32) -> i32 {
    %c0_i32 = arith.constant 0 : i32
    %c0_i32_0 = arith.constant 0 : i32
    return %c0_i32 : i32
  }
  func.func @transform_12(%arg0: i32) -> i32 {
    %c0_i32 = arith.constant 0 : i32
    %c0_i32_0 = arith.constant 0 : i32
    return %c0_i32 : i32
  }
  func.func @transform_13(%arg0: i32) -> (i32, i32, i32) {
    %c0_i32 = arith.constant 0 : i32
    %c0_i32_0 = arith.constant 0 : i32
    %c0_i32_1 = arith.constant 0 : i32
    return %arg0, %c0_i32, %c0_i32_0 : i32, i32, i32
  }
}

</mosaic_0001>

<llo_original>
// kernel: spatial_attention_nchw.1
$region0: #{spatial_attention_nchw.1}
  #allocation0 [shape = 'u32[]', space=smem, size = 0x4, offset = 0x4, fixed_abs, tag = 'smem constant byte address 0x4 - core index']
  #allocation1 [shape = 'u32[144,128]{1,0:T(1,128)}', space=vmem, size = 0x12000, scoped, tag = 'internal scratch']
  #allocation2 [shape = 'f32[2,256]{1,0:T(2,128)}', space=vmem, size = 0x800, scoped, tag = 'scratch operand']
  %s0 = inlined_call_operand.vmem [shape: f32[2,4,256], index: 0, kind: input, shape index: {}]
  %s1 = inlined_call_operand.vmem [shape: f32[4,9], index: 1, kind: input, shape index: {}]
  %s2 = inlined_call_operand.vmem [shape: f32[4,1], index: 2, kind: input, shape index: {}]
  %s3 = inlined_call_operand.vmem [shape: f32[4,25], index: 3, kind: input, shape index: {}]
  %s4 = inlined_call_operand.vmem [shape: f32[4,1], index: 4, kind: input, shape index: {}]
  %s5 = inlined_call_operand.vmem [shape: f32[2,98], index: 5, kind: input, shape index: {}]
  %s6 = inlined_call_operand.vmem [shape: f32[8], index: 6, kind: input, shape index: {}]
  %s7 = inlined_call_operand.vmem [shape: f32[2], index: 7, kind: input, shape index: {}]
  %s8 = inlined_call_operand.vmem [shape: f32[8], index: 8, kind: input, shape index: {}]
  %s9 = inlined_call_operand.vmem [shape: f32[2], index: 9, kind: input, shape index: {}]
  %s10 = inlined_call_operand.vmem [shape: f32[2], index: 10, kind: input, shape index: {}]
  %s11 = inlined_call_operand.vmem [shape: f32[8], index: 11, kind: input, shape index: {}]
  %s12 = inlined_call_operand.vmem [shape: f32[4], index: 12, kind: input, shape index: {}]
  %s13 = inlined_call_operand.vmem [shape: f32[2,4,256], index: 13, kind: output, shape index: {}]
  %s14 = sld [smem:[#allocation0]]
  $region113: #{spatial_attention_nchw.1} parent=0
    _
  %s16 = ssub.s32 1, %s14
  %s17 = scalar_select 0, %s16, %s14
  $region1: #{spatial_attention_nchw.1} parent=0
    #allocation3 [shape = 'u8[512]{0}', space=smem, size = 0x200, scoped, tag = 'input window, operand 6, single buffered']
    #allocation4 [shape = 's32[2]{0}', space=sflag, size = 0x8, scoped, tag = 'scoped memory for spatial_attention_nchw.1']
    #allocation5 [shape = 'u8[512]{0}', space=smem, size = 0x200, scoped, tag = 'input window, operand 7, single buffered']
    #allocation6 [shape = 's32[1]{0}', space=sflag, size = 0x4, scoped, tag = 'scoped memory for spatial_attention_nchw.1']
    #allocation7 [shape = 'u8[512]{0}', space=smem, size = 0x200, scoped, tag = 'input window, operand 8, single buffered']
    #allocation8 [shape = 'u8[512]{0}', space=smem, size = 0x200, scoped, tag = 'input window, operand 9, single buffered']
    #allocation9 [shape = 's32[1]{0}', space=sflag, size = 0x4, scoped, tag = 'scoped memory for spatial_attention_nchw.1']
    #allocation10 [shape = 'u8[512]{0}', space=smem, size = 0x200, scoped, tag = 'input window, operand 10, single buffered']
    #allocation11 [shape = 'u8[512]{0}', space=smem, size = 0x200, scoped, tag = 'input window, operand 11, single buffered']
    #allocation12 [shape = 's32[1]{0}', space=sflag, size = 0x4, scoped, tag = 'scoped memory for spatial_attention_nchw.1']
    #allocation13 [shape = 'u8[512]{0}', space=smem, size = 0x200, scoped, tag = 'input window, operand 12, single buffered']
    %18 = vsyncpa [#allocation4], 0
    %19 = vsyncpa [#allocation6], 0
    %20 = vsyncpa [#allocation9], 0
    %21 = vsyncpa [#allocation12], 0
    loop: start=0, step=1, limit=4
    $region2: #{spatial_attention_nchw.1} parent=1 // loop_pre_header
      _
    $region3: #{spatial_attention_nchw.1} parent=1 // loop_header
      %s23 = sphi 0, %s27
      %p24 = scmp.ge.s32.totalorder %s23, 4
      %s33 = sphi 0, %s35
      %s36 = sphi 0, %s33
      %s37 = sphi 0, %s36
      %s53 = sphi 0, %s37
      %s57 = sphi 0, %s57
      %s59 = sphi 0, %s57
      %s60 = sphi 0, %s59
      %s74 = sphi 0, %s60
      %s78 = sphi 0, %s78
      %s80 = sphi 0, %s78
      %s81 = sphi 0, %s80
      %s95 = sphi 0, %s81
      %s99 = sphi 0, %s99
      %s101 = sphi 0, %s99
      %s102 = sphi 0, %s101
      %s116 = sphi 0, %s102
      %s120 = sphi 0, %s120
      %s122 = sphi 0, %s120
      %s123 = sphi 0, %s122
      %s137 = sphi 0, %s123
      %s141 = sphi 0, %s141
      %s143 = sphi 0, %s141
      %s144 = sphi 0, %s143
      %s158 = sphi 0, %s144
      %s162 = sphi 0, %s162
      %s164 = sphi 0, %s162
      %s165 = sphi 0, %s164
      %s179 = sphi 0, %s165
      %s183 = sphi 0, %s183
      %s185 = sphi 0, %s183
      %s186 = sphi 0, %s185
      %s200 = sphi 0, %s186
      %s204 = sphi 0, %s204
      %s206 = sphi 0, %s204
      %s207 = sphi 0, %s206
      %s221 = sphi 0, %s207
      %s225 = sphi 0, %s225
      %s227 = sphi 0, %s225
      %s228 = sphi 0, %s227
      %s242 = sphi 0, %s228
      %s246 = sphi 0, %s246
      %s248 = sphi 0, %s246
      %s249 = sphi 0, %s248
      %s263 = sphi 0, %s249
      %s267 = sphi 0, %s267
      %s269 = sphi 0, %s267
      %s270 = sphi 0, %s269
      %s284 = sphi 0, %s270
      %s288 = sphi 0, %s288
      %s290 = sphi 0, %s288
      %s291 = sphi 0, %s290
      %s305 = sphi 0, %s291
      %s311 = sphi 0, %s313
      %s314 = sphi 0, %s311
      %s315 = sphi 0, %s314
      %s331 = sphi 0, %s315
    $region4: #{spatial_attention_nchw.1} parent=1 // loop_header_branch
      %26 = sbr.rel (%p24) target = $region8
    $region5: #{spatial_attention_nchw.1} parent=1 // loop_body
      %s28 = ssub.s32 %s23, 1
      %s29 = ssub.s32 %s23, 2
      %s30 = sadd.s32 %s23, 1
      %s31 = ssub.s32 %s23, %s30
      %p32 = scmp.eq.s32.totalorder %s31, 0
      %s34 = sadd.s32 %s33, 1
      %s35 = scalar_select %p32, %s33, %s34
      %p38 = pneg %p32
      %p39 = scmp.eq.s32.totalorder %s23, 1
      %p40 = por %p38, %p39
      %p41 = scmp.ne.s32.totalorder %s33, %s36
      %p42 = scmp.eq.s32.totalorder %s23, 0
      %p43 = por %p41, %p42
      %p44 = scmp.ne.s32.totalorder %s33, %s36
      %p45 = scmp.eq.s32.totalorder %s28, 1
      %p46 = por %p44, %p45
      %p47 = scmp.ne.s32.totalorder %s36, %s37
      %p48 = scmp.eq.s32.totalorder %s28, 0
      %p49 = por %p47, %p48
      %p50 = scmp.ne.s32.totalorder %s36, %s37
      %p51 = scmp.eq.s32.totalorder %s29, 1
      %p52 = por %p50, %p51
      %p54 = scmp.ne.s32.totalorder %s37, %s53
      %p55 = scmp.eq.s32.totalorder %s29, 0
      %p56 = por %p54, %p55
      %s58 = sadd.s32 %s57, 1
      %p61 = scmp.eq.s32.totalorder %s23, 1
      %p62 = scmp.ne.s32.totalorder %s57, %s59
      %p63 = scmp.eq.s32.totalorder %s23, 0
      %p64 = por %p62, %p63
      %p65 = scmp.ne.s32.totalorder %s57, %s59
      %p66 = scmp.eq.s32.totalorder %s28, 1
      %p67 = por %p65, %p66
      %p68 = scmp.ne.s32.totalorder %s59, %s60
      %p69 = scmp.eq.s32.totalorder %s28, 0
      %p70 = por %p68, %p69
      %p71 = scmp.ne.s32.totalorder %s59, %s60
      %p72 = scmp.eq.s32.totalorder %s29, 1
      %p73 = por %p71, %p72
      %p75 = scmp.ne.s32.totalorder %s60, %s74
      %p76 = scmp.eq.s32.totalorder %s29, 0
      %p77 = por %p75, %p76
      %s79 = sadd.s32 %s78, 1
      %p82 = scmp.eq.s32.totalorder %s23, 1
      %p83 = scmp.ne.s32.totalorder %s78, %s80
      %p84 = scmp.eq.s32.totalorder %s23, 0
      %p85 = por %p83, %p84
      %p86 = scmp.ne.s32.totalorder %s78, %s80
      %p87 = scmp.eq.s32.totalorder %s28, 1
      %p88 = por %p86, %p87
      %p89 = scmp.ne.s32.totalorder %s80, %s81
      %p90 = scmp.eq.s32.totalorder %s28, 0
      %p91 = por %p89, %p90
      %p92 = scmp.ne.s32.totalorder %s80, %s81
      %p93 = scmp.eq.s32.totalorder %s29, 1
      %p94 = por %p92, %p93
      %p96 = scmp.ne.s32.totalorder %s81, %s95
      %p97 = scmp.eq.s32.totalorder %s29, 0
      %p98 = por %p96, %p97
      %s100 = sadd.s32 %s99, 1
      %p103 = scmp.eq.s32.totalorder %s23, 1
      %p104 = scmp.ne.s32.totalorder %s99, %s101
      %p105 = scmp.eq.s32.totalorder %s23, 0
      %p106 = por %p104, %p105
      %p107 = scmp.ne.s32.totalorder %s99, %s101
      %p108 = scmp.eq.s32.totalorder %s28, 1
      %p109 = por %p107, %p108
      %p110 = scmp.ne.s32.totalorder %s101, %s102
      %p111 = scmp.eq.s32.totalorder %s28, 0
      %p112 = por %p110, %p111
      %p113 = scmp.ne.s32.totalorder %s101, %s102
      %p114 = scmp.eq.s32.totalorder %s29, 1
      %p115 = por %p113, %p114
      %p117 = scmp.ne.s32.totalorder %s102, %s116
      %p118 = scmp.eq.s32.totalorder %s29, 0
      %p119 = por %p117, %p118
      %s121 = sadd.s32 %s120, 1
      %p124 = scmp.eq.s32.totalorder %s23, 1
      %p125 = scmp.ne.s32.totalorder %s120, %s122
      %p126 = scmp.eq.s32.totalorder %s23, 0
      %p127 = por %p125, %p126
      %p128 = scmp.ne.s32.totalorder %s120, %s122
      %p129 = scmp.eq.s32.totalorder %s28, 1
      %p130 = por %p128, %p129
      %p131 = scmp.ne.s32.totalorder %s122, %s123
      %p132 = scmp.eq.s32.totalorder %s28, 0
      %p133 = por %p131, %p132
      %p134 = scmp.ne.s32.totalorder %s122, %s123
      %p135 = scmp.eq.s32.totalorder %s29, 1
      %p136 = por %p134, %p135
      %p138 = scmp.ne.s32.totalorder %s123, %s137
      %p139 = scmp.eq.s32.totalorder %s29, 0
      %p140 = por %p138, %p139
      %s142 = sadd.s32 %s141, 1
      %p145 = scmp.eq.s32.totalorder %s23, 1
      %p146 = scmp.ne.s32.totalorder %s141, %s143
      %p147 = scmp.eq.s32.totalorder %s23, 0
      %p148 = por %p146, %p147
      %p149 = scmp.ne.s32.totalorder %s141, %s143
      %p150 = scmp.eq.s32.totalorder %s28, 1
      %p151 = por %p149, %p150
      %p152 = scmp.ne.s32.totalorder %s143, %s144
      %p153 = scmp.eq.s32.totalorder %s28, 0
      %p154 = por %p152, %p153
      %p155 = scmp.ne.s32.totalorder %s143, %s144
      %p156 = scmp.eq.s32.totalorder %s29, 1
      %p157 = por %p155, %p156
      %p159 = scmp.ne.s32.totalorder %s144, %s158
      %p160 = scmp.eq.s32.totalorder %s29, 0
      %p161 = por %p159, %p160
      %s163 = sadd.s32 %s162, 1
      %p166 = scmp.eq.s32.totalorder %s23, 1
      %p167 = scmp.ne.s32.totalorder %s162, %s164
      %p168 = scmp.eq.s32.totalorder %s23, 0
      %p169 = por %p167, %p168
      %p170 = scmp.ne.s32.totalorder %s162, %s164
      %p171 = scmp.eq.s32.totalorder %s28, 1
      %p172 = por %p170, %p171
      %p173 = scmp.ne.s32.totalorder %s164, %s165
      %p174 = scmp.eq.s32.totalorder %s28, 0
      %p175 = por %p173, %p174
      %p176 = scmp.ne.s32.totalorder %s164, %s165
      %p177 = scmp.eq.s32.totalorder %s29, 1
      %p178 = por %p176, %p177
      %p180 = scmp.ne.s32.totalorder %s165, %s179
      %p181 = scmp.eq.s32.totalorder %s29, 0
      %p182 = por %p180, %p181
      %s184 = sadd.s32 %s183, 1
      %p187 = scmp.eq.s32.totalorder %s23, 1
      %p188 = scmp.ne.s32.totalorder %s183, %s185
      %p189 = scmp.eq.s32.totalorder %s23, 0
      %p190 = por %p188, %p189
      %p191 = scmp.ne.s32.totalorder %s183, %s185
      %p192 = scmp.eq.s32.totalorder %s28, 1
      %p193 = por %p191, %p192
      %p194 = scmp.ne.s32.totalorder %s185, %s186
      %p195 = scmp.eq.s32.totalorder %s28, 0
      %p196 = por %p194, %p195
      %p197 = scmp.ne.s32.totalorder %s185, %s186
      %p198 = scmp.eq.s32.totalorder %s29, 1
      %p199 = por %p197, %p198
      %p201 = scmp.ne.s32.totalorder %s186, %s200
      %p202 = scmp.eq.s32.totalorder %s29, 0
      %p203 = por %p201, %p202
      %s205 = sadd.s32 %s204, 1
      %p208 = scmp.eq.s32.totalorder %s23, 1
      %p209 = scmp.ne.s32.totalorder %s204, %s206
      %p210 = scmp.eq.s32.totalorder %s23, 0
      %p211 = por %p209, %p210
      %p212 = scmp.ne.s32.totalorder %s204, %s206
      %p213 = scmp.eq.s32.totalorder %s28, 1
      %p214 = por %p212, %p213
      %p215 = scmp.ne.s32.totalorder %s206, %s207
      %p216 = scmp.eq.s32.totalorder %s28, 0
      %p217 = por %p215, %p216
      %p218 = scmp.ne.s32.totalorder %s206, %s207
      %p219 = scmp.eq.s32.totalorder %s29, 1
      %p220 = por %p218, %p219
      %p222 = scmp.ne.s32.totalorder %s207, %s221
      %p223 = scmp.eq.s32.totalorder %s29, 0
      %p224 = por %p222, %p223
      %s226 = sadd.s32 %s225, 1
      %p229 = scmp.eq.s32.totalorder %s23, 1
      %p230 = scmp.ne.s32.totalorder %s225, %s227
      %p231 = scmp.eq.s32.totalorder %s23, 0
      %p232 = por %p230, %p231
      %p233 = scmp.ne.s32.totalorder %s225, %s227
      %p234 = scmp.eq.s32.totalorder %s28, 1
      %p235 = por %p233, %p234
      %p236 = scmp.ne.s32.totalorder %s227, %s228
      %p237 = scmp.eq.s32.totalorder %s28, 0
      %p238 = por %p236, %p237
      %p239 = scmp.ne.s32.totalorder %s227, %s228
      %p240 = scmp.eq.s32.totalorder %s29, 1
      %p241 = por %p239, %p240
      %p243 = scmp.ne.s32.totalorder %s228, %s242
      %p244 = scmp.eq.s32.totalorder %s29, 0
      %p245 = por %p243, %p244
      %s247 = sadd.s32 %s246, 1
      %p250 = scmp.eq.s32.totalorder %s23, 1
      %p251 = scmp.ne.s32.totalorder %s246, %s248
      %p252 = scmp.eq.s32.totalorder %s23, 0
      %p253 = por %p251, %p252
      %p254 = scmp.ne.s32.totalorder %s246, %s248
      %p255 = scmp.eq.s32.totalorder %s28, 1
      %p256 = por %p254, %p255
      %p257 = scmp.ne.s32.totalorder %s248, %s249
      %p258 = scmp.eq.s32.totalorder %s28, 0
      %p259 = por %p257, %p258
      %p260 = scmp.ne.s32.totalorder %s248, %s249
      %p261 = scmp.eq.s32.totalorder %s29, 1
      %p262 = por %p260, %p261
      %p264 = scmp.ne.s32.totalorder %s249, %s263
      %p265 = scmp.eq.s32.totalorder %s29, 0
      %p266 = por %p264, %p265
      %s268 = sadd.s32 %s267, 1
      %p271 = scmp.eq.s32.totalorder %s23, 1
      %p272 = scmp.ne.s32.totalorder %s267, %s269
      %p273 = scmp.eq.s32.totalorder %s23, 0
      %p274 = por %p272, %p273
      %p275 = scmp.ne.s32.totalorder %s267, %s269
      %p276 = scmp.eq.s32.totalorder %s28, 1
      %p277 = por %p275, %p276
      %p278 = scmp.ne.s32.totalorder %s269, %s270
      %p279 = scmp.eq.s32.totalorder %s28, 0
      %p280 = por %p278, %p279
      %p281 = scmp.ne.s32.totalorder %s269, %s270
      %p282 = scmp.eq.s32.totalorder %s29, 1
      %p283 = por %p281, %p282
      %p285 = scmp.ne.s32.totalorder %s270, %s284
      %p286 = scmp.eq.s32.totalorder %s29, 0
      %p287 = por %p285, %p286
      %s289 = sadd.s32 %s288, 1
      %p292 = scmp.eq.s32.totalorder %s23, 1
      %p293 = scmp.ne.s32.totalorder %s288, %s290
      %p294 = scmp.eq.s32.totalorder %s23, 0
      %p295 = por %p293, %p294
      %p296 = scmp.ne.s32.totalorder %s288, %s290
      %p297 = scmp.eq.s32.totalorder %s28, 1
      %p298 = por %p296, %p297
      %p299 = scmp.ne.s32.totalorder %s290, %s291
      %p300 = scmp.eq.s32.totalorder %s28, 0
      %p301 = por %p299, %p300
      %p302 = scmp.ne.s32.totalorder %s290, %s291
      %p303 = scmp.eq.s32.totalorder %s29, 1
      %p304 = por %p302, %p303
      %p306 = scmp.ne.s32.totalorder %s291, %s305
      %p307 = scmp.eq.s32.totalorder %s29, 0
      %p308 = por %p306, %p307
      %s309 = ssub.s32 %s23, %s30
      %p310 = scmp.eq.s32.totalorder %s309, 0
      %s312 = sadd.s32 %s311, 1
      %s313 = scalar_select %p310, %s311, %s312
      %p316 = pneg %p310
      %p317 = scmp.eq.s32.totalorder %s23, 1
      %p318 = por %p316, %p317
      %p319 = scmp.ne.s32.totalorder %s311, %s314
      %p320 = scmp.eq.s32.totalorder %s23, 0
      %p321 = por %p319, %p320
      %p322 = scmp.ne.s32.totalorder %s311, %s314
      %p323 = scmp.eq.s32.totalorder %s28, 1
      %p324 = por %p322, %p323
      %p325 = scmp.ne.s32.totalorder %s314, %s315
      %p326 = scmp.eq.s32.totalorder %s28, 0
      %p327 = por %p325, %p326
      %p328 = scmp.ne.s32.totalorder %s314, %s315
      %p329 = scmp.eq.s32.totalorder %s29, 1
      %p330 = por %p328, %p329
      %p332 = scmp.ne.s32.totalorder %s315, %s331
      %p333 = scmp.eq.s32.totalorder %s29, 0
      %p334 = por %p332, %p333
      %p335 = scmp.le.s32.totalorder 1, %s23
      %p336 = scmp.lt.s32.totalorder %s23, 3
      %p337 = pnand %p335, %p336
      %p338 = pneg %p337
      // Predicated region
      $region9: #{spatial_attention_nchw.1} parent=5 // pred_check
        _
      $region10: #{spatial_attention_nchw.1} parent=5 // pred_check_branch
        %340 = sbr.rel (%p337) target = $region12
      $region11: #{spatial_attention_nchw.1} parent=5 // pred_region
        %s341 = ssub.s32 %s23, 1
        // Predicated region
        $region13: #{spatial_attention_nchw.1} parent=11 // pred_check
          %p342 = pneg %p70
        $region14: #{spatial_attention_nchw.1} parent=11 // pred_check_branch
          %344 = sbr.rel (%p342) target = $region16
        $region15: #{spatial_attention_nchw.1} parent=11 // pred_region
          _
        $region16: #{spatial_attention_nchw.1} parent=11 // pred_fallthru
          _
        // Predicated region
        $region17: #{spatial_attention_nchw.1} parent=11 // pred_check
          %p345 = pneg %p91
        $region18: #{spatial_attention_nchw.1} parent=11 // pred_check_branch
          %347 = sbr.rel (%p345) target = $region20
        $region19: #{spatial_attention_nchw.1} parent=11 // pred_region
          _
        $region20: #{spatial_attention_nchw.1} parent=11 // pred_fallthru
          _
        // Predicated region
        $region21: #{spatial_attention_nchw.1} parent=11 // pred_check
          %p348 = pneg %p112
        $region22: #{spatial_attention_nchw.1} parent=11 // pred_check_branch
          %350 = sbr.rel (%p348) target = $region24
        $region23: #{spatial_attention_nchw.1} parent=11 // pred_region
          _
        $region24: #{spatial_attention_nchw.1} parent=11 // pred_fallthru
          _
        // Predicated region
        $region25: #{spatial_attention_nchw.1} parent=11 // pred_check
          %p351 = pneg %p133
        $region26: #{spatial_attention_nchw.1} parent=11 // pred_check_branch
          %353 = sbr.rel (%p351) target = $region28
        $region27: #{spatial_attention_nchw.1} parent=11 // pred_region
          _
        $region28: #{spatial_attention_nchw.1} parent=11 // pred_fallthru
          _
        // Predicated region
        $region29: #{spatial_attention_nchw.1} parent=11 // pred_check
          %p354 = pneg %p154
        $region30: #{spatial_attention_nchw.1} parent=11 // pred_check_branch
          %356 = sbr.rel (%p354) target = $region32
        $region31: #{spatial_attention_nchw.1} parent=11 // pred_region
          _
        $region32: #{spatial_attention_nchw.1} parent=11 // pred_fallthru
          _
        // Predicated region
        $region33: #{spatial_attention_nchw.1} parent=11 // pred_check
          %p357 = pneg %p175
        $region34: #{spatial_attention_nchw.1} parent=11 // pred_check_branch
          %359 = sbr.rel (%p357) target = $region36
        $region35: #{spatial_attention_nchw.1} parent=11 // pred_region
          %s361 = ssub.s32 16, 16
          %362 = vsyncadd [#allocation4], %s361
          %s364 = sshll.u32 %s6, 4
          %s365 = int_to_ptr.vmem [resolvable:$true] %s364
          %367 = dma.vmem_to_smem %s365, 16, [#allocation3], [#allocation4]
        $region36: #{spatial_attention_nchw.1} parent=11 // pred_fallthru
          _
        // Predicated region
        $region37: #{spatial_attention_nchw.1} parent=11 // pred_check
          %p368 = pneg %p196
        $region38: #{spatial_attention_nchw.1} parent=11 // pred_check_branch
          %370 = sbr.rel (%p368) target = $region40
        $region39: #{spatial_attention_nchw.1} parent=11 // pred_region
          %s372 = ssub.s32 16, 16
          %373 = vsyncadd [#allocation6], %s372
          %s375 = sshll.u32 %s7, 4
          %s376 = int_to_ptr.vmem [resolvable:$true] %s375
          %378 = dma.vmem_to_smem %s376, 16, [#allocation5], [#allocation6]
        $region40: #{spatial_attention_nchw.1} parent=11 // pred_fallthru
          _
        // Predicated region
        $region41: #{spatial_attention_nchw.1} parent=11 // pred_check
          %p379 = pneg %p217
        $region42: #{spatial_attention_nchw.1} parent=11 // pred_check_branch
          %381 = sbr.rel (%p379) target = $region44
        $region43: #{spatial_attention_nchw.1} parent=11 // pred_region
          %s383 = ssub.s32 16, 16
          %384 = vsyncadd [#allocation6], %s383
          %s386 = sshll.u32 %s8, 4
          %s387 = int_to_ptr.vmem [resolvable:$true] %s386
          %389 = dma.vmem_to_smem %s387, 16, [#allocation7], [#allocation6]
        $region44: #{spatial_attention_nchw.1} parent=11 // pred_fallthru
          _
        // Predicated region
        $region45: #{spatial_attention_nchw.1} parent=11 // pred_check
          %p390 = pneg %p238
        $region46: #{spatial_attention_nchw.1} parent=11 // pred_check_branch
          %392 = sbr.rel (%p390) target = $region48
        $region47: #{spatial_attention_nchw.1} parent=11 // pred_region
          %s394 = ssub.s32 16, 16
          %395 = vsyncadd [#allocation9], %s394
          %s397 = sshll.u32 %s9, 4
          %s398 = int_to_ptr.vmem [resolvable:$true] %s397
          %400 = dma.vmem_to_smem %s398, 16, [#allocation8], [#allocation9]
        $region48: #{spatial_attention_nchw.1} parent=11 // pred_fallthru
          _
        // Predicated region
        $region49: #{spatial_attention_nchw.1} parent=11 // pred_check
          %p401 = pneg %p259
        $region50: #{spatial_attention_nchw.1} parent=11 // pred_check_branch
          %403 = sbr.rel (%p401) target = $region52
        $region51: #{spatial_attention_nchw.1} parent=11 // pred_region
          %s405 = ssub.s32 16, 16
          %406 = vsyncadd [#allocation9], %s405
          %s408 = sshll.u32 %s10, 4
          %s409 = int_to_ptr.vmem [resolvable:$true] %s408
          %411 = dma.vmem_to_smem %s409, 16, [#allocation10], [#allocation9]
        $region52: #{spatial_attention_nchw.1} parent=11 // pred_fallthru
          _
        // Predicated region
        $region53: #{spatial_attention_nchw.1} parent=11 // pred_check
          %p412 = pneg %p280
        $region54: #{spatial_attention_nchw.1} parent=11 // pred_check_branch
          %414 = sbr.rel (%p412) target = $region56
        $region55: #{spatial_attention_nchw.1} parent=11 // pred_region
          %s416 = ssub.s32 16, 16
          %417 = vsyncadd [#allocation12], %s416
          %s419 = sshll.u32 %s11, 4
          %s420 = int_to_ptr.vmem [resolvable:$true] %s419
          %422 = dma.vmem_to_smem %s420, 16, [#allocation11], [#allocation12]
        $region56: #{spatial_attention_nchw.1} parent=11 // pred_fallthru
          _
        // Predicated region
        $region57: #{spatial_attention_nchw.1} parent=11 // pred_check
          %p423 = pneg %p301
        $region58: #{spatial_attention_nchw.1} parent=11 // pred_check_branch
          %425 = sbr.rel (%p423) target = $region60
        $region59: #{spatial_attention_nchw.1} parent=11 // pred_region
          %s427 = ssub.s32 16, 16
          %428 = vsyncadd [#allocation12], %s427
          %s430 = sshll.u32 %s12, 4
          %s431 = int_to_ptr.vmem [resolvable:$true] %s430
          %433 = dma.vmem_to_smem %s431, 16, [#allocation13], [#allocation12]
        $region60: #{spatial_attention_nchw.1} parent=11 // pred_fallthru
          _
      $region12: #{spatial_attention_nchw.1} parent=5 // pred_fallthru
        _
      %p434 = scmp.lt.s32.totalorder %s23, 2
      // Predicated region
      $region61: #{spatial_attention_nchw.1} parent=5 // pred_check
        %p435 = pneg %p434
      $region62: #{spatial_attention_nchw.1} parent=5 // pred_check_branch
        %437 = sbr.rel (%p435) target = $region64
      $region63: #{spatial_attention_nchw.1} parent=5 // pred_region
        // Predicated region
        $region65: #{spatial_attention_nchw.1} parent=63 // pred_check
          %p438 = pneg %p43
        $region66: #{spatial_attention_nchw.1} parent=63 // pred_check_branch
          %440 = sbr.rel (%p438) target = $region68
        $region67: #{spatial_attention_nchw.1} parent=63 // pred_region
          %p441 = scmp.lt.s32.totalorder %s23, 1
          %s442 = scalar_select %p441, %s23, 1
          %s443 = smul.addr %s442, 2
          %s444 = smul.addr %s443, 4
          %s445 = scalar_lea.vmem %s0, %s444
        $region68: #{spatial_attention_nchw.1} parent=63 // pred_fallthru
          _
      $region64: #{spatial_attention_nchw.1} parent=5 // pred_fallthru
        _
      %p446 = scmp.le.s32.totalorder 1, %s23
      %p447 = scmp.lt.s32.totalorder %s23, 3
      %p448 = pnand %p446, %p447
      %p449 = pneg %p448
      // Predicated region
      $region69: #{spatial_attention_nchw.1} parent=5 // pred_check
        _
      $region70: #{spatial_attention_nchw.1} parent=5 // pred_check_branch
        %451 = sbr.rel (%p448) target = $region72
      $region71: #{spatial_attention_nchw.1} parent=5 // pred_region
        %s452 = ssub.s32 %s23, 1
        // Predicated region
        $region73: #{spatial_attention_nchw.1} parent=71 // pred_check
          %p453 = pneg %p175
        $region74: #{spatial_attention_nchw.1} parent=71 // pred_check_branch
          %455 = sbr.rel (%p453) target = $region76
        $region75: #{spatial_attention_nchw.1} parent=71 // pred_region
          %456 = dma.done [#allocation4], 16
        $region76: #{spatial_attention_nchw.1} parent=71 // pred_fallthru
          _
        // Predicated region
        $region77: #{spatial_attention_nchw.1} parent=71 // pred_check
          %p457 = pneg %p196
        $region78: #{spatial_attention_nchw.1} parent=71 // pred_check_branch
          %459 = sbr.rel (%p457) target = $region80
        $region79: #{spatial_attention_nchw.1} parent=71 // pred_region
          %460 = dma.done [#allocation6], 16
        $region80: #{spatial_attention_nchw.1} parent=71 // pred_fallthru
          _
        // Predicated region
        $region81: #{spatial_attention_nchw.1} parent=71 // pred_check
          %p461 = pneg %p217
        $region82: #{spatial_attention_nchw.1} parent=71 // pred_check_branch
          %463 = sbr.rel (%p461) target = $region84
        $region83: #{spatial_attention_nchw.1} parent=71 // pred_region
          %464 = dma.done [#allocation6], 16
        $region84: #{spatial_attention_nchw.1} parent=71 // pred_fallthru
          _
        // Predicated region
        $region85: #{spatial_attention_nchw.1} parent=71 // pred_check
          %p465 = pneg %p238
        $region86: #{spatial_attention_nchw.1} parent=71 // pred_check_branch
          %467 = sbr.rel (%p465) target = $region88
        $region87: #{spatial_attention_nchw.1} parent=71 // pred_region
          %468 = dma.done [#allocation9], 16
        $region88: #{spatial_attention_nchw.1} parent=71 // pred_fallthru
          _
        // Predicated region
        $region89: #{spatial_attention_nchw.1} parent=71 // pred_check
          %p469 = pneg %p259
        $region90: #{spatial_attention_nchw.1} parent=71 // pred_check_branch
          %471 = sbr.rel (%p469) target = $region92
        $region91: #{spatial_attention_nchw.1} parent=71 // pred_region
          %472 = dma.done [#allocation9], 16
        $region92: #{spatial_attention_nchw.1} parent=71 // pred_fallthru
          _
        // Predicated region
        $region93: #{spatial_attention_nchw.1} parent=71 // pred_check
          %p473 = pneg %p280
        $region94: #{spatial_attention_nchw.1} parent=71 // pred_check_branch
          %475 = sbr.rel (%p473) target = $region96
        $region95: #{spatial_attention_nchw.1} parent=71 // pred_region
          %476 = dma.done [#allocation12], 16
        $region96: #{spatial_attention_nchw.1} parent=71 // pred_fallthru
          _
        // Predicated region
        $region97: #{spatial_attention_nchw.1} parent=71 // pred_check
          %p477 = pneg %p301
        $region98: #{spatial_attention_nchw.1} parent=71 // pred_check_branch
          %479 = sbr.rel (%p477) target = $region100
        $region99: #{spatial_attention_nchw.1} parent=71 // pred_region
          %480 = dma.done [#allocation12], 16
        $region100: #{spatial_attention_nchw.1} parent=71 // pred_fallthru
          _
        %481 = sfence
        %p482 = scmp.lt.s32.totalorder %s28, 1
        %s483 = scalar_select %p482, %s28, 1
        %s484 = smul.addr %s483, 2
        %s485 = smul.addr %s484, 4
        %s486 = scalar_lea.vmem %s0, %s485
        %p487 = pneg %p49
        %p488 = pneg %p46
        %p489 = pneg %p70
        %p490 = pneg %p67
        %p491 = pneg %p91
        %p492 = pneg %p88
        %p493 = pneg %p112
        %p494 = pneg %p109
        %p495 = pneg %p133
        %p496 = pneg %p130
        %p497 = pneg %p154
        %p498 = pneg %p151
        %p499 = pneg %p175
        %p500 = pneg %p172
        %p501 = pneg %p196
        %p502 = pneg %p193
        %p503 = pneg %p217
        %p504 = pneg %p214
        %p505 = pneg %p238
        %p506 = pneg %p235
        %p507 = pneg %p259
        %p508 = pneg %p256
        %p509 = pneg %p280
        %p510 = pneg %p277
        %p511 = pneg %p301
        %p512 = pneg %p298
        %p513 = pneg %p327
        %p514 = pneg %p324
        %p515 = scmp.lt.s32.totalorder %s28, 1
        %s516 = scalar_select %p515, %s28, 1
        %s517 = smul.addr %s516, 2
        %s518 = smul.addr %s517, 4
        %s519 = scalar_lea.vmem %s13, %s518
        %p520 = scmp.lt.s32.totalorder %s28, 1
        %s521 = scalar_select %p520, %s28, 1
        %s522 = smul.addr %s521, 2
        %s523 = smul.addr %s522, 4
        %s524 = scalar_lea.vmem %s0, %s523
        %p525 = scmp.lt.s32.totalorder %s28, 1
        %s526 = scalar_select %p525, %s28, 1
        %s527 = smul.addr %s526, 2
        %s528 = smul.addr %s527, 4
        %s529 = scalar_lea.vmem %s13, %s528
        %v530 = vld [vmem:[%s524] sm:$0xff]
        %v531 = vlaneseq
        %v532 = vand.u32 %v531, 127
        %v533 = vadd.s32 %v532, 128
        %v534 = vshra.s32 %v532, 4
        %v535 = vshra.s32 %v533, 4
        %v536 = vand.u32 %v532, 15
        %v537 = vand.u32 %v533, 15
        %vm538 = vcmp.lt.s32.totalorder %v534, 15
        %vm539 = vcmp.lt.s32.totalorder %v535, 15
        %vm540 = vcmp.lt.s32.totalorder %v534, 14
        %vm541 = vcmp.lt.s32.totalorder %v535, 14
        %vm542 = vcmp.lt.s32.totalorder %v534, 12
        %vm543 = vcmp.lt.s32.totalorder %v535, 12
        %vm544 = vcmp.ge.s32.totalorder %v534, 1
        %vm545 = vcmp.ge.s32.totalorder %v535, 1
        %vm546 = vcmp.ge.s32.totalorder %v534, 2
        %vm547 = vcmp.ge.s32.totalorder %v535, 2
        %vm548 = vcmp.ge.s32.totalorder %v534, 4
        %vm549 = vcmp.ge.s32.totalorder %v535, 4
        %vm550 = vcmp.lt.s32.totalorder %v536, 15
        %vm551 = vcmp.lt.s32.totalorder %v537, 15
        %vm552 = vcmp.lt.s32.totalorder %v536, 14
        %vm553 = vcmp.lt.s32.totalorder %v537, 14
        %vm554 = vcmp.lt.s32.totalorder %v536, 12
        %vm555 = vcmp.lt.s32.totalorder %v537, 12
        %vm556 = vcmp.ge.s32.totalorder %v536, 1
        %vm557 = vcmp.ge.s32.totalorder %v537, 1
        %vm558 = vcmp.ge.s32.totalorder %v536, 2
        %vm559 = vcmp.ge.s32.totalorder %v537, 2
        %vm560 = vcmp.ge.s32.totalorder %v536, 4
        %vm561 = vcmp.ge.s32.totalorder %v537, 4
        %vm562 = vcmp.lt.s32.totalorder %v534, 13
        %vm563 = vcmp.lt.s32.totalorder %v535, 13
        %vm564 = vcmp.ge.s32.totalorder %v534, 3
        %vm565 = vcmp.ge.s32.totalorder %v535, 3
        %vm566 = vcmp.lt.s32.totalorder %v536, 13
        %vm567 = vcmp.lt.s32.totalorder %v537, 13
        %vm568 = vcmp.ge.s32.totalorder %v536, 3
        %vm569 = vcmp.ge.s32.totalorder %v537, 3
        %v570 = vld [vmem:[%s1] sm:$0xf]
        %v572 = vcombine.high %v530, %v530
        %574 = vrot.lane.b32.xlu0 %v530, 17
        %v575 = vpop.permute.xlu0 %574
        %576 = vrot.lane.b32.xlu0 %v572, 17
        %v577 = vpop.permute.xlu0 %576
        %vm578 = vcmp.lt.s32.totalorder %v532, 17
        %v579 = vsel %vm578, %v575, %v577
        %v580 = vsel %vm578, %v577, %v575
        %vm581 = vmand %vm544, %vm556
        %vm582 = vmand %vm545, %vm557
        %v583 = vsel %vm581, %v580, 0.0
        %v584 = vsel %vm582, %v579, 0.0
        %586 = vset.pattern.permute.xlu0 0
        %587 = vperm.xlu0 %586, %v570
        %v588 = vpop.permute.xlu0 %587
        %v590 = vmul.f32 %v583, %v588
        %v591 = vmul.f32 %v584, %v588
        %592 = vrot.lane.b32.xlu0 %v530, 16
        %v593 = vpop.permute.xlu0 %592
        %594 = vrot.lane.b32.xlu0 %v572, 16
        %v595 = vpop.permute.xlu0 %594
        %vm596 = vcmp.lt.s32.totalorder %v532, 16
        %v597 = vsel %vm596, %v593, %v595
        %v598 = vsel %vm596, %v595, %v593
        %v599 = vsel %vm544, %v598, 0.0
        %v600 = vsel %vm545, %v597, 0.0
        %601 = vset.pattern.permute.xlu0 1
        %602 = vperm.xlu0 %601, %v570
        %v603 = vpop.permute.xlu0 %602
        %v605 = vmul.f32 %v599, %v603
        %v606 = vmul.f32 %v600, %v603
        %v607 = vadd.f32 %v590, %v605
        %v608 = vadd.f32 %v591, %v606
        %609 = vrot.lane.b32.xlu0 %v530, 15
        %v610 = vpop.permute.xlu0 %609
        %611 = vrot.lane.b32.xlu0 %v572, 15
        %v612 = vpop.permute.xlu0 %611
        %vm613 = vcmp.lt.s32.totalorder %v532, 15
        %v614 = vsel %vm613, %v610, %v612
        %v615 = vsel %vm613, %v612, %v610
        %vm616 = vmand %vm544, %vm550
        %vm617 = vmand %vm545, %vm551
        %v618 = vsel %vm616, %v615, 0.0
        %v619 = vsel %vm617, %v614, 0.0
        %620 = vset.pattern.permute.xlu0 2
        %621 = vperm.xlu0 %620, %v570
        %v622 = vpop.permute.xlu0 %621
        %v624 = vmul.f32 %v618, %v622
        %v625 = vmul.f32 %v619, %v622
        %v626 = vadd.f32 %v607, %v624
        %v627 = vadd.f32 %v608, %v625
        %628 = vrot.lane.b32.xlu0 %v530, 1
        %v629 = vpop.permute.xlu0 %628
        %630 = vrot.lane.b32.xlu0 %v572, 1
        %v631 = vpop.permute.xlu0 %630
        %vm632 = vcmp.lt.s32.totalorder %v532, 1
        %v633 = vsel %vm632, %v629, %v631
        %v634 = vsel %vm632, %v631, %v629
        %v635 = vsel %vm556, %v634, 0.0
        %v636 = vsel %vm557, %v633, 0.0
        %637 = vset.pattern.permute.xlu0 3
        %638 = vperm.xlu0 %637, %v570
        %v639 = vpop.permute.xlu0 %638
        %v641 = vmul.f32 %v635, %v639
        %v642 = vmul.f32 %v636, %v639
        %v643 = vadd.f32 %v626, %v641
        %v644 = vadd.f32 %v627, %v642
        %645 = vset.pattern.permute.xlu0 4
        %646 = vperm.xlu0 %645, %v570
        %v647 = vpop.permute.xlu0 %646
        %v649 = vunpack.c.l.s4 839922192
        %v650 = vunpack.c.0.s8 %v649
        %v651 = vlaneseq
        %v652 = vshrl.u32 %v651, 7
        %v653 = vsub.s32 %v650, %v652
        %v654 = vrot.slane %v647, %v653
        %v656 = vmul.f32 %v530, %v654
        %v658 = vcombine.high %v656, %v656
        %v660 = vadd.f32 %v643, %v656
        %v661 = vadd.f32 %v644, %v658
        %662 = vrot.lane.b32.xlu0 %v530, 127
        %v663 = vpop.permute.xlu0 %662
        %664 = vrot.lane.b32.xlu0 %v572, 127
        %v665 = vpop.permute.xlu0 %664
        %vm666 = vcmp.lt.s32.totalorder %v532, 127
        %v667 = vsel %vm666, %v663, %v665
        %v668 = vsel %vm666, %v665, %v663
        %v669 = vsel %vm550, %v667, 0.0
        %v670 = vsel %vm551, %v668, 0.0
        %671 = vset.pattern.permute.xlu0 5
        %672 = vperm.xlu0 %671, %v570
        %v673 = vpop.permute.xlu0 %672
        %v675 = vmul.f32 %v669, %v673
        %v676 = vmul.f32 %v670, %v673
        %v677 = vadd.f32 %v660, %v675
        %v678 = vadd.f32 %v661, %v676
        %679 = vrot.lane.b32.xlu0 %v530, 113
        %v680 = vpop.permute.xlu0 %679
        %681 = vrot.lane.b32.xlu0 %v572, 113
        %v682 = vpop.permute.xlu0 %681
        %vm683 = vcmp.lt.s32.totalorder %v532, 113
        %v684 = vsel %vm683, %v680, %v682
        %v685 = vsel %vm683, %v682, %v680
        %vm686 = vmand %vm538, %vm556
        %vm687 = vmand %vm539, %vm557
        %v688 = vsel %vm686, %v684, 0.0
        %v689 = vsel %vm687, %v685, 0.0
        %690 = vset.pattern.permute.xlu0 6
        %691 = vperm.xlu0 %690, %v570
        %v692 = vpop.permute.xlu0 %691
        %v694 = vmul.f32 %v688, %v692
        %v695 = vmul.f32 %v689, %v692
        %v696 = vadd.f32 %v677, %v694
        %v697 = vadd.f32 %v678, %v695
        %698 = vrot.lane.b32.xlu0 %v530, 112
        %v699 = vpop.permute.xlu0 %698
        %700 = vrot.lane.b32.xlu0 %v572, 112
        %v701 = vpop.permute.xlu0 %700
        %vm702 = vcmp.lt.s32.totalorder %v532, 112
        %v703 = vsel %vm702, %v699, %v701
        %v704 = vsel %vm702, %v701, %v699
        %v705 = vsel %vm538, %v703, 0.0
        %v706 = vsel %vm539, %v704, 0.0
        %707 = vset.pattern.permute.xlu0 7
        %708 = vperm.xlu0 %707, %v570
        %v709 = vpop.permute.xlu0 %708
        %v711 = vmul.f32 %v705, %v709
        %v712 = vmul.f32 %v706, %v709
        %v713 = vadd.f32 %v696, %v711
        %v714 = vadd.f32 %v697, %v712
        %715 = vrot.lane.b32.xlu0 %v530, 111
        %v716 = vpop.permute.xlu0 %715
        %717 = vrot.lane.b32.xlu0 %v572, 111
        %v718 = vpop.permute.xlu0 %717
        %vm719 = vcmp.lt.s32.totalorder %v532, 111
        %v720 = vsel %vm719, %v716, %v718
        %v721 = vsel %vm719, %v718, %v716
        %vm722 = vmand %vm538, %vm550
        %vm723 = vmand %vm539, %vm551
        %v724 = vsel %vm722, %v720, 0.0
        %v725 = vsel %vm723, %v721, 0.0
        %726 = vset.pattern.permute.xlu0 8
        %727 = vperm.xlu0 %726, %v570
        %v728 = vpop.permute.xlu0 %727
        %v730 = vmul.f32 %v724, %v728
        %v731 = vmul.f32 %v725, %v728
        %v732 = vadd.f32 %v713, %v730
        %v733 = vadd.f32 %v714, %v731
        %v734 = vld [vmem:[%s2] sm:$0xf]
        %736 = vset.pattern.permute.xlu0 0
        %737 = vperm.xlu0 %736, %v734
        %v738 = vpop.permute.xlu0 %737
        %v740 = vadd.f32 %v732, %v738
        %v741 = vadd.f32 %v733, %v738
        %v742 = vld [vmem:[%s3] sm:$0xf]
        %743 = vrot.lane.b32.xlu0 %v740, 68
        %v744 = vpop.permute.xlu0 %743
        %745 = vrot.lane.b32.xlu0 %v741, 68
        %v746 = vpop.permute.xlu0 %745
        %vm747 = vcmp.lt.s32.totalorder %v532, 68
        %v748 = vsel %vm747, %v744, %v746
        %v749 = vsel %vm747, %v746, %v744
        %vm750 = vmand %vm548, %vm560
        %vm751 = vmand %vm549, %vm561
        %v752 = vsel %vm750, %v749, 0.0
        %v753 = vsel %vm751, %v748, 0.0
        %755 = vset.pattern.permute.xlu0 0
        %756 = vperm.xlu0 %755, %v742
        %v757 = vpop.permute.xlu0 %756
        %v759 = vmul.f32 %v752, %v757
        %v760 = vmul.f32 %v753, %v757
        %761 = vrot.lane.b32.xlu0 %v740, 66
        %v762 = vpop.permute.xlu0 %761
        %763 = vrot.lane.b32.xlu0 %v741, 66
        %v764 = vpop.permute.xlu0 %763
        %vm765 = vcmp.lt.s32.totalorder %v532, 66
        %v766 = vsel %vm765, %v762, %v764
        %v767 = vsel %vm765, %v764, %v762
        %vm768 = vmand %vm548, %vm558
        %vm769 = vmand %vm549, %vm559
        %v770 = vsel %vm768, %v767, 0.0
        %v771 = vsel %vm769, %v766, 0.0
        %772 = vset.pattern.permute.xlu0 1
        %773 = vperm.xlu0 %772, %v742
        %v774 = vpop.permute.xlu0 %773
        %v776 = vmul.f32 %v770, %v774
        %v777 = vmul.f32 %v771, %v774
        %v778 = vadd.f32 %v759, %v776
        %v779 = vadd.f32 %v760, %v777
        %780 = vrot.lane.b32.xlu0 %v740, 64
        %v781 = vpop.permute.xlu0 %780
        %782 = vrot.lane.b32.xlu0 %v741, 64
        %v783 = vpop.permute.xlu0 %782
        %vm784 = vcmp.lt.s32.totalorder %v532, 64
        %v785 = vsel %vm784, %v781, %v783
        %v786 = vsel %vm784, %v783, %v781
        %v787 = vsel %vm548, %v786, 0.0
        %v788 = vsel %vm549, %v785, 0.0
        %789 = vset.pattern.permute.xlu0 2
        %790 = vperm.xlu0 %789, %v742
        %v791 = vpop.permute.xlu0 %790
        %v793 = vmul.f32 %v787, %v791
        %v794 = vmul.f32 %v788, %v791
        %v795 = vadd.f32 %v778, %v793
        %v796 = vadd.f32 %v779, %v794
        %797 = vrot.lane.b32.xlu0 %v740, 62
        %v798 = vpop.permute.xlu0 %797
        %799 = vrot.lane.b32.xlu0 %v741, 62
        %v800 = vpop.permute.xlu0 %799
        %vm801 = vcmp.lt.s32.totalorder %v532, 62
        %v802 = vsel %vm801, %v798, %v800
        %v803 = vsel %vm801, %v800, %v798
        %vm804 = vmand %vm548, %vm552
        %vm805 = vmand %vm549, %vm553
        %v806 = vsel %vm804, %v803, 0.0
        %v807 = vsel %vm805, %v802, 0.0
        %808 = vset.pattern.permute.xlu0 3
        %809 = vperm.xlu0 %808, %v742
        %v810 = vpop.permute.xlu0 %809
        %v812 = vmul.f32 %v806, %v810
        %v813 = vmul.f32 %v807, %v810
        %v814 = vadd.f32 %v795, %v812
        %v815 = vadd.f32 %v796, %v813
        %816 = vrot.lane.b32.xlu0 %v740, 60
        %v817 = vpop.permute.xlu0 %816
        %818 = vrot.lane.b32.xlu0 %v741, 60
        %v819 = vpop.permute.xlu0 %818
        %vm820 = vcmp.lt.s32.totalorder %v532, 60
        %v821 = vsel %vm820, %v817, %v819
        %v822 = vsel %vm820, %v819, %v817
        %vm823 = vmand %vm548, %vm554
        %vm824 = vmand %vm549, %vm555
        %v825 = vsel %vm823, %v822, 0.0
        %v826 = vsel %vm824, %v821, 0.0
        %827 = vset.pattern.permute.xlu0 4
        %828 = vperm.xlu0 %827, %v742
        %v829 = vpop.permute.xlu0 %828
        %v831 = vmul.f32 %v825, %v829
        %v832 = vmul.f32 %v826, %v829
        %v833 = vadd.f32 %v814, %v831
        %v834 = vadd.f32 %v815, %v832
        %835 = vrot.lane.b32.xlu0 %v740, 36
        %v836 = vpop.permute.xlu0 %835
        %837 = vrot.lane.b32.xlu0 %v741, 36
        %v838 = vpop.permute.xlu0 %837
        %vm839 = vcmp.lt.s32.totalorder %v532, 36
        %v840 = vsel %vm839, %v836, %v838
        %v841 = vsel %vm839, %v838, %v836
        %vm842 = vmand %vm546, %vm560
        %vm843 = vmand %vm547, %vm561
        %v844 = vsel %vm842, %v841, 0.0
        %v845 = vsel %vm843, %v840, 0.0
        %846 = vset.pattern.permute.xlu0 5
        %847 = vperm.xlu0 %846, %v742
        %v848 = vpop.permute.xlu0 %847
        %v850 = vmul.f32 %v844, %v848
        %v851 = vmul.f32 %v845, %v848
        %v852 = vadd.f32 %v833, %v850
        %v853 = vadd.f32 %v834, %v851
        %854 = vrot.lane.b32.xlu0 %v740, 34
        %v855 = vpop.permute.xlu0 %854
        %856 = vrot.lane.b32.xlu0 %v741, 34
        %v857 = vpop.permute.xlu0 %856
        %vm858 = vcmp.lt.s32.totalorder %v532, 34
        %v859 = vsel %vm858, %v855, %v857
        %v860 = vsel %vm858, %v857, %v855
        %vm861 = vmand %vm546, %vm558
        %vm862 = vmand %vm547, %vm559
        %v863 = vsel %vm861, %v860, 0.0
        %v864 = vsel %vm862, %v859, 0.0
        %865 = vset.pattern.permute.xlu0 6
        %866 = vperm.xlu0 %865, %v742
        %v867 = vpop.permute.xlu0 %866
        %v869 = vmul.f32 %v863, %v867
        %v870 = vmul.f32 %v864, %v867
        %v871 = vadd.f32 %v852, %v869
        %v872 = vadd.f32 %v853, %v870
        %873 = vrot.lane.b32.xlu0 %v740, 32
        %v874 = vpop.permute.xlu0 %873
        %875 = vrot.lane.b32.xlu0 %v741, 32
        %v876 = vpop.permute.xlu0 %875
        %vm877 = vcmp.lt.s32.totalorder %v532, 32
        %v878 = vsel %vm877, %v874, %v876
        %v879 = vsel %vm877, %v876, %v874
        %v880 = vsel %vm546, %v879, 0.0
        %v881 = vsel %vm547, %v878, 0.0
        %882 = vset.pattern.permute.xlu0 7
        %883 = vperm.xlu0 %882, %v742
        %v884 = vpop.permute.xlu0 %883
        %v886 = vmul.f32 %v880, %v884
        %v887 = vmul.f32 %v881, %v884
        %v888 = vadd.f32 %v871, %v886
        %v889 = vadd.f32 %v872, %v887
        %890 = vrot.lane.b32.xlu0 %v740, 30
        %v891 = vpop.permute.xlu0 %890
        %892 = vrot.lane.b32.xlu0 %v741, 30
        %v893 = vpop.permute.xlu0 %892
        %vm894 = vcmp.lt.s32.totalorder %v532, 30
        %v895 = vsel %vm894, %v891, %v893
        %v896 = vsel %vm894, %v893, %v891
        %vm897 = vmand %vm546, %vm552
        %vm898 = vmand %vm547, %vm553
        %v899 = vsel %vm897, %v896, 0.0
        %v900 = vsel %vm898, %v895, 0.0
        %901 = vset.pattern.permute.xlu0 8
        %902 = vperm.xlu0 %901, %v742
        %v903 = vpop.permute.xlu0 %902
        %v905 = vmul.f32 %v899, %v903
        %v906 = vmul.f32 %v900, %v903
        %v907 = vadd.f32 %v888, %v905
        %v908 = vadd.f32 %v889, %v906
        %909 = vrot.lane.b32.xlu0 %v740, 28
        %v910 = vpop.permute.xlu0 %909
        %911 = vrot.lane.b32.xlu0 %v741, 28
        %v912 = vpop.permute.xlu0 %911
        %vm913 = vcmp.lt.s32.totalorder %v532, 28
        %v914 = vsel %vm913, %v910, %v912
        %v915 = vsel %vm913, %v912, %v910
        %vm916 = vmand %vm546, %vm554
        %vm917 = vmand %vm547, %vm555
        %v918 = vsel %vm916, %v915, 0.0
        %v919 = vsel %vm917, %v914, 0.0
        %920 = vset.pattern.permute.xlu0 9
        %921 = vperm.xlu0 %920, %v742
        %v922 = vpop.permute.xlu0 %921
        %v924 = vmul.f32 %v918, %v922
        %v925 = vmul.f32 %v919, %v922
        %v926 = vadd.f32 %v907, %v924
        %v927 = vadd.f32 %v908, %v925
        %928 = vrot.lane.b32.xlu0 %v740, 4
        %v929 = vpop.permute.xlu0 %928
        %930 = vrot.lane.b32.xlu0 %v741, 4
        %v931 = vpop.permute.xlu0 %930
        %vm932 = vcmp.lt.s32.totalorder %v532, 4
        %v933 = vsel %vm932, %v929, %v931
        %v934 = vsel %vm932, %v931, %v929
        %v935 = vsel %vm560, %v934, 0.0
        %v936 = vsel %vm561, %v933, 0.0
        %937 = vset.pattern.permute.xlu0 10
        %938 = vperm.xlu0 %937, %v742
        %v939 = vpop.permute.xlu0 %938
        %v941 = vmul.f32 %v935, %v939
        %v942 = vmul.f32 %v936, %v939
        %v943 = vadd.f32 %v926, %v941
        %v944 = vadd.f32 %v927, %v942
        %945 = vrot.lane.b32.xlu0 %v740, 2
        %v946 = vpop.permute.xlu0 %945
        %947 = vrot.lane.b32.xlu0 %v741, 2
        %v948 = vpop.permute.xlu0 %947
        %vm949 = vcmp.lt.s32.totalorder %v532, 2
        %v950 = vsel %vm949, %v946, %v948
        %v951 = vsel %vm949, %v948, %v946
        %v952 = vsel %vm558, %v951, 0.0
        %v953 = vsel %vm559, %v950, 0.0
        %954 = vset.pattern.permute.xlu0 11
        %955 = vperm.xlu0 %954, %v742
        %v956 = vpop.permute.xlu0 %955
        %v958 = vmul.f32 %v952, %v956
        %v959 = vmul.f32 %v953, %v956
        %v960 = vadd.f32 %v943, %v958
        %v961 = vadd.f32 %v944, %v959
        %962 = vset.pattern.permute.xlu0 12
        %963 = vperm.xlu0 %962, %v742
        %v964 = vpop.permute.xlu0 %963
        %v966 = vmul.f32 %v740, %v964
        %v967 = vmul.f32 %v741, %v964
        %v968 = vadd.f32 %v960, %v966
        %v969 = vadd.f32 %v961, %v967
        %970 = vrot.lane.b32.xlu0 %v740, 126
        %v971 = vpop.permute.xlu0 %970
        %972 = vrot.lane.b32.xlu0 %v741, 126
        %v973 = vpop.permute.xlu0 %972
        %vm974 = vcmp.lt.s32.totalorder %v532, 126
        %v975 = vsel %vm974, %v971, %v973
        %v976 = vsel %vm974, %v973, %v971
        %v977 = vsel %vm552, %v975, 0.0
        %v978 = vsel %vm553, %v976, 0.0
        %979 = vset.pattern.permute.xlu0 13
        %980 = vperm.xlu0 %979, %v742
        %v981 = vpop.permute.xlu0 %980
        %v983 = vmul.f32 %v977, %v981
        %v984 = vmul.f32 %v978, %v981
        %v985 = vadd.f32 %v968, %v983
        %v986 = vadd.f32 %v969, %v984
        %987 = vrot.lane.b32.xlu0 %v740, 124
        %v988 = vpop.permute.xlu0 %987
        %989 = vrot.lane.b32.xlu0 %v741, 124
        %v990 = vpop.permute.xlu0 %989
        %vm991 = vcmp.lt.s32.totalorder %v532, 124
        %v992 = vsel %vm991, %v988, %v990
        %v993 = vsel %vm991, %v990, %v988
        %v994 = vsel %vm554, %v992, 0.0
        %v995 = vsel %vm555, %v993, 0.0
        %996 = vset.pattern.permute.xlu0 14
        %997 = vperm.xlu0 %996, %v742
        %v998 = vpop.permute.xlu0 %997
        %v1000 = vmul.f32 %v994, %v998
        %v1001 = vmul.f32 %v995, %v998
        %v1002 = vadd.f32 %v985, %v1000
        %v1003 = vadd.f32 %v986, %v1001
        %1004 = vrot.lane.b32.xlu0 %v740, 100
        %v1005 = vpop.permute.xlu0 %1004
        %1006 = vrot.lane.b32.xlu0 %v741, 100
        %v1007 = vpop.permute.xlu0 %1006
        %vm1008 = vcmp.lt.s32.totalorder %v532, 100
        %v1009 = vsel %vm1008, %v1005, %v1007
        %v1010 = vsel %vm1008, %v1007, %v1005
        %vm1011 = vmand %vm540, %vm560
        %vm1012 = vmand %vm541, %vm561
        %v1013 = vsel %vm1011, %v1009, 0.0
        %v1014 = vsel %vm1012, %v1010, 0.0
        %1015 = vset.pattern.permute.xlu0 15
        %1016 = vperm.xlu0 %1015, %v742
        %v1017 = vpop.permute.xlu0 %1016
        %v1019 = vmul.f32 %v1013, %v1017
        %v1020 = vmul.f32 %v1014, %v1017
        %v1021 = vadd.f32 %v1002, %v1019
        %v1022 = vadd.f32 %v1003, %v1020
        %1023 = vrot.lane.b32.xlu0 %v740, 98
        %v1024 = vpop.permute.xlu0 %1023
        %1025 = vrot.lane.b32.xlu0 %v741, 98
        %v1026 = vpop.permute.xlu0 %1025
        %vm1027 = vcmp.lt.s32.totalorder %v532, 98
        %v1028 = vsel %vm1027, %v1024, %v1026
        %v1029 = vsel %vm1027, %v1026, %v1024
        %vm1030 = vmand %vm540, %vm558
        %vm1031 = vmand %vm541, %vm559
        %v1032 = vsel %vm1030, %v1028, 0.0
        %v1033 = vsel %vm1031, %v1029, 0.0
        %1034 = vset.pattern.permute.xlu0 16
        %1035 = vperm.xlu0 %1034, %v742
        %v1036 = vpop.permute.xlu0 %1035
        %v1038 = vmul.f32 %v1032, %v1036
        %v1039 = vmul.f32 %v1033, %v1036
        %v1040 = vadd.f32 %v1021, %v1038
        %v1041 = vadd.f32 %v1022, %v1039
        %1042 = vrot.lane.b32.xlu0 %v740, 96
        %v1043 = vpop.permute.xlu0 %1042
        %1044 = vrot.lane.b32.xlu0 %v741, 96
        %v1045 = vpop.permute.xlu0 %1044
        %vm1046 = vcmp.lt.s32.totalorder %v532, 96
        %v1047 = vsel %vm1046, %v1043, %v1045
        %v1048 = vsel %vm1046, %v1045, %v1043
        %v1049 = vsel %vm540, %v1047, 0.0
        %v1050 = vsel %vm541, %v1048, 0.0
        %1051 = vset.pattern.permute.xlu0 17
        %1052 = vperm.xlu0 %1051, %v742
        %v1053 = vpop.permute.xlu0 %1052
        %v1055 = vmul.f32 %v1049, %v1053
        %v1056 = vmul.f32 %v1050, %v1053
        %v1057 = vadd.f32 %v1040, %v1055
        %v1058 = vadd.f32 %v1041, %v1056
        %1059 = vrot.lane.b32.xlu0 %v740, 94
        %v1060 = vpop.permute.xlu0 %1059
        %1061 = vrot.lane.b32.xlu0 %v741, 94
        %v1062 = vpop.permute.xlu0 %1061
        %vm1063 = vcmp.lt.s32.totalorder %v532, 94
        %v1064 = vsel %vm1063, %v1060, %v1062
        %v1065 = vsel %vm1063, %v1062, %v1060
        %vm1066 = vmand %vm540, %vm552
        %vm1067 = vmand %vm541, %vm553
        %v1068 = vsel %vm1066, %v1064, 0.0
        %v1069 = vsel %vm1067, %v1065, 0.0
        %1070 = vset.pattern.permute.xlu0 18
        %1071 = vperm.xlu0 %1070, %v742
        %v1072 = vpop.permute.xlu0 %1071
        %v1074 = vmul.f32 %v1068, %v1072
        %v1075 = vmul.f32 %v1069, %v1072
        %v1076 = vadd.f32 %v1057, %v1074
        %v1077 = vadd.f32 %v1058, %v1075
        %1078 = vrot.lane.b32.xlu0 %v740, 92
        %v1079 = vpop.permute.xlu0 %1078
        %1080 = vrot.lane.b32.xlu0 %v741, 92
        %v1081 = vpop.permute.xlu0 %1080
        %vm1082 = vcmp.lt.s32.totalorder %v532, 92
        %v1083 = vsel %vm1082, %v1079, %v1081
        %v1084 = vsel %vm1082, %v1081, %v1079
        %vm1085 = vmand %vm540, %vm554
        %vm1086 = vmand %vm541, %vm555
        %v1087 = vsel %vm1085, %v1083, 0.0
        %v1088 = vsel %vm1086, %v1084, 0.0
        %1089 = vset.pattern.permute.xlu0 19
        %1090 = vperm.xlu0 %1089, %v742
        %v1091 = vpop.permute.xlu0 %1090
        %v1093 = vmul.f32 %v1087, %v1091
        %v1094 = vmul.f32 %v1088, %v1091
        %v1095 = vadd.f32 %v1076, %v1093
        %v1096 = vadd.f32 %v1077, %v1094
        %vm1097 = vmand %vm542, %vm560
        %vm1098 = vmand %vm543, %vm561
        %v1099 = vsel %vm1097, %v748, 0.0
        %v1100 = vsel %vm1098, %v749, 0.0
        %1101 = vset.pattern.permute.xlu0 20
        %1102 = vperm.xlu0 %1101, %v742
        %v1103 = vpop.permute.xlu0 %1102
        %v1105 = vmul.f32 %v1099, %v1103
        %v1106 = vmul.f32 %v1100, %v1103
        %v1107 = vadd.f32 %v1095, %v1105
        %v1108 = vadd.f32 %v1096, %v1106
        %vm1109 = vmand %vm542, %vm558
        %vm1110 = vmand %vm543, %vm559
        %v1111 = vsel %vm1109, %v766, 0.0
        %v1112 = vsel %vm1110, %v767, 0.0
        %1113 = vset.pattern.permute.xlu0 21
        %1114 = vperm.xlu0 %1113, %v742
        %v1115 = vpop.permute.xlu0 %1114
        %v1117 = vmul.f32 %v1111, %v1115
        %v1118 = vmul.f32 %v1112, %v1115
        %v1119 = vadd.f32 %v1107, %v1117
        %v1120 = vadd.f32 %v1108, %v1118
        %v1121 = vsel %vm542, %v785, 0.0
        %v1122 = vsel %vm543, %v786, 0.0
        %1123 = vset.pattern.permute.xlu0 22
        %1124 = vperm.xlu0 %1123, %v742
        %v1125 = vpop.permute.xlu0 %1124
        %v1127 = vmul.f32 %v1121, %v1125
        %v1128 = vmul.f32 %v1122, %v1125
        %v1129 = vadd.f32 %v1119, %v1127
        %v1130 = vadd.f32 %v1120, %v1128
        %vm1131 = vmand %vm542, %vm552
        %vm1132 = vmand %vm543, %vm553
        %v1133 = vsel %vm1131, %v802, 0.0
        %v1134 = vsel %vm1132, %v803, 0.0
        %1135 = vset.pattern.permute.xlu0 23
        %1136 = vperm.xlu0 %1135, %v742
        %v1137 = vpop.permute.xlu0 %1136
        %v1139 = vmul.f32 %v1133, %v1137
        %v1140 = vmul.f32 %v1134, %v1137
        %v1141 = vadd.f32 %v1129, %v1139
        %v1142 = vadd.f32 %v1130, %v1140
        %vm1143 = vmand %vm542, %vm554
        %vm1144 = vmand %vm543, %vm555
        %v1145 = vsel %vm1143, %v821, 0.0
        %v1146 = vsel %vm1144, %v822, 0.0
        %1147 = vset.pattern.permute.xlu0 24
        %1148 = vperm.xlu0 %1147, %v742
        %v1149 = vpop.permute.xlu0 %1148
        %v1151 = vmul.f32 %v1145, %v1149
        %v1152 = vmul.f32 %v1146, %v1149
        %v1153 = vadd.f32 %v1141, %v1151
        %v1154 = vadd.f32 %v1142, %v1152
        %v1155 = vld [vmem:[%s4] sm:$0xf]
        %1157 = vset.pattern.permute.xlu0 0
        %1158 = vperm.xlu0 %1157, %v1155
        %v1159 = vpop.permute.xlu0 %1158
        %v1161 = vadd.f32 %v1153, %v1159
        %v1162 = vadd.f32 %v1154, %v1159
        %s1163 = sld [smem:[#allocation3]]
        %v1164 = vstv %s1163
        %v1165 = vmul.f32 %v740, %v1164
        %v1166 = vmul.f32 %v741, %v1164
        %s1167 = sld [smem:[#allocation3 + $0x2]]
        %v1168 = vstv %s1167
        %v1169 = vmul.f32 %v740, %v1168
        %v1170 = vmul.f32 %v741, %v1168
        %v1173 = vrot.slane %v1169, 1
        %v1174 = vrot.slane %v1170, 1
        %v1177 = vadd.f32 %v1165, %v1173
        %v1178 = vadd.f32 %v1166, %v1174
        %s1179 = sld [smem:[#allocation3 + $0x4]]
        %v1180 = vstv %s1179
        %v1181 = vmul.f32 %v740, %v1180
        %v1182 = vmul.f32 %v741, %v1180
        %v1185 = vrot.slane %v1181, 2
        %v1186 = vrot.slane %v1182, 2
        %v1189 = vadd.f32 %v1177, %v1185
        %v1190 = vadd.f32 %v1178, %v1186
        %s1191 = sld [smem:[#allocation3 + $0x6]]
        %v1192 = vstv %s1191
        %v1193 = vmul.f32 %v740, %v1192
        %v1194 = vmul.f32 %v741, %v1192
        %v1197 = vrot.slane %v1193, 3
        %v1198 = vrot.slane %v1194, 3
        %v1201 = vadd.f32 %v1189, %v1197
        %v1202 = vadd.f32 %v1190, %v1198
        %s1203 = sld [smem:[#allocation5]]
        %v1204 = vstv %s1203
        %v1205 = vadd.f32 %v1201, %v1204
        %v1206 = vadd.f32 %v1202, %v1204
        %s1207 = sld [smem:[#allocation3 + $0x1]]
        %v1208 = vstv %s1207
        %v1209 = vmul.f32 %v740, %v1208
        %v1210 = vmul.f32 %v741, %v1208
        %s1211 = sld [smem:[#allocation3 + $0x3]]
        %v1212 = vstv %s1211
        %v1213 = vmul.f32 %v740, %v1212
        %v1214 = vmul.f32 %v741, %v1212
        %v1217 = vrot.slane %v1213, 1
        %v1218 = vrot.slane %v1214, 1
        %v1221 = vadd.f32 %v1209, %v1217
        %v1222 = vadd.f32 %v1210, %v1218
        %s1223 = sld [smem:[#allocation3 + $0x5]]
        %v1224 = vstv %s1223
        %v1225 = vmul.f32 %v740, %v1224
        %v1226 = vmul.f32 %v741, %v1224
        %v1229 = vrot.slane %v1225, 2
        %v1230 = vrot.slane %v1226, 2
        %v1233 = vadd.f32 %v1221, %v1229
        %v1234 = vadd.f32 %v1222, %v1230
        %s1235 = sld [smem:[#allocation3 + $0x7]]
        %v1236 = vstv %s1235
        %v1237 = vmul.f32 %v740, %v1236
        %v1238 = vmul.f32 %v741, %v1236
        %v1241 = vrot.slane %v1237, 3
        %v1242 = vrot.slane %v1238, 3
        %v1245 = vadd.f32 %v1233, %v1241
        %v1246 = vadd.f32 %v1234, %v1242
        %s1247 = sld [smem:[#allocation5 + $0x1]]
        %v1248 = vstv %s1247
        %v1249 = vadd.f32 %v1245, %v1248
        %v1250 = vadd.f32 %v1246, %v1248
        %s1251 = sld [smem:[#allocation7]]
        %v1252 = vstv %s1251
        %v1253 = vmul.f32 %v1161, %v1252
        %v1254 = vmul.f32 %v1162, %v1252
        %s1255 = sld [smem:[#allocation7 + $0x2]]
        %v1256 = vstv %s1255
        %v1257 = vmul.f32 %v1161, %v1256
        %v1258 = vmul.f32 %v1162, %v1256
        %v1261 = vrot.slane %v1257, 1
        %v1262 = vrot.slane %v1258, 1
        %v1265 = vadd.f32 %v1253, %v1261
        %v1266 = vadd.f32 %v1254, %v1262
        %s1267 = sld [smem:[#allocation7 + $0x4]]
        %v1268 = vstv %s1267
        %v1269 = vmul.f32 %v1161, %v1268
        %v1270 = vmul.f32 %v1162, %v1268
        %v1273 = vrot.slane %v1269, 2
        %v1274 = vrot.slane %v1270, 2
        %v1277 = vadd.f32 %v1265, %v1273
        %v1278 = vadd.f32 %v1266, %v1274
        %s1279 = sld [smem:[#allocation7 + $0x6]]
        %v1280 = vstv %s1279
        %v1281 = vmul.f32 %v1161, %v1280
        %v1282 = vmul.f32 %v1162, %v1280
        %v1285 = vrot.slane %v1281, 3
        %v1286 = vrot.slane %v1282, 3
        %v1289 = vadd.f32 %v1277, %v1285
        %v1290 = vadd.f32 %v1278, %v1286
        %s1291 = sld [smem:[#allocation8]]
        %v1292 = vstv %s1291
        %v1293 = vadd.f32 %v1289, %v1292
        %v1294 = vadd.f32 %v1290, %v1292
        %s1295 = sld [smem:[#allocation7 + $0x1]]
        %v1296 = vstv %s1295
        %v1297 = vmul.f32 %v1161, %v1296
        %v1298 = vmul.f32 %v1162, %v1296
        %s1299 = sld [smem:[#allocation7 + $0x3]]
        %v1300 = vstv %s1299
        %v1301 = vmul.f32 %v1161, %v1300
        %v1302 = vmul.f32 %v1162, %v1300
        %v1305 = vrot.slane %v1301, 1
        %v1306 = vrot.slane %v1302, 1
        %v1309 = vadd.f32 %v1297, %v1305
        %v1310 = vadd.f32 %v1298, %v1306
        %s1311 = sld [smem:[#allocation7 + $0x5]]
        %v1312 = vstv %s1311
        %v1313 = vmul.f32 %v1161, %v1312
        %v1314 = vmul.f32 %v1162, %v1312
        %v1317 = vrot.slane %v1313, 2
        %v1318 = vrot.slane %v1314, 2
        %v1321 = vadd.f32 %v1309, %v1317
        %v1322 = vadd.f32 %v1310, %v1318
        %s1323 = sld [smem:[#allocation7 + $0x7]]
        %v1324 = vstv %s1323
        %v1325 = vmul.f32 %v1161, %v1324
        %v1326 = vmul.f32 %v1162, %v1324
        %v1329 = vrot.slane %v1325, 3
        %v1330 = vrot.slane %v1326, 3
        %v1333 = vadd.f32 %v1321, %v1329
        %v1334 = vadd.f32 %v1322, %v1330
        %s1335 = sld [smem:[#allocation8 + $0x1]]
        %v1336 = vstv %s1335
        %v1337 = vadd.f32 %v1333, %v1336
        %v1338 = vadd.f32 %v1334, %v1336
        %v1339 = vadd.f32 %v1205, %v1249
        %v1340 = vadd.f32 %v1206, %v1250
        %v1341 = vmax.f32 %v1205, %v1249
        %v1342 = vmax.f32 %v1206, %v1250
        %v1343 = vadd.f32 %v1339, %v1293
        %v1344 = vadd.f32 %v1340, %v1294
        %v1345 = vmax.f32 %v1341, %v1293
        %v1346 = vmax.f32 %v1342, %v1294
        %v1347 = vadd.f32 %v1343, %v1337
        %v1348 = vadd.f32 %v1344, %v1338
        %v1349 = vmax.f32 %v1345, %v1337
        %v1350 = vmax.f32 %v1346, %v1338
        %v1351 = vmul.f32 %v1347, 0.25
        %v1352 = vmul.f32 %v1348, 0.25
        %v1355 = vcombine.low %v1351, %v1352
        %v1357 = vunpack.c.l.s4 1966171168
        %v1358 = vunpack.c.0.s8 %v1357
        %v1359 = vlaneseq
        %v1360 = vshrl.u32 %v1359, 7
        %v1361 = vsub.s32 %v1358, %v1360
        %v1362 = vrot.slane %v1355, %v1361
        %v1364 = vunpack.c.l.s4 1966171168
        %v1365 = vunpack.c.0.s8 %v1364
        %v1366 = vlaneseq
        %v1367 = vshrl.u32 %v1366, 7
        %v1368 = vsub.s32 %v1365, %v1367
        %v1369 = vrot.slane %v1362, %v1368
        %v1371 = vlaneseq
        %vm1372 = vcmp.ge.s32.totalorder %v1371, 0
        %vm1373 = vcmp.lt.s32.totalorder %v1371, 256
        %vm1374 = vmand %vm1372, %vm1373
        %1375 = vst.msk [vmem:[#allocation2] ss:$2 sm:$0x3] %vm1374, %v1369
        %v1378 = vcombine.low %v1349, %v1350
        %v1380 = vunpack.c.l.s4 1966171168
        %v1381 = vunpack.c.0.s8 %v1380
        %v1382 = vlaneseq
        %v1383 = vshrl.u32 %v1382, 7
        %v1384 = vsub.s32 %v1381, %v1383
        %v1385 = vrot.slane %v1378, %v1384
        %v1387 = vunpack.c.l.s4 1966171168
        %v1388 = vunpack.c.0.s8 %v1387
        %v1389 = vlaneseq
        %v1390 = vshrl.u32 %v1389, 7
        %v1391 = vsub.s32 %v1388, %v1390
        %v1392 = vrot.slane %v1385, %v1391
        %s1394 = scalar_lea.vmem [#allocation2], 1
        %1395 = vst.msk [vmem:[%s1394] ss:$2 sm:$0x3] %vm1374, %v1392
        %v1396 = vld [vmem:[#allocation2] sm:$0xf]
        %v1397 = vld [vmem:[%s5] sm:$0x3]
        %v1400 = vunpack.c.l.s4 1983009808
        %v1401 = vunpack.c.0.s8 %v1400
        %v1402 = vlaneseq
        %v1403 = vshrl.u32 %v1402, 7
        %v1404 = vsub.s32 %v1401, %v1403
        %v1405 = vrot.slane %v1396, %v1404
        %v1406 = vcombine.high %v1405, %v1405
        %1409 = vrot.lane.b32.xlu0 %v1405, 51
        %v1410 = vpop.permute.xlu0 %1409
        %1411 = vrot.lane.b32.xlu0 %v1406, 51
        %v1412 = vpop.permute.xlu0 %1411
        %vm1413 = vcmp.lt.s32.totalorder %v532, 51
        %v1414 = vsel %vm1413, %v1410, %v1412
        %v1415 = vsel %vm1413, %v1412, %v1410
        %vm1416 = vmand %vm564, %vm568
        %vm1417 = vmand %vm565, %vm569
        %v1418 = vsel %vm1416, %v1415, 0.0
        %v1419 = vsel %vm1417, %v1414, 0.0
        %1421 = vset.pattern.permute.xlu0 0
        %1422 = vperm.xlu0 %1421, %v1397
        %v1423 = vpop.permute.xlu0 %1422
        %v1425 = vmul.f32 %v1418, %v1423
        %v1426 = vmul.f32 %v1419, %v1423
        %1427 = vset.pattern.permute.xlu0 1
        %1428 = vperm.xlu0 %1427, %v1397
        %v1429 = vpop.permute.xlu0 %1428
        %v1431 = vmul.f32 %v1418, %v1429
        %v1432 = vmul.f32 %v1419, %v1429
        %1433 = vrot.lane.b32.xlu0 %v1405, 50
        %v1434 = vpop.permute.xlu0 %1433
        %1435 = vrot.lane.b32.xlu0 %v1406, 50
        %v1436 = vpop.permute.xlu0 %1435
        %vm1437 = vcmp.lt.s32.totalorder %v532, 50
        %v1438 = vsel %vm1437, %v1434, %v1436
        %v1439 = vsel %vm1437, %v1436, %v1434
        %vm1440 = vmand %vm564, %vm558
        %vm1441 = vmand %vm565, %vm559
        %v1442 = vsel %vm1440, %v1439, 0.0
        %v1443 = vsel %vm1441, %v1438, 0.0
        %1444 = vset.pattern.permute.xlu0 2
        %1445 = vperm.xlu0 %1444, %v1397
        %v1446 = vpop.permute.xlu0 %1445
        %v1448 = vmul.f32 %v1442, %v1446
        %v1449 = vmul.f32 %v1443, %v1446
        %1450 = vset.pattern.permute.xlu0 3
        %1451 = vperm.xlu0 %1450, %v1397
        %v1452 = vpop.permute.xlu0 %1451
        %v1454 = vmul.f32 %v1442, %v1452
        %v1455 = vmul.f32 %v1443, %v1452
        %v1456 = vadd.f32 %v1425, %v1448
        %v1457 = vadd.f32 %v1426, %v1449
        %v1458 = vadd.f32 %v1431, %v1454
        %v1459 = vadd.f32 %v1432, %v1455
        %1460 = vrot.lane.b32.xlu0 %v1405, 49
        %v1461 = vpop.permute.xlu0 %1460
        %1462 = vrot.lane.b32.xlu0 %v1406, 49
        %v1463 = vpop.permute.xlu0 %1462
        %vm1464 = vcmp.lt.s32.totalorder %v532, 49
        %v1465 = vsel %vm1464, %v1461, %v1463
        %v1466 = vsel %vm1464, %v1463, %v1461
        %vm1467 = vmand %vm564, %vm556
        %vm1468 = vmand %vm565, %vm557
        %v1469 = vsel %vm1467, %v1466, 0.0
        %v1470 = vsel %vm1468, %v1465, 0.0
        %1471 = vset.pattern.permute.xlu0 4
        %1472 = vperm.xlu0 %1471, %v1397
        %v1473 = vpop.permute.xlu0 %1472
        %v1475 = vmul.f32 %v1469, %v1473
        %v1476 = vmul.f32 %v1470, %v1473
        %1477 = vset.pattern.permute.xlu0 5
        %1478 = vperm.xlu0 %1477, %v1397
        %v1479 = vpop.permute.xlu0 %1478
        %v1481 = vmul.f32 %v1469, %v1479
        %v1482 = vmul.f32 %v1470, %v1479
        %v1483 = vadd.f32 %v1456, %v1475
        %v1484 = vadd.f32 %v1457, %v1476
        %v1485 = vadd.f32 %v1458, %v1481
        %v1486 = vadd.f32 %v1459, %v1482
        %1487 = vrot.lane.b32.xlu0 %v1405, 48
        %v1488 = vpop.permute.xlu0 %1487
        %1489 = vrot.lane.b32.xlu0 %v1406, 48
        %v1490 = vpop.permute.xlu0 %1489
        %vm1491 = vcmp.lt.s32.totalorder %v532, 48
        %v1492 = vsel %vm1491, %v1488, %v1490
        %v1493 = vsel %vm1491, %v1490, %v1488
        %v1494 = vsel %vm564, %v1493, 0.0
        %v1495 = vsel %vm565, %v1492, 0.0
        %1496 = vset.pattern.permute.xlu0 6
        %1497 = vperm.xlu0 %1496, %v1397
        %v1498 = vpop.permute.xlu0 %1497
        %v1500 = vmul.f32 %v1494, %v1498
        %v1501 = vmul.f32 %v1495, %v1498
        %1502 = vset.pattern.permute.xlu0 7
        %1503 = vperm.xlu0 %1502, %v1397
        %v1504 = vpop.permute.xlu0 %1503
        %v1506 = vmul.f32 %v1494, %v1504
        %v1507 = vmul.f32 %v1495, %v1504
        %v1508 = vadd.f32 %v1483, %v1500
        %v1509 = vadd.f32 %v1484, %v1501
        %v1510 = vadd.f32 %v1485, %v1506
        %v1511 = vadd.f32 %v1486, %v1507
        %1512 = vrot.lane.b32.xlu0 %v1405, 47
        %v1513 = vpop.permute.xlu0 %1512
        %1514 = vrot.lane.b32.xlu0 %v1406, 47
        %v1515 = vpop.permute.xlu0 %1514
        %vm1516 = vcmp.lt.s32.totalorder %v532, 47
        %v1517 = vsel %vm1516, %v1513, %v1515
        %v1518 = vsel %vm1516, %v1515, %v1513
        %vm1519 = vmand %vm564, %vm550
        %vm1520 = vmand %vm565, %vm551
        %v1521 = vsel %vm1519, %v1518, 0.0
        %v1522 = vsel %vm1520, %v1517, 0.0
        %1523 = vset.pattern.permute.xlu0 8
        %1524 = vperm.xlu0 %1523, %v1397
        %v1525 = vpop.permute.xlu0 %1524
        %v1527 = vmul.f32 %v1521, %v1525
        %v1528 = vmul.f32 %v1522, %v1525
        %1529 = vset.pattern.permute.xlu0 9
        %1530 = vperm.xlu0 %1529, %v1397
        %v1531 = vpop.permute.xlu0 %1530
        %v1533 = vmul.f32 %v1521, %v1531
        %v1534 = vmul.f32 %v1522, %v1531
        %v1535 = vadd.f32 %v1508, %v1527
        %v1536 = vadd.f32 %v1509, %v1528
        %v1537 = vadd.f32 %v1510, %v1533
        %v1538 = vadd.f32 %v1511, %v1534
        %1539 = vrot.lane.b32.xlu0 %v1405, 46
        %v1540 = vpop.permute.xlu0 %1539
        %1541 = vrot.lane.b32.xlu0 %v1406, 46
        %v1542 = vpop.permute.xlu0 %1541
        %vm1543 = vcmp.lt.s32.totalorder %v532, 46
        %v1544 = vsel %vm1543, %v1540, %v1542
        %v1545 = vsel %vm1543, %v1542, %v1540
        %vm1546 = vmand %vm564, %vm552
        %vm1547 = vmand %vm565, %vm553
        %v1548 = vsel %vm1546, %v1545, 0.0
        %v1549 = vsel %vm1547, %v1544, 0.0
        %1550 = vset.pattern.permute.xlu0 10
        %1551 = vperm.xlu0 %1550, %v1397
        %v1552 = vpop.permute.xlu0 %1551
        %v1554 = vmul.f32 %v1548, %v1552
        %v1555 = vmul.f32 %v1549, %v1552
        %1556 = vset.pattern.permute.xlu0 11
        %1557 = vperm.xlu0 %1556, %v1397
        %v1558 = vpop.permute.xlu0 %1557
        %v1560 = vmul.f32 %v1548, %v1558
        %v1561 = vmul.f32 %v1549, %v1558
        %v1562 = vadd.f32 %v1535, %v1554
        %v1563 = vadd.f32 %v1536, %v1555
        %v1564 = vadd.f32 %v1537, %v1560
        %v1565 = vadd.f32 %v1538, %v1561
        %1566 = vrot.lane.b32.xlu0 %v1405, 45
        %v1567 = vpop.permute.xlu0 %1566
        %1568 = vrot.lane.b32.xlu0 %v1406, 45
        %v1569 = vpop.permute.xlu0 %1568
        %vm1570 = vcmp.lt.s32.totalorder %v532, 45
        %v1571 = vsel %vm1570, %v1567, %v1569
        %v1572 = vsel %vm1570, %v1569, %v1567
        %vm1573 = vmand %vm564, %vm566
        %vm1574 = vmand %vm565, %vm567
        %v1575 = vsel %vm1573, %v1572, 0.0
        %v1576 = vsel %vm1574, %v1571, 0.0
        %1577 = vset.pattern.permute.xlu0 12
        %1578 = vperm.xlu0 %1577, %v1397
        %v1579 = vpop.permute.xlu0 %1578
        %v1581 = vmul.f32 %v1575, %v1579
        %v1582 = vmul.f32 %v1576, %v1579
        %1583 = vset.pattern.permute.xlu0 13
        %1584 = vperm.xlu0 %1583, %v1397
        %v1585 = vpop.permute.xlu0 %1584
        %v1587 = vmul.f32 %v1575, %v1585
        %v1588 = vmul.f32 %v1576, %v1585
        %v1589 = vadd.f32 %v1562, %v1581
        %v1590 = vadd.f32 %v1563, %v1582
        %v1591 = vadd.f32 %v1564, %v1587
        %v1592 = vadd.f32 %v1565, %v1588
        %1593 = vrot.lane.b32.xlu0 %v1405, 35
        %v1594 = vpop.permute.xlu0 %1593
        %1595 = vrot.lane.b32.xlu0 %v1406, 35
        %v1596 = vpop.permute.xlu0 %1595
        %vm1597 = vcmp.lt.s32.totalorder %v532, 35
        %v1598 = vsel %vm1597, %v1594, %v1596
        %v1599 = vsel %vm1597, %v1596, %v1594
        %vm1600 = vmand %vm546, %vm568
        %vm1601 = vmand %vm547, %vm569
        %v1602 = vsel %vm1600, %v1599, 0.0
        %v1603 = vsel %vm1601, %v1598, 0.0
        %1604 = vset.pattern.permute.xlu0 14
        %1605 = vperm.xlu0 %1604, %v1397
        %v1606 = vpop.permute.xlu0 %1605
        %v1608 = vmul.f32 %v1602, %v1606
        %v1609 = vmul.f32 %v1603, %v1606
        %1610 = vset.pattern.permute.xlu0 15
        %1611 = vperm.xlu0 %1610, %v1397
        %v1612 = vpop.permute.xlu0 %1611
        %v1614 = vmul.f32 %v1602, %v1612
        %v1615 = vmul.f32 %v1603, %v1612
        %v1616 = vadd.f32 %v1589, %v1608
        %v1617 = vadd.f32 %v1590, %v1609
        %v1618 = vadd.f32 %v1591, %v1614
        %v1619 = vadd.f32 %v1592, %v1615
        %1620 = vrot.lane.b32.xlu0 %v1405, 34
        %v1621 = vpop.permute.xlu0 %1620
        %1622 = vrot.lane.b32.xlu0 %v1406, 34
        %v1623 = vpop.permute.xlu0 %1622
        %v1624 = vsel %vm858, %v1621, %v1623
        %v1625 = vsel %vm858, %v1623, %v1621
        %v1626 = vsel %vm861, %v1625, 0.0
        %v1627 = vsel %vm862, %v1624, 0.0
        %1628 = vset.pattern.permute.xlu0 16
        %1629 = vperm.xlu0 %1628, %v1397
        %v1630 = vpop.permute.xlu0 %1629
        %v1632 = vmul.f32 %v1626, %v1630
        %v1633 = vmul.f32 %v1627, %v1630
        %1634 = vset.pattern.permute.xlu0 17
        %1635 = vperm.xlu0 %1634, %v1397
        %v1636 = vpop.permute.xlu0 %1635
        %v1638 = vmul.f32 %v1626, %v1636
        %v1639 = vmul.f32 %v1627, %v1636
        %v1640 = vadd.f32 %v1616, %v1632
        %v1641 = vadd.f32 %v1617, %v1633
        %v1642 = vadd.f32 %v1618, %v1638
        %v1643 = vadd.f32 %v1619, %v1639
        %1644 = vrot.lane.b32.xlu0 %v1405, 33
        %v1645 = vpop.permute.xlu0 %1644
        %1646 = vrot.lane.b32.xlu0 %v1406, 33
        %v1647 = vpop.permute.xlu0 %1646
        %vm1648 = vcmp.lt.s32.totalorder %v532, 33
        %v1649 = vsel %vm1648, %v1645, %v1647
        %v1650 = vsel %vm1648, %v1647, %v1645
        %vm1651 = vmand %vm546, %vm556
        %vm1652 = vmand %vm547, %vm557
        %v1653 = vsel %vm1651, %v1650, 0.0
        %v1654 = vsel %vm1652, %v1649, 0.0
        %1655 = vset.pattern.permute.xlu0 18
        %1656 = vperm.xlu0 %1655, %v1397
        %v1657 = vpop.permute.xlu0 %1656
        %v1659 = vmul.f32 %v1653, %v1657
        %v1660 = vmul.f32 %v1654, %v1657
        %1661 = vset.pattern.permute.xlu0 19
        %1662 = vperm.xlu0 %1661, %v1397
        %v1663 = vpop.permute.xlu0 %1662
        %v1665 = vmul.f32 %v1653, %v1663
        %v1666 = vmul.f32 %v1654, %v1663
        %v1667 = vadd.f32 %v1640, %v1659
        %v1668 = vadd.f32 %v1641, %v1660
        %v1669 = vadd.f32 %v1642, %v1665
        %v1670 = vadd.f32 %v1643, %v1666
        %1671 = vrot.lane.b32.xlu0 %v1405, 32
        %v1672 = vpop.permute.xlu0 %1671
        %1673 = vrot.lane.b32.xlu0 %v1406, 32
        %v1674 = vpop.permute.xlu0 %1673
        %v1675 = vsel %vm877, %v1672, %v1674
        %v1676 = vsel %vm877, %v1674, %v1672
        %v1677 = vsel %vm546, %v1676, 0.0
        %v1678 = vsel %vm547, %v1675, 0.0
        %1679 = vset.pattern.permute.xlu0 20
        %1680 = vperm.xlu0 %1679, %v1397
        %v1681 = vpop.permute.xlu0 %1680
        %v1683 = vmul.f32 %v1677, %v1681
        %v1684 = vmul.f32 %v1678, %v1681
        %1685 = vset.pattern.permute.xlu0 21
        %1686 = vperm.xlu0 %1685, %v1397
        %v1687 = vpop.permute.xlu0 %1686
        %v1689 = vmul.f32 %v1677, %v1687
        %v1690 = vmul.f32 %v1678, %v1687
        %v1691 = vadd.f32 %v1667, %v1683
        %v1692 = vadd.f32 %v1668, %v1684
        %v1693 = vadd.f32 %v1669, %v1689
        %v1694 = vadd.f32 %v1670, %v1690
        %1695 = vrot.lane.b32.xlu0 %v1405, 31
        %v1696 = vpop.permute.xlu0 %1695
        %1697 = vrot.lane.b32.xlu0 %v1406, 31
        %v1698 = vpop.permute.xlu0 %1697
        %vm1699 = vcmp.lt.s32.totalorder %v532, 31
        %v1700 = vsel %vm1699, %v1696, %v1698
        %v1701 = vsel %vm1699, %v1698, %v1696
        %vm1702 = vmand %vm546, %vm550
        %vm1703 = vmand %vm547, %vm551
        %v1704 = vsel %vm1702, %v1701, 0.0
        %v1705 = vsel %vm1703, %v1700, 0.0
        %1706 = vset.pattern.permute.xlu0 22
        %1707 = vperm.xlu0 %1706, %v1397
        %v1708 = vpop.permute.xlu0 %1707
        %v1710 = vmul.f32 %v1704, %v1708
        %v1711 = vmul.f32 %v1705, %v1708
        %1712 = vset.pattern.permute.xlu0 23
        %1713 = vperm.xlu0 %1712, %v1397
        %v1714 = vpop.permute.xlu0 %1713
        %v1716 = vmul.f32 %v1704, %v1714
        %v1717 = vmul.f32 %v1705, %v1714
        %v1718 = vadd.f32 %v1691, %v1710
        %v1719 = vadd.f32 %v1692, %v1711
        %v1720 = vadd.f32 %v1693, %v1716
        %v1721 = vadd.f32 %v1694, %v1717
        %1722 = vrot.lane.b32.xlu0 %v1405, 30
        %v1723 = vpop.permute.xlu0 %1722
        %1724 = vrot.lane.b32.xlu0 %v1406, 30
        %v1725 = vpop.permute.xlu0 %1724
        %v1726 = vsel %vm894, %v1723, %v1725
        %v1727 = vsel %vm894, %v1725, %v1723
        %v1728 = vsel %vm897, %v1727, 0.0
        %v1729 = vsel %vm898, %v1726, 0.0
        %1730 = vset.pattern.permute.xlu0 24
        %1731 = vperm.xlu0 %1730, %v1397
        %v1732 = vpop.permute.xlu0 %1731
        %v1734 = vmul.f32 %v1728, %v1732
        %v1735 = vmul.f32 %v1729, %v1732
        %1736 = vset.pattern.permute.xlu0 25
        %1737 = vperm.xlu0 %1736, %v1397
        %v1738 = vpop.permute.xlu0 %1737
        %v1740 = vmul.f32 %v1728, %v1738
        %v1741 = vmul.f32 %v1729, %v1738
        %v1742 = vadd.f32 %v1718, %v1734
        %v1743 = vadd.f32 %v1719, %v1735
        %v1744 = vadd.f32 %v1720, %v1740
        %v1745 = vadd.f32 %v1721, %v1741
        %1746 = vrot.lane.b32.xlu0 %v1405, 29
        %v1747 = vpop.permute.xlu0 %1746
        %1748 = vrot.lane.b32.xlu0 %v1406, 29
        %v1749 = vpop.permute.xlu0 %1748
        %vm1750 = vcmp.lt.s32.totalorder %v532, 29
        %v1751 = vsel %vm1750, %v1747, %v1749
        %v1752 = vsel %vm1750, %v1749, %v1747
        %vm1753 = vmand %vm546, %vm566
        %vm1754 = vmand %vm547, %vm567
        %v1755 = vsel %vm1753, %v1752, 0.0
        %v1756 = vsel %vm1754, %v1751, 0.0
        %1757 = vset.pattern.permute.xlu0 26
        %1758 = vperm.xlu0 %1757, %v1397
        %v1759 = vpop.permute.xlu0 %1758
        %v1761 = vmul.f32 %v1755, %v1759
        %v1762 = vmul.f32 %v1756, %v1759
        %1763 = vset.pattern.permute.xlu0 27
        %1764 = vperm.xlu0 %1763, %v1397
        %v1765 = vpop.permute.xlu0 %1764
        %v1767 = vmul.f32 %v1755, %v1765
        %v1768 = vmul.f32 %v1756, %v1765
        %v1769 = vadd.f32 %v1742, %v1761
        %v1770 = vadd.f32 %v1743, %v1762
        %v1771 = vadd.f32 %v1744, %v1767
        %v1772 = vadd.f32 %v1745, %v1768
        %1773 = vrot.lane.b32.xlu0 %v1405, 19
        %v1774 = vpop.permute.xlu0 %1773
        %1775 = vrot.lane.b32.xlu0 %v1406, 19
        %v1776 = vpop.permute.xlu0 %1775
        %vm1777 = vcmp.lt.s32.totalorder %v532, 19
        %v1778 = vsel %vm1777, %v1774, %v1776
        %v1779 = vsel %vm1777, %v1776, %v1774
        %vm1780 = vmand %vm544, %vm568
        %vm1781 = vmand %vm545, %vm569
        %v1782 = vsel %vm1780, %v1779, 0.0
        %v1783 = vsel %vm1781, %v1778, 0.0
        %1784 = vset.pattern.permute.xlu0 28
        %1785 = vperm.xlu0 %1784, %v1397
        %v1786 = vpop.permute.xlu0 %1785
        %v1788 = vmul.f32 %v1782, %v1786
        %v1789 = vmul.f32 %v1783, %v1786
        %1790 = vset.pattern.permute.xlu0 29
        %1791 = vperm.xlu0 %1790, %v1397
        %v1792 = vpop.permute.xlu0 %1791
        %v1794 = vmul.f32 %v1782, %v1792
        %v1795 = vmul.f32 %v1783, %v1792
        %v1796 = vadd.f32 %v1769, %v1788
        %v1797 = vadd.f32 %v1770, %v1789
        %v1798 = vadd.f32 %v1771, %v1794
        %v1799 = vadd.f32 %v1772, %v1795
        %1800 = vrot.lane.b32.xlu0 %v1405, 18
        %v1801 = vpop.permute.xlu0 %1800
        %1802 = vrot.lane.b32.xlu0 %v1406, 18
        %v1803 = vpop.permute.xlu0 %1802
        %vm1804 = vcmp.lt.s32.totalorder %v532, 18
        %v1805 = vsel %vm1804, %v1801, %v1803
        %v1806 = vsel %vm1804, %v1803, %v1801
        %vm1807 = vmand %vm544, %vm558
        %vm1808 = vmand %vm545, %vm559
        %v1809 = vsel %vm1807, %v1806, 0.0
        %v1810 = vsel %vm1808, %v1805, 0.0
        %1811 = vset.pattern.permute.xlu0 30
        %1812 = vperm.xlu0 %1811, %v1397
        %v1813 = vpop.permute.xlu0 %1812
        %v1815 = vmul.f32 %v1809, %v1813
        %v1816 = vmul.f32 %v1810, %v1813
        %1817 = vset.pattern.permute.xlu0 31
        %1818 = vperm.xlu0 %1817, %v1397
        %v1819 = vpop.permute.xlu0 %1818
        %v1821 = vmul.f32 %v1809, %v1819
        %v1822 = vmul.f32 %v1810, %v1819
        %v1823 = vadd.f32 %v1796, %v1815
        %v1824 = vadd.f32 %v1797, %v1816
        %v1825 = vadd.f32 %v1798, %v1821
        %v1826 = vadd.f32 %v1799, %v1822
        %1827 = vrot.lane.b32.xlu0 %v1405, 17
        %v1828 = vpop.permute.xlu0 %1827
        %1829 = vrot.lane.b32.xlu0 %v1406, 17
        %v1830 = vpop.permute.xlu0 %1829
        %v1831 = vsel %vm578, %v1828, %v1830
        %v1832 = vsel %vm578, %v1830, %v1828
        %v1833 = vsel %vm581, %v1832, 0.0
        %v1834 = vsel %vm582, %v1831, 0.0
        %1835 = vset.pattern.permute.xlu0 32
        %1836 = vperm.xlu0 %1835, %v1397
        %v1837 = vpop.permute.xlu0 %1836
        %v1839 = vmul.f32 %v1833, %v1837
        %v1840 = vmul.f32 %v1834, %v1837
        %1841 = vset.pattern.permute.xlu0 33
        %1842 = vperm.xlu0 %1841, %v1397
        %v1843 = vpop.permute.xlu0 %1842
        %v1845 = vmul.f32 %v1833, %v1843
        %v1846 = vmul.f32 %v1834, %v1843
        %v1847 = vadd.f32 %v1823, %v1839
        %v1848 = vadd.f32 %v1824, %v1840
        %v1849 = vadd.f32 %v1825, %v1845
        %v1850 = vadd.f32 %v1826, %v1846
        %1851 = vrot.lane.b32.xlu0 %v1405, 16
        %v1852 = vpop.permute.xlu0 %1851
        %1853 = vrot.lane.b32.xlu0 %v1406, 16
        %v1854 = vpop.permute.xlu0 %1853
        %v1855 = vsel %vm596, %v1852, %v1854
        %v1856 = vsel %vm596, %v1854, %v1852
        %v1857 = vsel %vm544, %v1856, 0.0
        %v1858 = vsel %vm545, %v1855, 0.0
        %1859 = vset.pattern.permute.xlu0 34
        %1860 = vperm.xlu0 %1859, %v1397
        %v1861 = vpop.permute.xlu0 %1860
        %v1863 = vmul.f32 %v1857, %v1861
        %v1864 = vmul.f32 %v1858, %v1861
        %1865 = vset.pattern.permute.xlu0 35
        %1866 = vperm.xlu0 %1865, %v1397
        %v1867 = vpop.permute.xlu0 %1866
        %v1869 = vmul.f32 %v1857, %v1867
        %v1870 = vmul.f32 %v1858, %v1867
        %v1871 = vadd.f32 %v1847, %v1863
        %v1872 = vadd.f32 %v1848, %v1864
        %v1873 = vadd.f32 %v1849, %v1869
        %v1874 = vadd.f32 %v1850, %v1870
        %1875 = vrot.lane.b32.xlu0 %v1405, 15
        %v1876 = vpop.permute.xlu0 %1875
        %1877 = vrot.lane.b32.xlu0 %v1406, 15
        %v1878 = vpop.permute.xlu0 %1877
        %v1879 = vsel %vm613, %v1876, %v1878
        %v1880 = vsel %vm613, %v1878, %v1876
        %v1881 = vsel %vm616, %v1880, 0.0
        %v1882 = vsel %vm617, %v1879, 0.0
        %1883 = vset.pattern.permute.xlu0 36
        %1884 = vperm.xlu0 %1883, %v1397
        %v1885 = vpop.permute.xlu0 %1884
        %v1887 = vmul.f32 %v1881, %v1885
        %v1888 = vmul.f32 %v1882, %v1885
        %1889 = vset.pattern.permute.xlu0 37
        %1890 = vperm.xlu0 %1889, %v1397
        %v1891 = vpop.permute.xlu0 %1890
        %v1893 = vmul.f32 %v1881, %v1891
        %v1894 = vmul.f32 %v1882, %v1891
        %v1895 = vadd.f32 %v1871, %v1887
        %v1896 = vadd.f32 %v1872, %v1888
        %v1897 = vadd.f32 %v1873, %v1893
        %v1898 = vadd.f32 %v1874, %v1894
        %1899 = vrot.lane.b32.xlu0 %v1405, 14
        %v1900 = vpop.permute.xlu0 %1899
        %1901 = vrot.lane.b32.xlu0 %v1406, 14
        %v1902 = vpop.permute.xlu0 %1901
        %vm1903 = vcmp.lt.s32.totalorder %v532, 14
        %v1904 = vsel %vm1903, %v1900, %v1902
        %v1905 = vsel %vm1903, %v1902, %v1900
        %vm1906 = vmand %vm544, %vm552
        %vm1907 = vmand %vm545, %vm553
        %v1908 = vsel %vm1906, %v1905, 0.0
        %v1909 = vsel %vm1907, %v1904, 0.0
        %1910 = vset.pattern.permute.xlu0 38
        %1911 = vperm.xlu0 %1910, %v1397
        %v1912 = vpop.permute.xlu0 %1911
        %v1914 = vmul.f32 %v1908, %v1912
        %v1915 = vmul.f32 %v1909, %v1912
        %1916 = vset.pattern.permute.xlu0 39
        %1917 = vperm.xlu0 %1916, %v1397
        %v1918 = vpop.permute.xlu0 %1917
        %v1920 = vmul.f32 %v1908, %v1918
        %v1921 = vmul.f32 %v1909, %v1918
        %v1922 = vadd.f32 %v1895, %v1914
        %v1923 = vadd.f32 %v1896, %v1915
        %v1924 = vadd.f32 %v1897, %v1920
        %v1925 = vadd.f32 %v1898, %v1921
        %1926 = vrot.lane.b32.xlu0 %v1405, 13
        %v1927 = vpop.permute.xlu0 %1926
        %1928 = vrot.lane.b32.xlu0 %v1406, 13
        %v1929 = vpop.permute.xlu0 %1928
        %vm1930 = vcmp.lt.s32.totalorder %v532, 13
        %v1931 = vsel %vm1930, %v1927, %v1929
        %v1932 = vsel %vm1930, %v1929, %v1927
        %vm1933 = vmand %vm544, %vm566
        %vm1934 = vmand %vm545, %vm567
        %v1935 = vsel %vm1933, %v1932, 0.0
        %v1936 = vsel %vm1934, %v1931, 0.0
        %1937 = vset.pattern.permute.xlu0 40
        %1938 = vperm.xlu0 %1937, %v1397
        %v1939 = vpop.permute.xlu0 %1938
        %v1941 = vmul.f32 %v1935, %v1939
        %v1942 = vmul.f32 %v1936, %v1939
        %1943 = vset.pattern.permute.xlu0 41
        %1944 = vperm.xlu0 %1943, %v1397
        %v1945 = vpop.permute.xlu0 %1944
        %v1947 = vmul.f32 %v1935, %v1945
        %v1948 = vmul.f32 %v1936, %v1945
        %v1949 = vadd.f32 %v1922, %v1941
        %v1950 = vadd.f32 %v1923, %v1942
        %v1951 = vadd.f32 %v1924, %v1947
        %v1952 = vadd.f32 %v1925, %v1948
        %1953 = vrot.lane.b32.xlu0 %v1405, 3
        %v1954 = vpop.permute.xlu0 %1953
        %1955 = vrot.lane.b32.xlu0 %v1406, 3
        %v1956 = vpop.permute.xlu0 %1955
        %vm1957 = vcmp.lt.s32.totalorder %v532, 3
        %v1958 = vsel %vm1957, %v1954, %v1956
        %v1959 = vsel %vm1957, %v1956, %v1954
        %v1960 = vsel %vm568, %v1959, 0.0
        %v1961 = vsel %vm569, %v1958, 0.0
        %1962 = vset.pattern.permute.xlu0 42
        %1963 = vperm.xlu0 %1962, %v1397
        %v1964 = vpop.permute.xlu0 %1963
        %v1966 = vmul.f32 %v1960, %v1964
        %v1967 = vmul.f32 %v1961, %v1964
        %1968 = vset.pattern.permute.xlu0 43
        %1969 = vperm.xlu0 %1968, %v1397
        %v1970 = vpop.permute.xlu0 %1969
        %v1972 = vmul.f32 %v1960, %v1970
        %v1973 = vmul.f32 %v1961, %v1970
        %v1974 = vadd.f32 %v1949, %v1966
        %v1975 = vadd.f32 %v1950, %v1967
        %v1976 = vadd.f32 %v1951, %v1972
        %v1977 = vadd.f32 %v1952, %v1973
        %1978 = vrot.lane.b32.xlu0 %v1405, 2
        %v1979 = vpop.permute.xlu0 %1978
        %1980 = vrot.lane.b32.xlu0 %v1406, 2
        %v1981 = vpop.permute.xlu0 %1980
        %v1982 = vsel %vm949, %v1979, %v1981
        %v1983 = vsel %vm949, %v1981, %v1979
        %v1984 = vsel %vm558, %v1983, 0.0
        %v1985 = vsel %vm559, %v1982, 0.0
        %1986 = vset.pattern.permute.xlu0 44
        %1987 = vperm.xlu0 %1986, %v1397
        %v1988 = vpop.permute.xlu0 %1987
        %v1990 = vmul.f32 %v1984, %v1988
        %v1991 = vmul.f32 %v1985, %v1988
        %1992 = vset.pattern.permute.xlu0 45
        %1993 = vperm.xlu0 %1992, %v1397
        %v1994 = vpop.permute.xlu0 %1993
        %v1996 = vmul.f32 %v1984, %v1994
        %v1997 = vmul.f32 %v1985, %v1994
        %v1998 = vadd.f32 %v1974, %v1990
        %v1999 = vadd.f32 %v1975, %v1991
        %v2000 = vadd.f32 %v1976, %v1996
        %v2001 = vadd.f32 %v1977, %v1997
        %2002 = vrot.lane.b32.xlu0 %v1405, 1
        %v2003 = vpop.permute.xlu0 %2002
        %2004 = vrot.lane.b32.xlu0 %v1406, 1
        %v2005 = vpop.permute.xlu0 %2004
        %v2006 = vsel %vm632, %v2003, %v2005
        %v2007 = vsel %vm632, %v2005, %v2003
        %v2008 = vsel %vm556, %v2007, 0.0
        %v2009 = vsel %vm557, %v2006, 0.0
        %2010 = vset.pattern.permute.xlu0 46
        %2011 = vperm.xlu0 %2010, %v1397
        %v2012 = vpop.permute.xlu0 %2011
        %v2014 = vmul.f32 %v2008, %v2012
        %v2015 = vmul.f32 %v2009, %v2012
        %2016 = vset.pattern.permute.xlu0 47
        %2017 = vperm.xlu0 %2016, %v1397
        %v2018 = vpop.permute.xlu0 %2017
        %v2020 = vmul.f32 %v2008, %v2018
        %v2021 = vmul.f32 %v2009, %v2018
        %v2022 = vadd.f32 %v1998, %v2014
        %v2023 = vadd.f32 %v1999, %v2015
        %v2024 = vadd.f32 %v2000, %v2020
        %v2025 = vadd.f32 %v2001, %v2021
        %2026 = vset.pattern.permute.xlu0 48
        %2027 = vperm.xlu0 %2026, %v1397
        %v2028 = vpop.permute.xlu0 %2027
        %v2030 = vunpack.c.l.s4 269488144
        %v2031 = vunpack.c.0.s8 %v2030
        %v2032 = vlaneseq
        %v2033 = vshrl.u32 %v2032, 7
        %v2034 = vsub.s32 %v2031, %v2033
        %v2035 = vrot.slane %v2028, %v2034
        %v2037 = vmul.f32 %v1396, %v2035
        %2038 = vset.pattern.permute.xlu0 49
        %2039 = vperm.xlu0 %2038, %v1397
        %v2040 = vpop.permute.xlu0 %2039
        %v2042 = vunpack.c.l.s4 269488144
        %v2043 = vunpack.c.0.s8 %v2042
        %v2044 = vlaneseq
        %v2045 = vshrl.u32 %v2044, 7
        %v2046 = vsub.s32 %v2043, %v2045
        %v2047 = vrot.slane %v2040, %v2046
        %v2049 = vmul.f32 %v1396, %v2047
        %v2052 = vunpack.c.l.s4 1983009808
        %v2053 = vunpack.c.0.s8 %v2052
        %v2054 = vlaneseq
        %v2055 = vshrl.u32 %v2054, 7
        %v2056 = vsub.s32 %v2053, %v2055
        %v2057 = vrot.slane %v2037, %v2056
        %v2058 = vcombine.high %v2057, %v2057
        %v2061 = vadd.f32 %v2022, %v2057
        %v2062 = vadd.f32 %v2023, %v2058
        %v2065 = vunpack.c.l.s4 1983009808
        %v2066 = vunpack.c.0.s8 %v2065
        %v2067 = vlaneseq
        %v2068 = vshrl.u32 %v2067, 7
        %v2069 = vsub.s32 %v2066, %v2068
        %v2070 = vrot.slane %v2049, %v2069
        %v2071 = vcombine.high %v2070, %v2070
        %v2074 = vadd.f32 %v2024, %v2070
        %v2075 = vadd.f32 %v2025, %v2071
        %2076 = vrot.lane.b32.xlu0 %v1405, 127
        %v2077 = vpop.permute.xlu0 %2076
        %2078 = vrot.lane.b32.xlu0 %v1406, 127
        %v2079 = vpop.permute.xlu0 %2078
        %v2080 = vsel %vm666, %v2077, %v2079
        %v2081 = vsel %vm666, %v2079, %v2077
        %v2082 = vsel %vm550, %v2080, 0.0
        %v2083 = vsel %vm551, %v2081, 0.0
        %2084 = vset.pattern.permute.xlu0 50
        %2085 = vperm.xlu0 %2084, %v1397
        %v2086 = vpop.permute.xlu0 %2085
        %v2088 = vmul.f32 %v2082, %v2086
        %v2089 = vmul.f32 %v2083, %v2086
        %2090 = vset.pattern.permute.xlu0 51
        %2091 = vperm.xlu0 %2090, %v1397
        %v2092 = vpop.permute.xlu0 %2091
        %v2094 = vmul.f32 %v2082, %v2092
        %v2095 = vmul.f32 %v2083, %v2092
        %v2096 = vadd.f32 %v2061, %v2088
        %v2097 = vadd.f32 %v2062, %v2089
        %v2098 = vadd.f32 %v2074, %v2094
        %v2099 = vadd.f32 %v2075, %v2095
        %2100 = vrot.lane.b32.xlu0 %v1405, 126
        %v2101 = vpop.permute.xlu0 %2100
        %2102 = vrot.lane.b32.xlu0 %v1406, 126
        %v2103 = vpop.permute.xlu0 %2102
        %v2104 = vsel %vm974, %v2101, %v2103
        %v2105 = vsel %vm974, %v2103, %v2101
        %v2106 = vsel %vm552, %v2104, 0.0
        %v2107 = vsel %vm553, %v2105, 0.0
        %2108 = vset.pattern.permute.xlu0 52
        %2109 = vperm.xlu0 %2108, %v1397
        %v2110 = vpop.permute.xlu0 %2109
        %v2112 = vmul.f32 %v2106, %v2110
        %v2113 = vmul.f32 %v2107, %v2110
        %2114 = vset.pattern.permute.xlu0 53
        %2115 = vperm.xlu0 %2114, %v1397
        %v2116 = vpop.permute.xlu0 %2115
        %v2118 = vmul.f32 %v2106, %v2116
        %v2119 = vmul.f32 %v2107, %v2116
        %v2120 = vadd.f32 %v2096, %v2112
        %v2121 = vadd.f32 %v2097, %v2113
        %v2122 = vadd.f32 %v2098, %v2118
        %v2123 = vadd.f32 %v2099, %v2119
        %2124 = vrot.lane.b32.xlu0 %v1405, 125
        %v2125 = vpop.permute.xlu0 %2124
        %2126 = vrot.lane.b32.xlu0 %v1406, 125
        %v2127 = vpop.permute.xlu0 %2126
        %vm2128 = vcmp.lt.s32.totalorder %v532, 125
        %v2129 = vsel %vm2128, %v2125, %v2127
        %v2130 = vsel %vm2128, %v2127, %v2125
        %v2131 = vsel %vm566, %v2129, 0.0
        %v2132 = vsel %vm567, %v2130, 0.0
        %2133 = vset.pattern.permute.xlu0 54
        %2134 = vperm.xlu0 %2133, %v1397
        %v2135 = vpop.permute.xlu0 %2134
        %v2137 = vmul.f32 %v2131, %v2135
        %v2138 = vmul.f32 %v2132, %v2135
        %2139 = vset.pattern.permute.xlu0 55
        %2140 = vperm.xlu0 %2139, %v1397
        %v2141 = vpop.permute.xlu0 %2140
        %v2143 = vmul.f32 %v2131, %v2141
        %v2144 = vmul.f32 %v2132, %v2141
        %v2145 = vadd.f32 %v2120, %v2137
        %v2146 = vadd.f32 %v2121, %v2138
        %v2147 = vadd.f32 %v2122, %v2143
        %v2148 = vadd.f32 %v2123, %v2144
        %2149 = vrot.lane.b32.xlu0 %v1405, 115
        %v2150 = vpop.permute.xlu0 %2149
        %2151 = vrot.lane.b32.xlu0 %v1406, 115
        %v2152 = vpop.permute.xlu0 %2151
        %vm2153 = vcmp.lt.s32.totalorder %v532, 115
        %v2154 = vsel %vm2153, %v2150, %v2152
        %v2155 = vsel %vm2153, %v2152, %v2150
        %vm2156 = vmand %vm538, %vm568
        %vm2157 = vmand %vm539, %vm569
        %v2158 = vsel %vm2156, %v2154, 0.0
        %v2159 = vsel %vm2157, %v2155, 0.0
        %2160 = vset.pattern.permute.xlu0 56
        %2161 = vperm.xlu0 %2160, %v1397
        %v2162 = vpop.permute.xlu0 %2161
        %v2164 = vmul.f32 %v2158, %v2162
        %v2165 = vmul.f32 %v2159, %v2162
        %2166 = vset.pattern.permute.xlu0 57
        %2167 = vperm.xlu0 %2166, %v1397
        %v2168 = vpop.permute.xlu0 %2167
        %v2170 = vmul.f32 %v2158, %v2168
        %v2171 = vmul.f32 %v2159, %v2168
        %v2172 = vadd.f32 %v2145, %v2164
        %v2173 = vadd.f32 %v2146, %v2165
        %v2174 = vadd.f32 %v2147, %v2170
        %v2175 = vadd.f32 %v2148, %v2171
        %2176 = vrot.lane.b32.xlu0 %v1405, 114
        %v2177 = vpop.permute.xlu0 %2176
        %2178 = vrot.lane.b32.xlu0 %v1406, 114
        %v2179 = vpop.permute.xlu0 %2178
        %vm2180 = vcmp.lt.s32.totalorder %v532, 114
        %v2181 = vsel %vm2180, %v2177, %v2179
        %v2182 = vsel %vm2180, %v2179, %v2177
        %vm2183 = vmand %vm538, %vm558
        %vm2184 = vmand %vm539, %vm559
        %v2185 = vsel %vm2183, %v2181, 0.0
        %v2186 = vsel %vm2184, %v2182, 0.0
        %2187 = vset.pattern.permute.xlu0 58
        %2188 = vperm.xlu0 %2187, %v1397
        %v2189 = vpop.permute.xlu0 %2188
        %v2191 = vmul.f32 %v2185, %v2189
        %v2192 = vmul.f32 %v2186, %v2189
        %2193 = vset.pattern.permute.xlu0 59
        %2194 = vperm.xlu0 %2193, %v1397
        %v2195 = vpop.permute.xlu0 %2194
        %v2197 = vmul.f32 %v2185, %v2195
        %v2198 = vmul.f32 %v2186, %v2195
        %v2199 = vadd.f32 %v2172, %v2191
        %v2200 = vadd.f32 %v2173, %v2192
        %v2201 = vadd.f32 %v2174, %v2197
        %v2202 = vadd.f32 %v2175, %v2198
        %2203 = vrot.lane.b32.xlu0 %v1405, 113
        %v2204 = vpop.permute.xlu0 %2203
        %2205 = vrot.lane.b32.xlu0 %v1406, 113
        %v2206 = vpop.permute.xlu0 %2205
        %v2207 = vsel %vm683, %v2204, %v2206
        %v2208 = vsel %vm683, %v2206, %v2204
        %v2209 = vsel %vm686, %v2207, 0.0
        %v2210 = vsel %vm687, %v2208, 0.0
        %2211 = vset.pattern.permute.xlu0 60
        %2212 = vperm.xlu0 %2211, %v1397
        %v2213 = vpop.permute.xlu0 %2212
        %v2215 = vmul.f32 %v2209, %v2213
        %v2216 = vmul.f32 %v2210, %v2213
        %2217 = vset.pattern.permute.xlu0 61
        %2218 = vperm.xlu0 %2217, %v1397
        %v2219 = vpop.permute.xlu0 %2218
        %v2221 = vmul.f32 %v2209, %v2219
        %v2222 = vmul.f32 %v2210, %v2219
        %v2223 = vadd.f32 %v2199, %v2215
        %v2224 = vadd.f32 %v2200, %v2216
        %v2225 = vadd.f32 %v2201, %v2221
        %v2226 = vadd.f32 %v2202, %v2222
        %2227 = vrot.lane.b32.xlu0 %v1405, 112
        %v2228 = vpop.permute.xlu0 %2227
        %2229 = vrot.lane.b32.xlu0 %v1406, 112
        %v2230 = vpop.permute.xlu0 %2229
        %v2231 = vsel %vm702, %v2228, %v2230
        %v2232 = vsel %vm702, %v2230, %v2228
        %v2233 = vsel %vm538, %v2231, 0.0
        %v2234 = vsel %vm539, %v2232, 0.0
        %2235 = vset.pattern.permute.xlu0 62
        %2236 = vperm.xlu0 %2235, %v1397
        %v2237 = vpop.permute.xlu0 %2236
        %v2239 = vmul.f32 %v2233, %v2237
        %v2240 = vmul.f32 %v2234, %v2237
        %2241 = vset.pattern.permute.xlu0 63
        %2242 = vperm.xlu0 %2241, %v1397
        %v2243 = vpop.permute.xlu0 %2242
        %v2245 = vmul.f32 %v2233, %v2243
        %v2246 = vmul.f32 %v2234, %v2243
        %v2247 = vadd.f32 %v2223, %v2239
        %v2248 = vadd.f32 %v2224, %v2240
        %v2249 = vadd.f32 %v2225, %v2245
        %v2250 = vadd.f32 %v2226, %v2246
        %2251 = vrot.lane.b32.xlu0 %v1405, 111
        %v2252 = vpop.permute.xlu0 %2251
        %2253 = vrot.lane.b32.xlu0 %v1406, 111
        %v2254 = vpop.permute.xlu0 %2253
        %v2255 = vsel %vm719, %v2252, %v2254
        %v2256 = vsel %vm719, %v2254, %v2252
        %v2257 = vsel %vm722, %v2255, 0.0
        %v2258 = vsel %vm723, %v2256, 0.0
        %2259 = vset.pattern.permute.xlu0 64
        %2260 = vperm.xlu0 %2259, %v1397
        %v2261 = vpop.permute.xlu0 %2260
        %v2263 = vmul.f32 %v2257, %v2261
        %v2264 = vmul.f32 %v2258, %v2261
        %2265 = vset.pattern.permute.xlu0 65
        %2266 = vperm.xlu0 %2265, %v1397
        %v2267 = vpop.permute.xlu0 %2266
        %v2269 = vmul.f32 %v2257, %v2267
        %v2270 = vmul.f32 %v2258, %v2267
        %v2271 = vadd.f32 %v2247, %v2263
        %v2272 = vadd.f32 %v2248, %v2264
        %v2273 = vadd.f32 %v2249, %v2269
        %v2274 = vadd.f32 %v2250, %v2270
        %2275 = vrot.lane.b32.xlu0 %v1405, 110
        %v2276 = vpop.permute.xlu0 %2275
        %2277 = vrot.lane.b32.xlu0 %v1406, 110
        %v2278 = vpop.permute.xlu0 %2277
        %vm2279 = vcmp.lt.s32.totalorder %v532, 110
        %v2280 = vsel %vm2279, %v2276, %v2278
        %v2281 = vsel %vm2279, %v2278, %v2276
        %vm2282 = vmand %vm538, %vm552
        %vm2283 = vmand %vm539, %vm553
        %v2284 = vsel %vm2282, %v2280, 0.0
        %v2285 = vsel %vm2283, %v2281, 0.0
        %2286 = vset.pattern.permute.xlu0 66
        %2287 = vperm.xlu0 %2286, %v1397
        %v2288 = vpop.permute.xlu0 %2287
        %v2290 = vmul.f32 %v2284, %v2288
        %v2291 = vmul.f32 %v2285, %v2288
        %2292 = vset.pattern.permute.xlu0 67
        %2293 = vperm.xlu0 %2292, %v1397
        %v2294 = vpop.permute.xlu0 %2293
        %v2296 = vmul.f32 %v2284, %v2294
        %v2297 = vmul.f32 %v2285, %v2294
        %v2298 = vadd.f32 %v2271, %v2290
        %v2299 = vadd.f32 %v2272, %v2291
        %v2300 = vadd.f32 %v2273, %v2296
        %v2301 = vadd.f32 %v2274, %v2297
        %2302 = vrot.lane.b32.xlu0 %v1405, 109
        %v2303 = vpop.permute.xlu0 %2302
        %2304 = vrot.lane.b32.xlu0 %v1406, 109
        %v2305 = vpop.permute.xlu0 %2304
        %vm2306 = vcmp.lt.s32.totalorder %v532, 109
        %v2307 = vsel %vm2306, %v2303, %v2305
        %v2308 = vsel %vm2306, %v2305, %v2303
        %vm2309 = vmand %vm538, %vm566
        %vm2310 = vmand %vm539, %vm567
        %v2311 = vsel %vm2309, %v2307, 0.0
        %v2312 = vsel %vm2310, %v2308, 0.0
        %2313 = vset.pattern.permute.xlu0 68
        %2314 = vperm.xlu0 %2313, %v1397
        %v2315 = vpop.permute.xlu0 %2314
        %v2317 = vmul.f32 %v2311, %v2315
        %v2318 = vmul.f32 %v2312, %v2315
        %2319 = vset.pattern.permute.xlu0 69
        %2320 = vperm.xlu0 %2319, %v1397
        %v2321 = vpop.permute.xlu0 %2320
        %v2323 = vmul.f32 %v2311, %v2321
        %v2324 = vmul.f32 %v2312, %v2321
        %v2325 = vadd.f32 %v2298, %v2317
        %v2326 = vadd.f32 %v2299, %v2318
        %v2327 = vadd.f32 %v2300, %v2323
        %v2328 = vadd.f32 %v2301, %v2324
        %2329 = vrot.lane.b32.xlu0 %v1405, 99
        %v2330 = vpop.permute.xlu0 %2329
        %2331 = vrot.lane.b32.xlu0 %v1406, 99
        %v2332 = vpop.permute.xlu0 %2331
        %vm2333 = vcmp.lt.s32.totalorder %v532, 99
        %v2334 = vsel %vm2333, %v2330, %v2332
        %v2335 = vsel %vm2333, %v2332, %v2330
        %vm2336 = vmand %vm540, %vm568
        %vm2337 = vmand %vm541, %vm569
        %v2338 = vsel %vm2336, %v2334, 0.0
        %v2339 = vsel %vm2337, %v2335, 0.0
        %2340 = vset.pattern.permute.xlu0 70
        %2341 = vperm.xlu0 %2340, %v1397
        %v2342 = vpop.permute.xlu0 %2341
        %v2344 = vmul.f32 %v2338, %v2342
        %v2345 = vmul.f32 %v2339, %v2342
        %2346 = vset.pattern.permute.xlu0 71
        %2347 = vperm.xlu0 %2346, %v1397
        %v2348 = vpop.permute.xlu0 %2347
        %v2350 = vmul.f32 %v2338, %v2348
        %v2351 = vmul.f32 %v2339, %v2348
        %v2352 = vadd.f32 %v2325, %v2344
        %v2353 = vadd.f32 %v2326, %v2345
        %v2354 = vadd.f32 %v2327, %v2350
        %v2355 = vadd.f32 %v2328, %v2351
        %2356 = vrot.lane.b32.xlu0 %v1405, 98
        %v2357 = vpop.permute.xlu0 %2356
        %2358 = vrot.lane.b32.xlu0 %v1406, 98
        %v2359 = vpop.permute.xlu0 %2358
        %v2360 = vsel %vm1027, %v2357, %v2359
        %v2361 = vsel %vm1027, %v2359, %v2357
        %v2362 = vsel %vm1030, %v2360, 0.0
        %v2363 = vsel %vm1031, %v2361, 0.0
        %2364 = vset.pattern.permute.xlu0 72
        %2365 = vperm.xlu0 %2364, %v1397
        %v2366 = vpop.permute.xlu0 %2365
        %v2368 = vmul.f32 %v2362, %v2366
        %v2369 = vmul.f32 %v2363, %v2366
        %2370 = vset.pattern.permute.xlu0 73
        %2371 = vperm.xlu0 %2370, %v1397
        %v2372 = vpop.permute.xlu0 %2371
        %v2374 = vmul.f32 %v2362, %v2372
        %v2375 = vmul.f32 %v2363, %v2372
        %v2376 = vadd.f32 %v2352, %v2368
        %v2377 = vadd.f32 %v2353, %v2369
        %v2378 = vadd.f32 %v2354, %v2374
        %v2379 = vadd.f32 %v2355, %v2375
        %2380 = vrot.lane.b32.xlu0 %v1405, 97
        %v2381 = vpop.permute.xlu0 %2380
        %2382 = vrot.lane.b32.xlu0 %v1406, 97
        %v2383 = vpop.permute.xlu0 %2382
        %vm2384 = vcmp.lt.s32.totalorder %v532, 97
        %v2385 = vsel %vm2384, %v2381, %v2383
        %v2386 = vsel %vm2384, %v2383, %v2381
        %vm2387 = vmand %vm540, %vm556
        %vm2388 = vmand %vm541, %vm557
        %v2389 = vsel %vm2387, %v2385, 0.0
        %v2390 = vsel %vm2388, %v2386, 0.0
        %2391 = vset.pattern.permute.xlu0 74
        %2392 = vperm.xlu0 %2391, %v1397
        %v2393 = vpop.permute.xlu0 %2392
        %v2395 = vmul.f32 %v2389, %v2393
        %v2396 = vmul.f32 %v2390, %v2393
        %2397 = vset.pattern.permute.xlu0 75
        %2398 = vperm.xlu0 %2397, %v1397
        %v2399 = vpop.permute.xlu0 %2398
        %v2401 = vmul.f32 %v2389, %v2399
        %v2402 = vmul.f32 %v2390, %v2399
        %v2403 = vadd.f32 %v2376, %v2395
        %v2404 = vadd.f32 %v2377, %v2396
        %v2405 = vadd.f32 %v2378, %v2401
        %v2406 = vadd.f32 %v2379, %v2402
        %2407 = vrot.lane.b32.xlu0 %v1405, 96
        %v2408 = vpop.permute.xlu0 %2407
        %2409 = vrot.lane.b32.xlu0 %v1406, 96
        %v2410 = vpop.permute.xlu0 %2409
        %v2411 = vsel %vm1046, %v2408, %v2410
        %v2412 = vsel %vm1046, %v2410, %v2408
        %v2413 = vsel %vm540, %v2411, 0.0
        %v2414 = vsel %vm541, %v2412, 0.0
        %2415 = vset.pattern.permute.xlu0 76
        %2416 = vperm.xlu0 %2415, %v1397
        %v2417 = vpop.permute.xlu0 %2416
        %v2419 = vmul.f32 %v2413, %v2417
        %v2420 = vmul.f32 %v2414, %v2417
        %2421 = vset.pattern.permute.xlu0 77
        %2422 = vperm.xlu0 %2421, %v1397
        %v2423 = vpop.permute.xlu0 %2422
        %v2425 = vmul.f32 %v2413, %v2423
        %v2426 = vmul.f32 %v2414, %v2423
        %v2427 = vadd.f32 %v2403, %v2419
        %v2428 = vadd.f32 %v2404, %v2420
        %v2429 = vadd.f32 %v2405, %v2425
        %v2430 = vadd.f32 %v2406, %v2426
        %2431 = vrot.lane.b32.xlu0 %v1405, 95
        %v2432 = vpop.permute.xlu0 %2431
        %2433 = vrot.lane.b32.xlu0 %v1406, 95
        %v2434 = vpop.permute.xlu0 %2433
        %vm2435 = vcmp.lt.s32.totalorder %v532, 95
        %v2436 = vsel %vm2435, %v2432, %v2434
        %v2437 = vsel %vm2435, %v2434, %v2432
        %vm2438 = vmand %vm540, %vm550
        %vm2439 = vmand %vm541, %vm551
        %v2440 = vsel %vm2438, %v2436, 0.0
        %v2441 = vsel %vm2439, %v2437, 0.0
        %2442 = vset.pattern.permute.xlu0 78
        %2443 = vperm.xlu0 %2442, %v1397
        %v2444 = vpop.permute.xlu0 %2443
        %v2446 = vmul.f32 %v2440, %v2444
        %v2447 = vmul.f32 %v2441, %v2444
        %2448 = vset.pattern.permute.xlu0 79
        %2449 = vperm.xlu0 %2448, %v1397
        %v2450 = vpop.permute.xlu0 %2449
        %v2452 = vmul.f32 %v2440, %v2450
        %v2453 = vmul.f32 %v2441, %v2450
        %v2454 = vadd.f32 %v2427, %v2446
        %v2455 = vadd.f32 %v2428, %v2447
        %v2456 = vadd.f32 %v2429, %v2452
        %v2457 = vadd.f32 %v2430, %v2453
        %2458 = vrot.lane.b32.xlu0 %v1405, 94
        %v2459 = vpop.permute.xlu0 %2458
        %2460 = vrot.lane.b32.xlu0 %v1406, 94
        %v2461 = vpop.permute.xlu0 %2460
        %v2462 = vsel %vm1063, %v2459, %v2461
        %v2463 = vsel %vm1063, %v2461, %v2459
        %v2464 = vsel %vm1066, %v2462, 0.0
        %v2465 = vsel %vm1067, %v2463, 0.0
        %2466 = vset.pattern.permute.xlu0 80
        %2467 = vperm.xlu0 %2466, %v1397
        %v2468 = vpop.permute.xlu0 %2467
        %v2470 = vmul.f32 %v2464, %v2468
        %v2471 = vmul.f32 %v2465, %v2468
        %2472 = vset.pattern.permute.xlu0 81
        %2473 = vperm.xlu0 %2472, %v1397
        %v2474 = vpop.permute.xlu0 %2473
        %v2476 = vmul.f32 %v2464, %v2474
        %v2477 = vmul.f32 %v2465, %v2474
        %v2478 = vadd.f32 %v2454, %v2470
        %v2479 = vadd.f32 %v2455, %v2471
        %v2480 = vadd.f32 %v2456, %v2476
        %v2481 = vadd.f32 %v2457, %v2477
        %2482 = vrot.lane.b32.xlu0 %v1405, 93
        %v2483 = vpop.permute.xlu0 %2482
        %2484 = vrot.lane.b32.xlu0 %v1406, 93
        %v2485 = vpop.permute.xlu0 %2484
        %vm2486 = vcmp.lt.s32.totalorder %v532, 93
        %v2487 = vsel %vm2486, %v2483, %v2485
        %v2488 = vsel %vm2486, %v2485, %v2483
        %vm2489 = vmand %vm540, %vm566
        %vm2490 = vmand %vm541, %vm567
        %v2491 = vsel %vm2489, %v2487, 0.0
        %v2492 = vsel %vm2490, %v2488, 0.0
        %2493 = vset.pattern.permute.xlu0 82
        %2494 = vperm.xlu0 %2493, %v1397
        %v2495 = vpop.permute.xlu0 %2494
        %v2497 = vmul.f32 %v2491, %v2495
        %v2498 = vmul.f32 %v2492, %v2495
        %2499 = vset.pattern.permute.xlu0 83
        %2500 = vperm.xlu0 %2499, %v1397
        %v2501 = vpop.permute.xlu0 %2500
        %v2503 = vmul.f32 %v2491, %v2501
        %v2504 = vmul.f32 %v2492, %v2501
        %v2505 = vadd.f32 %v2478, %v2497
        %v2506 = vadd.f32 %v2479, %v2498
        %v2507 = vadd.f32 %v2480, %v2503
        %v2508 = vadd.f32 %v2481, %v2504
        %2509 = vrot.lane.b32.xlu0 %v1405, 83
        %v2510 = vpop.permute.xlu0 %2509
        %2511 = vrot.lane.b32.xlu0 %v1406, 83
        %v2512 = vpop.permute.xlu0 %2511
        %vm2513 = vcmp.lt.s32.totalorder %v532, 83
        %v2514 = vsel %vm2513, %v2510, %v2512
        %v2515 = vsel %vm2513, %v2512, %v2510
        %vm2516 = vmand %vm562, %vm568
        %vm2517 = vmand %vm563, %vm569
        %v2518 = vsel %vm2516, %v2514, 0.0
        %v2519 = vsel %vm2517, %v2515, 0.0
        %2520 = vset.pattern.permute.xlu0 84
        %2521 = vperm.xlu0 %2520, %v1397
        %v2522 = vpop.permute.xlu0 %2521
        %v2524 = vmul.f32 %v2518, %v2522
        %v2525 = vmul.f32 %v2519, %v2522
        %2526 = vset.pattern.permute.xlu0 85
        %2527 = vperm.xlu0 %2526, %v1397
        %v2528 = vpop.permute.xlu0 %2527
        %v2530 = vmul.f32 %v2518, %v2528
        %v2531 = vmul.f32 %v2519, %v2528
        %v2532 = vadd.f32 %v2505, %v2524
        %v2533 = vadd.f32 %v2506, %v2525
        %v2534 = vadd.f32 %v2507, %v2530
        %v2535 = vadd.f32 %v2508, %v2531
        %2536 = vrot.lane.b32.xlu0 %v1405, 82
        %v2537 = vpop.permute.xlu0 %2536
        %2538 = vrot.lane.b32.xlu0 %v1406, 82
        %v2539 = vpop.permute.xlu0 %2538
        %vm2540 = vcmp.lt.s32.totalorder %v532, 82
        %v2541 = vsel %vm2540, %v2537, %v2539
        %v2542 = vsel %vm2540, %v2539, %v2537
        %vm2543 = vmand %vm562, %vm558
        %vm2544 = vmand %vm563, %vm559
        %v2545 = vsel %vm2543, %v2541, 0.0
        %v2546 = vsel %vm2544, %v2542, 0.0
        %2547 = vset.pattern.permute.xlu0 86
        %2548 = vperm.xlu0 %2547, %v1397
        %v2549 = vpop.permute.xlu0 %2548
        %v2551 = vmul.f32 %v2545, %v2549
        %v2552 = vmul.f32 %v2546, %v2549
        %2553 = vset.pattern.permute.xlu0 87
        %2554 = vperm.xlu0 %2553, %v1397
        %v2555 = vpop.permute.xlu0 %2554
        %v2557 = vmul.f32 %v2545, %v2555
        %v2558 = vmul.f32 %v2546, %v2555
        %v2559 = vadd.f32 %v2532, %v2551
        %v2560 = vadd.f32 %v2533, %v2552
        %v2561 = vadd.f32 %v2534, %v2557
        %v2562 = vadd.f32 %v2535, %v2558
        %2563 = vrot.lane.b32.xlu0 %v1405, 81
        %v2564 = vpop.permute.xlu0 %2563
        %2565 = vrot.lane.b32.xlu0 %v1406, 81
        %v2566 = vpop.permute.xlu0 %2565
        %vm2567 = vcmp.lt.s32.totalorder %v532, 81
        %v2568 = vsel %vm2567, %v2564, %v2566
        %v2569 = vsel %vm2567, %v2566, %v2564
        %vm2570 = vmand %vm562, %vm556
        %vm2571 = vmand %vm563, %vm557
        %v2572 = vsel %vm2570, %v2568, 0.0
        %v2573 = vsel %vm2571, %v2569, 0.0
        %2574 = vset.pattern.permute.xlu0 88
        %2575 = vperm.xlu0 %2574, %v1397
        %v2576 = vpop.permute.xlu0 %2575
        %v2578 = vmul.f32 %v2572, %v2576
        %v2579 = vmul.f32 %v2573, %v2576
        %2580 = vset.pattern.permute.xlu0 89
        %2581 = vperm.xlu0 %2580, %v1397
        %v2582 = vpop.permute.xlu0 %2581
        %v2584 = vmul.f32 %v2572, %v2582
        %v2585 = vmul.f32 %v2573, %v2582
        %v2586 = vadd.f32 %v2559, %v2578
        %v2587 = vadd.f32 %v2560, %v2579
        %v2588 = vadd.f32 %v2561, %v2584
        %v2589 = vadd.f32 %v2562, %v2585
        %2590 = vrot.lane.b32.xlu0 %v1405, 80
        %v2591 = vpop.permute.xlu0 %2590
        %2592 = vrot.lane.b32.xlu0 %v1406, 80
        %v2593 = vpop.permute.xlu0 %2592
        %vm2594 = vcmp.lt.s32.totalorder %v532, 80
        %v2595 = vsel %vm2594, %v2591, %v2593
        %v2596 = vsel %vm2594, %v2593, %v2591
        %v2597 = vsel %vm562, %v2595, 0.0
        %v2598 = vsel %vm563, %v2596, 0.0
        %2599 = vset.pattern.permute.xlu0 90
        %2600 = vperm.xlu0 %2599, %v1397
        %v2601 = vpop.permute.xlu0 %2600
        %v2603 = vmul.f32 %v2597, %v2601
        %v2604 = vmul.f32 %v2598, %v2601
        %2605 = vset.pattern.permute.xlu0 91
        %2606 = vperm.xlu0 %2605, %v1397
        %v2607 = vpop.permute.xlu0 %2606
        %v2609 = vmul.f32 %v2597, %v2607
        %v2610 = vmul.f32 %v2598, %v2607
        %v2611 = vadd.f32 %v2586, %v2603
        %v2612 = vadd.f32 %v2587, %v2604
        %v2613 = vadd.f32 %v2588, %v2609
        %v2614 = vadd.f32 %v2589, %v2610
        %2615 = vrot.lane.b32.xlu0 %v1405, 79
        %v2616 = vpop.permute.xlu0 %2615
        %2617 = vrot.lane.b32.xlu0 %v1406, 79
        %v2618 = vpop.permute.xlu0 %2617
        %vm2619 = vcmp.lt.s32.totalorder %v532, 79
        %v2620 = vsel %vm2619, %v2616, %v2618
        %v2621 = vsel %vm2619, %v2618, %v2616
        %vm2622 = vmand %vm562, %vm550
        %vm2623 = vmand %vm563, %vm551
        %v2624 = vsel %vm2622, %v2620, 0.0
        %v2625 = vsel %vm2623, %v2621, 0.0
        %2626 = vset.pattern.permute.xlu0 92
        %2627 = vperm.xlu0 %2626, %v1397
        %v2628 = vpop.permute.xlu0 %2627
        %v2630 = vmul.f32 %v2624, %v2628
        %v2631 = vmul.f32 %v2625, %v2628
        %2632 = vset.pattern.permute.xlu0 93
        %2633 = vperm.xlu0 %2632, %v1397
        %v2634 = vpop.permute.xlu0 %2633
        %v2636 = vmul.f32 %v2624, %v2634
        %v2637 = vmul.f32 %v2625, %v2634
        %v2638 = vadd.f32 %v2611, %v2630
        %v2639 = vadd.f32 %v2612, %v2631
        %v2640 = vadd.f32 %v2613, %v2636
        %v2641 = vadd.f32 %v2614, %v2637
        %2642 = vrot.lane.b32.xlu0 %v1405, 78
        %v2643 = vpop.permute.xlu0 %2642
        %2644 = vrot.lane.b32.xlu0 %v1406, 78
        %v2645 = vpop.permute.xlu0 %2644
        %vm2646 = vcmp.lt.s32.totalorder %v532, 78
        %v2647 = vsel %vm2646, %v2643, %v2645
        %v2648 = vsel %vm2646, %v2645, %v2643
        %vm2649 = vmand %vm562, %vm552
        %vm2650 = vmand %vm563, %vm553
        %v2651 = vsel %vm2649, %v2647, 0.0
        %v2652 = vsel %vm2650, %v2648, 0.0
        %2653 = vset.pattern.permute.xlu0 94
        %2654 = vperm.xlu0 %2653, %v1397
        %v2655 = vpop.permute.xlu0 %2654
        %v2657 = vmul.f32 %v2651, %v2655
        %v2658 = vmul.f32 %v2652, %v2655
        %2659 = vset.pattern.permute.xlu0 95
        %2660 = vperm.xlu0 %2659, %v1397
        %v2661 = vpop.permute.xlu0 %2660
        %v2663 = vmul.f32 %v2651, %v2661
        %v2664 = vmul.f32 %v2652, %v2661
        %v2665 = vadd.f32 %v2638, %v2657
        %v2666 = vadd.f32 %v2639, %v2658
        %v2667 = vadd.f32 %v2640, %v2663
        %v2668 = vadd.f32 %v2641, %v2664
        %2669 = vrot.lane.b32.xlu0 %v1405, 77
        %v2670 = vpop.permute.xlu0 %2669
        %2671 = vrot.lane.b32.xlu0 %v1406, 77
        %v2672 = vpop.permute.xlu0 %2671
        %vm2673 = vcmp.lt.s32.totalorder %v532, 77
        %v2674 = vsel %vm2673, %v2670, %v2672
        %v2675 = vsel %vm2673, %v2672, %v2670
        %vm2676 = vmand %vm562, %vm566
        %vm2677 = vmand %vm563, %vm567
        %v2678 = vsel %vm2676, %v2674, 0.0
        %v2679 = vsel %vm2677, %v2675, 0.0
        %2680 = vset.pattern.permute.xlu0 96
        %2681 = vperm.xlu0 %2680, %v1397
        %v2682 = vpop.permute.xlu0 %2681
        %v2684 = vmul.f32 %v2678, %v2682
        %v2685 = vmul.f32 %v2679, %v2682
        %2686 = vset.pattern.permute.xlu0 97
        %2687 = vperm.xlu0 %2686, %v1397
        %v2688 = vpop.permute.xlu0 %2687
        %v2690 = vmul.f32 %v2678, %v2688
        %v2691 = vmul.f32 %v2679, %v2688
        %v2692 = vadd.f32 %v2665, %v2684
        %v2693 = vadd.f32 %v2666, %v2685
        %v2694 = vadd.f32 %v2667, %v2690
        %v2695 = vadd.f32 %v2668, %v2691
        %v2698 = vrot.slane %v2692, 1
        %v2699 = vrot.slane %v2693, 1
        %v2702 = vadd.f32 %v2692, %v2698
        %v2703 = vadd.f32 %v2693, %v2699
        %s2704 = sld [smem:[#allocation10]]
        %v2705 = vstv %s2704
        %v2706 = vadd.f32 %v2702, %v2705
        %v2707 = vadd.f32 %v2703, %v2705
        %v2710 = vrot.slane %v2694, 1
        %v2711 = vrot.slane %v2695, 1
        %v2714 = vadd.f32 %v2694, %v2710
        %v2715 = vadd.f32 %v2695, %v2711
        %s2716 = sld [smem:[#allocation10 + $0x1]]
        %v2717 = vstv %s2716
        %v2718 = vadd.f32 %v2714, %v2717
        %v2719 = vadd.f32 %v2715, %v2717
        %v2720 = vxor.u32 %v2706, 2147483648
        %v2721 = vxor.u32 %v2707, 2147483648
        %v2722 = vmul.f32 %v2720, 1.442695
        %v2723 = vpow.pop %v2722
        %v2724 = vmul.f32 %v2721, 1.442695
        %v2725 = vpow.pop %v2724
        %v2726 = vadd.f32 %v2723, 1.0
        %v2727 = vadd.f32 %v2725, 1.0
        %v2728 = vrcp.pop %v2726
        %v2729 = vmul.f32 1.0, %v2728
        %v2730 = vrcp.pop %v2727
        %v2731 = vmul.f32 1.0, %v2730
        %v2732 = vxor.u32 %v2718, 2147483648
        %v2733 = vxor.u32 %v2719, 2147483648
        %v2734 = vmul.f32 %v2732, 1.442695
        %v2735 = vpow.pop %v2734
        %v2736 = vmul.f32 %v2733, 1.442695
        %v2737 = vpow.pop %v2736
        %v2738 = vadd.f32 %v2735, 1.0
        %v2739 = vadd.f32 %v2737, 1.0
        %v2740 = vrcp.pop %v2738
        %v2741 = vmul.f32 1.0, %v2740
        %v2742 = vrcp.pop %v2739
        %v2743 = vmul.f32 1.0, %v2742
        %v2744 = vmul.f32 %v1205, %v2729
        %v2745 = vmul.f32 %v1206, %v2731
        %v2746 = vmul.f32 %v1293, %v2741
        %v2747 = vmul.f32 %v1294, %v2743
        %v2748 = vadd.f32 %v2744, %v2746
        %v2749 = vadd.f32 %v2745, %v2747
        %v2750 = vmul.f32 %v1249, %v2729
        %v2751 = vmul.f32 %v1250, %v2731
        %v2752 = vmul.f32 %v1337, %v2741
        %v2753 = vmul.f32 %v1338, %v2743
        %v2754 = vadd.f32 %v2750, %v2752
        %v2755 = vadd.f32 %v2751, %v2753
        %s2756 = sld [smem:[#allocation11]]
        %v2757 = vstv %s2756
        %v2758 = vmul.f32 %v2748, %v2757
        %v2759 = vmul.f32 %v2749, %v2757
        %s2760 = sld [smem:[#allocation11 + $0x4]]
        %v2761 = vstv %s2760
        %v2762 = vmul.f32 %v2754, %v2761
        %v2763 = vmul.f32 %v2755, %v2761
        %v2764 = vadd.f32 %v2758, %v2762
        %v2765 = vadd.f32 %v2759, %v2763
        %s2766 = sld [smem:[#allocation13]]
        %v2767 = vstv %s2766
        %v2768 = vadd.f32 %v2764, %v2767
        %v2769 = vadd.f32 %v2765, %v2767
        %v2770 = vlaneseq
        %v2771 = vshrl.u32 %v2770, 7
        %v2772 = vsub.s32 0, %v2771
        %v2773 = vrot.slane %v530, %v2772
        %v2774 = vlaneseq
        %v2775 = vshrl.u32 %v2774, 7
        %v2776 = vsub.s32 4, %v2775
        %v2777 = vrot.slane %v530, %v2776
        %v2780 = vmul.f32 %v2768, %v2773
        %v2781 = vmul.f32 %v2769, %v2777
        %v2784 = vcombine.low %v2780, %v2781
        %v2786 = vunpack.c.l.s4 1966171168
        %v2787 = vunpack.c.0.s8 %v2786
        %v2788 = vlaneseq
        %v2789 = vshrl.u32 %v2788, 7
        %v2790 = vsub.s32 %v2787, %v2789
        %v2791 = vrot.slane %v2784, %v2790
        %v2793 = vunpack.c.l.s4 1966171168
        %v2794 = vunpack.c.0.s8 %v2793
        %v2795 = vlaneseq
        %v2796 = vshrl.u32 %v2795, 7
        %v2797 = vsub.s32 %v2794, %v2796
        %v2798 = vrot.slane %v2791, %v2797
        %2800 = vst.msk [vmem:[%s529] ss:$4 sm:$0x3] %vm1374, %v2798
        %s2801 = sld [smem:[#allocation11 + $0x1]]
        %v2802 = vstv %s2801
        %v2803 = vmul.f32 %v2748, %v2802
        %v2804 = vmul.f32 %v2749, %v2802
        %s2805 = sld [smem:[#allocation11 + $0x5]]
        %v2806 = vstv %s2805
        %v2807 = vmul.f32 %v2754, %v2806
        %v2808 = vmul.f32 %v2755, %v2806
        %v2809 = vadd.f32 %v2803, %v2807
        %v2810 = vadd.f32 %v2804, %v2808
        %s2811 = sld [smem:[#allocation13 + $0x1]]
        %v2812 = vstv %s2811
        %v2813 = vadd.f32 %v2809, %v2812
        %v2814 = vadd.f32 %v2810, %v2812
        %v2815 = vlaneseq
        %v2816 = vshrl.u32 %v2815, 7
        %v2817 = vsub.s32 1, %v2816
        %v2818 = vrot.slane %v530, %v2817
        %v2819 = vlaneseq
        %v2820 = vshrl.u32 %v2819, 7
        %v2821 = vsub.s32 5, %v2820
        %v2822 = vrot.slane %v530, %v2821
        %v2825 = vmul.f32 %v2813, %v2818
        %v2826 = vmul.f32 %v2814, %v2822
        %v2829 = vcombine.low %v2825, %v2826
        %v2831 = vunpack.c.l.s4 1966171168
        %v2832 = vunpack.c.0.s8 %v2831
        %v2833 = vlaneseq
        %v2834 = vshrl.u32 %v2833, 7
        %v2835 = vsub.s32 %v2832, %v2834
        %v2836 = vrot.slane %v2829, %v2835
        %v2838 = vunpack.c.l.s4 1966171168
        %v2839 = vunpack.c.0.s8 %v2838
        %v2840 = vlaneseq
        %v2841 = vshrl.u32 %v2840, 7
        %v2842 = vsub.s32 %v2839, %v2841
        %v2843 = vrot.slane %v2836, %v2842
        %s2845 = scalar_lea.vmem %s529, 1
        %2846 = vst.msk [vmem:[%s2845] ss:$4 sm:$0x3] %vm1374, %v2843
        %s2847 = sld [smem:[#allocation11 + $0x2]]
        %v2848 = vstv %s2847
        %v2849 = vmul.f32 %v2748, %v2848
        %v2850 = vmul.f32 %v2749, %v2848
        %s2851 = sld [smem:[#allocation11 + $0x6]]
        %v2852 = vstv %s2851
        %v2853 = vmul.f32 %v2754, %v2852
        %v2854 = vmul.f32 %v2755, %v2852
        %v2855 = vadd.f32 %v2849, %v2853
        %v2856 = vadd.f32 %v2850, %v2854
        %s2857 = sld [smem:[#allocation13 + $0x2]]
        %v2858 = vstv %s2857
        %v2859 = vadd.f32 %v2855, %v2858
        %v2860 = vadd.f32 %v2856, %v2858
        %v2861 = vlaneseq
        %v2862 = vshrl.u32 %v2861, 7
        %v2863 = vsub.s32 2, %v2862
        %v2864 = vrot.slane %v530, %v2863
        %v2865 = vlaneseq
        %v2866 = vshrl.u32 %v2865, 7
        %v2867 = vsub.s32 6, %v2866
        %v2868 = vrot.slane %v530, %v2867
        %v2871 = vmul.f32 %v2859, %v2864
        %v2872 = vmul.f32 %v2860, %v2868
        %v2875 = vcombine.low %v2871, %v2872
        %v2877 = vunpack.c.l.s4 1966171168
        %v2878 = vunpack.c.0.s8 %v2877
        %v2879 = vlaneseq
        %v2880 = vshrl.u32 %v2879, 7
        %v2881 = vsub.s32 %v2878, %v2880
        %v2882 = vrot.slane %v2875, %v2881
        %v2884 = vunpack.c.l.s4 1966171168
        %v2885 = vunpack.c.0.s8 %v2884
        %v2886 = vlaneseq
        %v2887 = vshrl.u32 %v2886, 7
        %v2888 = vsub.s32 %v2885, %v2887
        %v2889 = vrot.slane %v2882, %v2888
        %s2891 = scalar_lea.vmem %s529, 2
        %2892 = vst.msk [vmem:[%s2891] ss:$4 sm:$0x3] %vm1374, %v2889
        %s2893 = sld [smem:[#allocation11 + $0x3]]
        %v2894 = vstv %s2893
        %v2895 = vmul.f32 %v2748, %v2894
        %v2896 = vmul.f32 %v2749, %v2894
        %s2897 = sld [smem:[#allocation11 + $0x7]]
        %v2898 = vstv %s2897
        %v2899 = vmul.f32 %v2754, %v2898
        %v2900 = vmul.f32 %v2755, %v2898
        %v2901 = vadd.f32 %v2895, %v2899
        %v2902 = vadd.f32 %v2896, %v2900
        %s2903 = sld [smem:[#allocation13 + $0x3]]
        %v2904 = vstv %s2903
        %v2905 = vadd.f32 %v2901, %v2904
        %v2906 = vadd.f32 %v2902, %v2904
        %v2907 = vlaneseq
        %v2908 = vshrl.u32 %v2907, 7
        %v2909 = vsub.s32 3, %v2908
        %v2910 = vrot.slane %v530, %v2909
        %v2911 = vlaneseq
        %v2912 = vshrl.u32 %v2911, 7
        %v2913 = vsub.s32 7, %v2912
        %v2914 = vrot.slane %v530, %v2913
        %v2917 = vmul.f32 %v2905, %v2910
        %v2918 = vmul.f32 %v2906, %v2914
        %v2921 = vcombine.low %v2917, %v2918
        %v2923 = vunpack.c.l.s4 1966171168
        %v2924 = vunpack.c.0.s8 %v2923
        %v2925 = vlaneseq
        %v2926 = vshrl.u32 %v2925, 7
        %v2927 = vsub.s32 %v2924, %v2926
        %v2928 = vrot.slane %v2921, %v2927
        %v2930 = vunpack.c.l.s4 1966171168
        %v2931 = vunpack.c.0.s8 %v2930
        %v2932 = vlaneseq
        %v2933 = vshrl.u32 %v2932, 7
        %v2934 = vsub.s32 %v2931, %v2933
        %v2935 = vrot.slane %v2928, %v2934
        %s2937 = scalar_lea.vmem %s529, 3
        %2938 = vst.msk [vmem:[%s2937] ss:$4 sm:$0x3] %vm1374, %v2935
        %p2939 = scmp.lt.s32.totalorder %s28, 1
        %s2940 = scalar_select %p2939, %s28, 1
        %s2941 = smul.addr %s2940, 2
        %s2942 = smul.addr %s2941, 4
        %s2943 = scalar_lea.vmem %s13, %s2942
        // Predicated region
        $region101: #{spatial_attention_nchw.1} parent=71 // pred_check
          %p2944 = pneg %p324
        $region102: #{spatial_attention_nchw.1} parent=71 // pred_check_branch
          %2946 = sbr.rel (%p2944) target = $region104
        $region103: #{spatial_attention_nchw.1} parent=71 // pred_region
          _
        $region104: #{spatial_attention_nchw.1} parent=71 // pred_fallthru
          _
      $region72: #{spatial_attention_nchw.1} parent=5 // pred_fallthru
        _
      %p2947 = scmp.le.s32.totalorder 2, %s23
      // Predicated region
      $region105: #{spatial_attention_nchw.1} parent=5 // pred_check
        %p2948 = pneg %p2947
      $region106: #{spatial_attention_nchw.1} parent=5 // pred_check_branch
        %2950 = sbr.rel (%p2948) target = $region108
      $region107: #{spatial_attention_nchw.1} parent=5 // pred_region
        %s2951 = ssub.s32 %s23, 2
        // Predicated region
        $region109: #{spatial_attention_nchw.1} parent=107 // pred_check
          %p2952 = pneg %p330
        $region110: #{spatial_attention_nchw.1} parent=107 // pred_check_branch
          %2954 = sbr.rel (%p2952) target = $region112
        $region111: #{spatial_attention_nchw.1} parent=107 // pred_region
          %p2955 = scmp.lt.s32.totalorder %s29, 1
          %s2956 = scalar_select %p2955, %s29, 1
          %s2957 = smul.addr %s2956, 2
          %s2958 = smul.addr %s2957, 4
          %s2959 = scalar_lea.vmem %s13, %s2958
        $region112: #{spatial_attention_nchw.1} parent=107 // pred_fallthru
          _
      $region108: #{spatial_attention_nchw.1} parent=5 // pred_fallthru
        _
    $region6: #{spatial_attention_nchw.1} parent=1 // loop_footer
      %s27 = sadd.s32 1, %s23
    $region7: #{spatial_attention_nchw.1} parent=1 // loop_footer_branch
      %22 = sbr.rel target = $region3
    $region8: #{spatial_attention_nchw.1} parent=1 // loop_exit
      _
    %2960 = vsyncpa [#allocation4], 1
    %s2961 = scalar_lea.sflag [#allocation4], 1
    %2962 = vsyncpa %s2961, 1
    %2963 = vsyncpa [#allocation6], 1
    %2964 = vsyncpa [#allocation9], 1
    %2965 = vsyncpa [#allocation12], 1

</llo_original>
